<compile_context>
chip_gen: v6e
topology: v6e:2x2x1
jax: 0.10.0
libtpu: 0.0.40
codegen_flags: <defaults>
</compile_context>

<pallas_src>
import functools

import jax
import jax.numpy as jnp
from jax.experimental import pallas as pl
from jax.experimental.pallas import tpu as pltpu


C1P = 16  # conv1 output channels padded 10 -> 16 (one bf16 sublane tile)


# ----------------------------------------------------------------------------
# Fused kernel
# ----------------------------------------------------------------------------
def _pnet_kernel(xe_ref, xo_ref, w1_ref, b1_ref, w2_ref, b2_ref, w3_ref, b3_ref,
                 wh_ref, bh_ref, a_ref, o_ref, pool_ref, *, H, W):
    f32, bf16 = jnp.float32, jnp.bfloat16
    h1, w1 = H - 2, W - 2                       # conv1 valid spatial size
    hp, wp = -(-h1 // 2), -(-w1 // 2)           # pooled size (ceil_mode=True)
    We = (W + 1) // 2                           # parity-split row stride
    n_in = H * We

    def prelu(y, a):
        return jnp.where(y > 0, y, a * y)

    # ---- conv1 (3 -> 10, padded to 16) fused with MaxPool2d(2, 2, ceil) -----
    # Even conv1 output columns read (even, odd, even+1) input columns; odd
    # ones read (odd, even+1, odd+1).  So every tap of either parity is ONE
    # contiguous lane slice of the parity-split input, and a conv is a single
    # tap-stacked matmul.  No reduction ever crosses flat rows: the matmuls
    # contract only over (tap, channel); out-of-row-range columns are garbage
    # that downstream stages never read.
    taps_e = ((xe_ref, 0), (xo_ref, 0), (xe_ref, 1))     # kx = 0, 1, 2
    taps_o = ((xo_ref, 0), (xe_ref, 1), (xo_ref, 1))

    def conv1_rows(base, m, taps):
        assert base + 2 * We + 1 + m <= n_in              # static bounds check
        xs = jnp.concatenate(
            [ref[:, base + ky * We + off: base + ky * We + off + m]
             for ky in range(3) for ref, off in taps], axis=0)          # (27, m)
        y = jnp.dot(w1_ref[...], xs.astype(bf16), preferred_element_type=f32)
        return prelu(y + b1_ref[...], a_ref[0])                         # (16, m)

    for i in range(hp):                    # tiny static trip count; at real
        rows2 = 2 if 2 * i + 1 < h1 else 1  # image sizes this becomes a grid axis
        m = (rows2 - 1) * We + wp
        base = 2 * i * We
        ye = conv1_rows(base, m, taps_e)
        yo = conv1_rows(base, m, taps_o)
        parts_e = [ye[:, r * We: r * We + wp] for r in range(rows2)]
        parts_o = [yo[:, r * We: r * We + wp] for r in range(rows2)]
        if w1 % 2:                         # ceil-mode pad column: odd parity has
            col = jax.lax.broadcasted_iota(jnp.int32, (C1P, wp), 1)  # no sample
            parts_o = [jnp.where(col < wp - 1, t, -jnp.inf) for t in parts_o]
        pooled = functools.reduce(jnp.maximum, parts_e + parts_o)
        pool_ref[:, i * wp:(i + 1) * wp] = pooled.astype(bf16)  # one pooled row

    # ---- conv2 (16 -> 16) + PReLU: one tap-stacked matmul, K = 144 ----------
    h2, w2 = hp - 2, wp - 2
    m2 = (h2 - 1) * wp + w2
    assert 2 * wp + 2 + m2 <= hp * wp
    x2 = jnp.concatenate(
        [pool_ref[:, ky * wp + kx: ky * wp + kx + m2]
         for ky in range(3) for kx in range(3)], axis=0)                # (144, m2)
    y2 = prelu(jnp.dot(w2_ref[...], x2, preferred_element_type=f32) + b2_ref[...],
               a_ref[1]).astype(bf16)                                   # (16, m2)

    # ---- conv3 (16 -> 32) + PReLU: one tap-stacked matmul, K = 144 ----------
    h3, w3 = h2 - 2, w2 - 2
    m3 = (h3 - 1) * wp + w3
    assert 2 * wp + 2 + m3 <= m2
    x3 = jnp.concatenate(
        [y2[:, ky * wp + kx: ky * wp + kx + m3]
         for ky in range(3) for kx in range(3)], axis=0)                # (144, m3)
    y3 = prelu(jnp.dot(w3_ref[...], x3, preferred_element_type=f32) + b3_ref[...],
               a_ref[2]).astype(bf16)                                   # (32, m3)

    # ---- fused 1x1 heads (2 + 4 + 10 channels): one matmul, one dense store -
    # Runs on the full flat y3 (garbage columns included); the wrapper gathers
    # the h3*w3 valid positions, so no in-kernel compaction copies are needed.
    o_ref[...] = (jnp.dot(wh_ref[...], y3, preferred_element_type=f32)
                  + bh_ref[...])


# ----------------------------------------------------------------------------
# One-time parameter layout prep (hoisted out of the forward pass)
# ----------------------------------------------------------------------------
def prepare_params(p):
    f32, bf16 = jnp.float32, jnp.bfloat16

    def stack_taps(w, cin_pad):
        # (cout, cin, 3, 3) -> (cout, 9*cin_pad), tap-major (ky, kx), channel-minor
        cout, cin, kh, kw = w.shape
        w = jnp.pad(w, ((0, 0), (0, cin_pad - cin), (0, 0), (0, 0)))
        return jnp.transpose(w, (0, 2, 3, 1)).reshape(cout, kh * kw * cin_pad)

    w1s = jnp.pad(stack_taps(p["w1"], 3), ((0, C1P - 10), (0, 0)))      # (16, 27)
    b1 = jnp.pad(p["b1"], (0, C1P - 10)).reshape(-1, 1)                 # (16, 1)
    w2s = stack_taps(p["w2"], C1P)                                      # (16, 144)
    w3s = stack_taps(p["w3"], 16)                                       # (32, 144)
    wh = jnp.concatenate([p["wc"], p["wb"], p["wl"]], axis=0)[:, :, 0, 0]  # (16, 32)
    bh = jnp.concatenate([p["bc"], p["bb"], p["bl"]]).reshape(-1, 1)       # (16, 1)
    return {
        "w1": w1s.astype(bf16), "b1": b1.astype(f32),
        "w2": w2s.astype(bf16), "b2": p["b2"].reshape(-1, 1).astype(f32),
        "w3": w3s.astype(bf16), "b3": p["b3"].reshape(-1, 1).astype(f32),
        "wh": wh.astype(bf16),  "bh": bh.astype(f32),
        "alpha": jnp.concatenate([p["a1"], p["a2"], p["a3"]]).astype(f32),
    }


# ----------------------------------------------------------------------------
# Forward wrapper (single fused pallas_call)
# ----------------------------------------------------------------------------
def pnet_forward(x_nchw, pp):
    n, c, H, W = x_nchw.shape
    assert n == 1 and c == 3, "torch.squeeze(dim=0) semantics assume N == 1, C == 3"
    h1, w1 = H - 2, W - 2
    hp, wp = -(-h1 // 2), -(-w1 // 2)
    h3, w3 = hp - 4, wp - 4
    m3 = (h3 - 1) * wp + w3
    We = (W + 1) // 2

    # channels-on-sublanes / spatial-on-lanes layout, split by column parity so
    # the in-kernel 2x2 max-pool is a 4-way elementwise max (no stride-2 lane
    # access).  Kept f32 here; the kernel casts MXU operands to bf16.
    x = x_nchw[0]
    if W % 2:
        x = jnp.pad(x, ((0, 0), (0, 0), (0, 1)))
    xe = x[:, :, 0::2].reshape(3, H * We)
    xo = x[:, :, 1::2].reshape(3, H * We)

    vmem = pl.BlockSpec(memory_space=pltpu.MemorySpace.VMEM)
    smem = pl.BlockSpec(memory_space=pltpu.MemorySpace.SMEM)
    # NOTE: a grid-less call is right for small crops; real pyramid levels
    # should add a "parallel" row-tile grid axis (2-row input halos) so v7x's
    # two TensorCores are used and per-tile working sets fit its 64 MiB VMEM.
    out = pl.pallas_call(
        functools.partial(_pnet_kernel, H=H, W=W),
        out_shape=jax.ShapeDtypeStruct((16, m3), jnp.float32),
        in_specs=[vmem] * 10 + [smem],
        out_specs=vmem,
        scratch_shapes=[pltpu.VMEM((C1P, hp * wp), jnp.bfloat16)],
    )(xe, xo, pp["w1"], pp["b1"], pp["w2"], pp["b2"], pp["w3"], pp["b3"],
      pp["wh"], pp["bh"], pp["alpha"])

    # gather the h3*w3 valid flat positions (row stride wp) and split the heads
    cols = (jnp.arange(h3)[:, None] * wp + jnp.arange(w3)[None, :]).reshape(-1)
    y = out[:, cols].reshape(16, h3, w3)
    return y[0:2], y[2:6], y[6:16]            # (2,h,w), (4,h,w), (10,h,w)


# ----------------------------------------------------------------------------
# Pure-JAX reference mirroring the kernel's bf16 operand quantisation
# (f32 accumulation, f32 bias/PReLU/pooling) so the tolerance stays tight.
# ----------------------------------------------------------------------------
def ref_forward(x_nchw, p):
    f32, bf16 = jnp.float32, jnp.bfloat16
    q = lambda t: t.astype(bf16).astype(f32)          # MXU-input quantisation
    x = jnp.transpose(x_nchw[0], (1, 2, 0)).astype(f32)          # (H, W, 3)

    def conv_valid(x, w_oihw, b):
        xq, wq = q(x), q(w_oihw)
        cout, cin, kh, kw = w_oihw.shape
        H, W, _ = x.shape
        ho, wo = H - kh + 1, W - kw + 1
        y = jnp.zeros((ho, wo, cout), f32)
        for ky in range(kh):
            for kx in range(kw):
                patch = xq[ky:ky + ho, kx:kx + wo, :]             # (ho, wo, cin)
                wt = jnp.transpose(wq[:, :, ky, kx], (1, 0))      # (cin, cout)
                y = y + jnp.sum(patch[:, :, :, None] * wt[None, None, :, :], axis=2)
        return y + b.astype(f32)

    def prelu(y, a):
        return jnp.where(y > 0, y, a * y)

    def maxpool2_ceil(y):
        h, w, c = y.shape
        hp, wp = -(-h // 2), -(-w // 2)
        y = jnp.pad(y, ((0, 2 * hp - h), (0, 2 * wp - w), (0, 0)),
                    constant_values=-jnp.inf)
        return y.reshape(hp, 2, wp, 2, c).max(axis=(1, 3))

    x = prelu(conv_valid(x, p["w1"], p["b1"]), p["a1"][0])
    x = maxpool2_ceil(x)
    x = prelu(conv_valid(x, p["w2"], p["b2"]), p["a2"][0])
    x = prelu(conv_valid(x, p["w3"], p["b3"]), p["a3"][0])
    c = conv_valid(x, p["wc"], p["bc"])
    b = conv_valid(x, p["wb"], p["bb"])
    l = conv_valid(x, p["wl"], p["bl"])
    t = lambda y: jnp.transpose(y, (2, 0, 1))
    return t(c), t(b), t(l)


# ----------------------------------------------------------------------------
# Deterministic synthetic parameters (no checkpoint load)
# ----------------------------------------------------------------------------
def init_params(key):
    ks = jax.random.split(key, 12)
    n = lambda k, shape, s=0.1: (s * jax.random.normal(k, shape)).astype(jnp.float32)
    return {
        "w1": n(ks[0], (10, 3, 3, 3)),   "b1": n(ks[1], (10,), 0.01),
        "w2": n(ks[2], (16, 10, 3, 3)),  "b2": n(ks[3], (16,), 0.01),
        "w3": n(ks[4], (32, 16, 3, 3)),  "b3": n(ks[5], (32,), 0.01),
        "wc": n(ks[6], (2, 32, 1, 1)),   "bc": n(ks[7], (2,), 0.01),
        "wb": n(ks[8], (4, 32, 1, 1)),   "bb": n(ks[9], (4,), 0.01),
        "wl": n(ks[10], (10, 32, 1, 1)), "bl": n(ks[11], (10,), 0.01),
        # nn.PReLU() default: single shared slope initialized to 0.25
        "a1": jnp.array([0.25], jnp.float32),
        "a2": jnp.array([0.25], jnp.float32),
        "a3": jnp.array([0.25], jnp.float32),
    }


if __name__ == "__main__":
    key = jax.random.PRNGKey(0)
    k_x, k_p = jax.random.split(key)
    # N=1 (required by the squeeze semantics), C=3 (fixed by the module),
    # 16x16 spatial -> 14 -> 7 -> 5 -> 3 spatial output.
    x = jax.random.normal(k_x, (1, 3, 16, 16), dtype=jnp.float32)
    params = init_params(k_p)
    prepped = prepare_params(params)          # one-time weight layout prep

    fwd = jax.jit(pnet_forward)
    cls_out, bbox_out, lmk_out = jax.block_until_ready(fwd(x, prepped))
    assert cls_out.shape == (2, 3, 3)
    assert bbox_out.shape == (4, 3, 3)
    assert lmk_out.shape == (10, 3, 3)

    cls_r, bbox_r, lmk_r = ref_forward(x, params)
    # Reference applies the same bf16 operand quantisation with f32 accumulate;
    # remaining slack covers summation-order / re-quantisation differences.
    # Real layout bugs still show up as O(1) errors.
    for got, want in ((cls_out, cls_r), (bbox_out, bbox_r), (lmk_out, lmk_r)):
        assert jnp.allclose(got, want, atol=2e-2, rtol=2e-2), \
            float(jnp.max(jnp.abs(got - want)))

    print("KERNEL_OK")
</pallas_src>

<mosaic_0001>
module attributes {stable_mosaic.version = 11 : i64} {
  func.func @_pnet_kernel(%arg0: memref<3x128xf32, #tpu.memory_space<vmem>>, %arg1: memref<3x128xf32, #tpu.memory_space<vmem>>, %arg2: memref<16x27xbf16, #tpu.memory_space<vmem>>, %arg3: memref<16x1xf32, #tpu.memory_space<vmem>>, %arg4: memref<16x144xbf16, #tpu.memory_space<vmem>>, %arg5: memref<16x1xf32, #tpu.memory_space<vmem>>, %arg6: memref<32x144xbf16, #tpu.memory_space<vmem>>, %arg7: memref<32x1xf32, #tpu.memory_space<vmem>>, %arg8: memref<16x32xbf16, #tpu.memory_space<vmem>>, %arg9: memref<16x1xf32, #tpu.memory_space<vmem>>, %arg10: memref<3xf32, #tpu.memory_space<smem>>, %arg11: memref<16x17xf32, #tpu.memory_space<vmem>>, %arg12: memref<16x49xbf16, #tpu.memory_space<vmem>>) attributes {dimension_semantics = [], scalar_prefetch = 0 : i64, scratch_operands = 1 : i64, tpu.core_type = #tpu.core_type<tc>} {
    %c0 = arith.constant 0 : index
    %c0_0 = arith.constant 0 : index
    %0 = vector.load %arg0[%c0, %c0_0] : memref<3x128xf32, #tpu.memory_space<vmem>>, vector<3x15xf32>
    %c0_1 = arith.constant 0 : index
    %c0_2 = arith.constant 0 : index
    %1 = vector.load %arg1[%c0_1, %c0_2] : memref<3x128xf32, #tpu.memory_space<vmem>>, vector<3x15xf32>
    %c0_3 = arith.constant 0 : index
    %c1 = arith.constant 1 : index
    %2 = vector.load %arg0[%c0_3, %c1] : memref<3x128xf32, #tpu.memory_space<vmem>>, vector<3x15xf32>
    %c0_4 = arith.constant 0 : index
    %c8 = arith.constant 8 : index
    %3 = vector.load %arg0[%c0_4, %c8] : memref<3x128xf32, #tpu.memory_space<vmem>>, vector<3x15xf32>
    %c0_5 = arith.constant 0 : index
    %c8_6 = arith.constant 8 : index
    %4 = vector.load %arg1[%c0_5, %c8_6] : memref<3x128xf32, #tpu.memory_space<vmem>>, vector<3x15xf32>
    %c0_7 = arith.constant 0 : index
    %c9 = arith.constant 9 : index
    %5 = vector.load %arg0[%c0_7, %c9] : memref<3x128xf32, #tpu.memory_space<vmem>>, vector<3x15xf32>
    %c0_8 = arith.constant 0 : index
    %c16 = arith.constant 16 : index
    %6 = vector.load %arg0[%c0_8, %c16] : memref<3x128xf32, #tpu.memory_space<vmem>>, vector<3x15xf32>
    %c0_9 = arith.constant 0 : index
    %c16_10 = arith.constant 16 : index
    %7 = vector.load %arg1[%c0_9, %c16_10] : memref<3x128xf32, #tpu.memory_space<vmem>>, vector<3x15xf32>
    %c0_11 = arith.constant 0 : index
    %c17 = arith.constant 17 : index
    %8 = vector.load %arg0[%c0_11, %c17] : memref<3x128xf32, #tpu.memory_space<vmem>>, vector<3x15xf32>
    %9 = tpu.concatenate %0, %1, %2, %3, %4, %5, %6, %7, %8 in 0 : vector<3x15xf32>, vector<3x15xf32>, vector<3x15xf32>, vector<3x15xf32>, vector<3x15xf32>, vector<3x15xf32>, vector<3x15xf32>, vector<3x15xf32>, vector<3x15xf32> -> vector<27x15xf32>
    %c0_12 = arith.constant 0 : index
    %c0_13 = arith.constant 0 : index
    %10 = vector.load %arg2[%c0_12, %c0_13] : memref<16x27xbf16, #tpu.memory_space<vmem>>, vector<16x27xbf16>
    %11 = arith.truncf %9 : vector<27x15xf32> to vector<27x15xbf16>
    %cst = arith.constant dense<0.000000e+00> : vector<16x15xf32>
    %12 = tpu.matmul %10, %11, %cst {dimension_numbers = #tpu.dot_dimension_numbers<[1], [0], [0], [1], [0, 0, 1, 1], [], []>} : vector<16x27xbf16>, vector<27x15xbf16>, vector<16x15xf32> -> vector<16x15xf32>
    %c0_14 = arith.constant 0 : index
    %c0_15 = arith.constant 0 : index
    %13 = vector.load %arg3[%c0_14, %c0_15] : memref<16x1xf32, #tpu.memory_space<vmem>>, vector<16x1xf32>
    %14 = vector.broadcast %13 : vector<16x1xf32> to vector<16x15xf32>
    %15 = arith.addf %12, %14 : vector<16x15xf32>
    %c0_16 = arith.constant 0 : index
    %16 = memref.load %arg10[%c0_16] : memref<3xf32, #tpu.memory_space<smem>>
    %cst_17 = arith.constant 0.000000e+00 : f32
    %17 = vector.broadcast %cst_17 : f32 to vector<16x15xf32>
    %18 = arith.cmpf ogt, %15, %17 : vector<16x15xf32>
    %19 = vector.broadcast %16 : f32 to vector<16x15xf32>
    %20 = arith.mulf %19, %15 : vector<16x15xf32>
    %21 = arith.select %18, %15, %20 : vector<16x15xi1>, vector<16x15xf32>
    %c0_18 = arith.constant 0 : index
    %c0_19 = arith.constant 0 : index
    %22 = vector.load %arg1[%c0_18, %c0_19] : memref<3x128xf32, #tpu.memory_space<vmem>>, vector<3x15xf32>
    %c0_20 = arith.constant 0 : index
    %c1_21 = arith.constant 1 : index
    %23 = vector.load %arg0[%c0_20, %c1_21] : memref<3x128xf32, #tpu.memory_space<vmem>>, vector<3x15xf32>
    %c0_22 = arith.constant 0 : index
    %c1_23 = arith.constant 1 : index
    %24 = vector.load %arg1[%c0_22, %c1_23] : memref<3x128xf32, #tpu.memory_space<vmem>>, vector<3x15xf32>
    %c0_24 = arith.constant 0 : index
    %c8_25 = arith.constant 8 : index
    %25 = vector.load %arg1[%c0_24, %c8_25] : memref<3x128xf32, #tpu.memory_space<vmem>>, vector<3x15xf32>
    %c0_26 = arith.constant 0 : index
    %c9_27 = arith.constant 9 : index
    %26 = vector.load %arg0[%c0_26, %c9_27] : memref<3x128xf32, #tpu.memory_space<vmem>>, vector<3x15xf32>
    %c0_28 = arith.constant 0 : index
    %c9_29 = arith.constant 9 : index
    %27 = vector.load %arg1[%c0_28, %c9_29] : memref<3x128xf32, #tpu.memory_space<vmem>>, vector<3x15xf32>
    %c0_30 = arith.constant 0 : index
    %c16_31 = arith.constant 16 : index
    %28 = vector.load %arg1[%c0_30, %c16_31] : memref<3x128xf32, #tpu.memory_space<vmem>>, vector<3x15xf32>
    %c0_32 = arith.constant 0 : index
    %c17_33 = arith.constant 17 : index
    %29 = vector.load %arg0[%c0_32, %c17_33] : memref<3x128xf32, #tpu.memory_space<vmem>>, vector<3x15xf32>
    %c0_34 = arith.constant 0 : index
    %c17_35 = arith.constant 17 : index
    %30 = vector.load %arg1[%c0_34, %c17_35] : memref<3x128xf32, #tpu.memory_space<vmem>>, vector<3x15xf32>
    %31 = tpu.concatenate %22, %23, %24, %25, %26, %27, %28, %29, %30 in 0 : vector<3x15xf32>, vector<3x15xf32>, vector<3x15xf32>, vector<3x15xf32>, vector<3x15xf32>, vector<3x15xf32>, vector<3x15xf32>, vector<3x15xf32>, vector<3x15xf32> -> vector<27x15xf32>
    %c0_36 = arith.constant 0 : index
    %c0_37 = arith.constant 0 : index
    %32 = vector.load %arg2[%c0_36, %c0_37] : memref<16x27xbf16, #tpu.memory_space<vmem>>, vector<16x27xbf16>
    %33 = arith.truncf %31 : vector<27x15xf32> to vector<27x15xbf16>
    %cst_38 = arith.constant dense<0.000000e+00> : vector<16x15xf32>
    %34 = tpu.matmul %32, %33, %cst_38 {dimension_numbers = #tpu.dot_dimension_numbers<[1], [0], [0], [1], [0, 0, 1, 1], [], []>} : vector<16x27xbf16>, vector<27x15xbf16>, vector<16x15xf32> -> vector<16x15xf32>
    %c0_39 = arith.constant 0 : index
    %c0_40 = arith.constant 0 : index
    %35 = vector.load %arg3[%c0_39, %c0_40] : memref<16x1xf32, #tpu.memory_space<vmem>>, vector<16x1xf32>
    %36 = vector.broadcast %35 : vector<16x1xf32> to vector<16x15xf32>
    %37 = arith.addf %34, %36 : vector<16x15xf32>
    %c0_41 = arith.constant 0 : index
    %38 = memref.load %arg10[%c0_41] : memref<3xf32, #tpu.memory_space<smem>>
    %cst_42 = arith.constant 0.000000e+00 : f32
    %39 = vector.broadcast %cst_42 : f32 to vector<16x15xf32>
    %40 = arith.cmpf ogt, %37, %39 : vector<16x15xf32>
    %41 = vector.broadcast %38 : f32 to vector<16x15xf32>
    %42 = arith.mulf %41, %37 : vector<16x15xf32>
    %43 = arith.select %40, %37, %42 : vector<16x15xi1>, vector<16x15xf32>
    %44 = vector.extract_strided_slice %21 {offsets = [0, 0], sizes = [16, 7], strides = [1, 1]} : vector<16x15xf32> to vector<16x7xf32>
    %45 = vector.extract_strided_slice %21 {offsets = [0, 8], sizes = [16, 7], strides = [1, 1]} : vector<16x15xf32> to vector<16x7xf32>
    %46 = vector.extract_strided_slice %43 {offsets = [0, 0], sizes = [16, 7], strides = [1, 1]} : vector<16x15xf32> to vector<16x7xf32>
    %47 = vector.extract_strided_slice %43 {offsets = [0, 8], sizes = [16, 7], strides = [1, 1]} : vector<16x15xf32> to vector<16x7xf32>
    %48 = arith.maximumf %44, %45 : vector<16x7xf32>
    %49 = arith.maximumf %48, %46 : vector<16x7xf32>
    %50 = arith.maximumf %49, %47 : vector<16x7xf32>
    %51 = arith.truncf %50 : vector<16x7xf32> to vector<16x7xbf16>
    %c0_43 = arith.constant 0 : index
    %c0_44 = arith.constant 0 : index
    %52 = vector.load %arg12[%c0_43, %c0_44] : memref<16x49xbf16, #tpu.memory_space<vmem>>, vector<16x7xbf16>
    tpu.vector_store %arg12[%c0_43, %c0_44], %51 {strides = array<i32>} : memref<16x49xbf16, #tpu.memory_space<vmem>>, vector<16x7xbf16>,
    %c0_45 = arith.constant 0 : index
    %c16_46 = arith.constant 16 : index
    %53 = vector.load %arg0[%c0_45, %c16_46] : memref<3x128xf32, #tpu.memory_space<vmem>>, vector<3x15xf32>
    %c0_47 = arith.constant 0 : index
    %c16_48 = arith.constant 16 : index
    %54 = vector.load %arg1[%c0_47, %c16_48] : memref<3x128xf32, #tpu.memory_space<vmem>>, vector<3x15xf32>
    %c0_49 = arith.constant 0 : index
    %c17_50 = arith.constant 17 : index
    %55 = vector.load %arg0[%c0_49, %c17_50] : memref<3x128xf32, #tpu.memory_space<vmem>>, vector<3x15xf32>
    %c0_51 = arith.constant 0 : index
    %c24 = arith.constant 24 : index
    %56 = vector.load %arg0[%c0_51, %c24] : memref<3x128xf32, #tpu.memory_space<vmem>>, vector<3x15xf32>
    %c0_52 = arith.constant 0 : index
    %c24_53 = arith.constant 24 : index
    %57 = vector.load %arg1[%c0_52, %c24_53] : memref<3x128xf32, #tpu.memory_space<vmem>>, vector<3x15xf32>
    %c0_54 = arith.constant 0 : index
    %c25 = arith.constant 25 : index
    %58 = vector.load %arg0[%c0_54, %c25] : memref<3x128xf32, #tpu.memory_space<vmem>>, vector<3x15xf32>
    %c0_55 = arith.constant 0 : index
    %c32 = arith.constant 32 : index
    %59 = vector.load %arg0[%c0_55, %c32] : memref<3x128xf32, #tpu.memory_space<vmem>>, vector<3x15xf32>
    %c0_56 = arith.constant 0 : index
    %c32_57 = arith.constant 32 : index
    %60 = vector.load %arg1[%c0_56, %c32_57] : memref<3x128xf32, #tpu.memory_space<vmem>>, vector<3x15xf32>
    %c0_58 = arith.constant 0 : index
    %c33 = arith.constant 33 : index
    %61 = vector.load %arg0[%c0_58, %c33] : memref<3x128xf32, #tpu.memory_space<vmem>>, vector<3x15xf32>
    %62 = tpu.concatenate %53, %54, %55, %56, %57, %58, %59, %60, %61 in 0 : vector<3x15xf32>, vector<3x15xf32>, vector<3x15xf32>, vector<3x15xf32>, vector<3x15xf32>, vector<3x15xf32>, vector<3x15xf32>, vector<3x15xf32>, vector<3x15xf32> -> vector<27x15xf32>
    %c0_59 = arith.constant 0 : index
    %c0_60 = arith.constant 0 : index
    %63 = vector.load %arg2[%c0_59, %c0_60] : memref<16x27xbf16, #tpu.memory_space<vmem>>, vector<16x27xbf16>
    %64 = arith.truncf %62 : vector<27x15xf32> to vector<27x15xbf16>
    %cst_61 = arith.constant dense<0.000000e+00> : vector<16x15xf32>
    %65 = tpu.matmul %63, %64, %cst_61 {dimension_numbers = #tpu.dot_dimension_numbers<[1], [0], [0], [1], [0, 0, 1, 1], [], []>} : vector<16x27xbf16>, vector<27x15xbf16>, vector<16x15xf32> -> vector<16x15xf32>
    %c0_62 = arith.constant 0 : index
    %c0_63 = arith.constant 0 : index
    %66 = vector.load %arg3[%c0_62, %c0_63] : memref<16x1xf32, #tpu.memory_space<vmem>>, vector<16x1xf32>
    %67 = vector.broadcast %66 : vector<16x1xf32> to vector<16x15xf32>
    %68 = arith.addf %65, %67 : vector<16x15xf32>
    %c0_64 = arith.constant 0 : index
    %69 = memref.load %arg10[%c0_64] : memref<3xf32, #tpu.memory_space<smem>>
    %cst_65 = arith.constant 0.000000e+00 : f32
    %70 = vector.broadcast %cst_65 : f32 to vector<16x15xf32>
    %71 = arith.cmpf ogt, %68, %70 : vector<16x15xf32>
    %72 = vector.broadcast %69 : f32 to vector<16x15xf32>
    %73 = arith.mulf %72, %68 : vector<16x15xf32>
    %74 = arith.select %71, %68, %73 : vector<16x15xi1>, vector<16x15xf32>
    %c0_66 = arith.constant 0 : index
    %c16_67 = arith.constant 16 : index
    %75 = vector.load %arg1[%c0_66, %c16_67] : memref<3x128xf32, #tpu.memory_space<vmem>>, vector<3x15xf32>
    %c0_68 = arith.constant 0 : index
    %c17_69 = arith.constant 17 : index
    %76 = vector.load %arg0[%c0_68, %c17_69] : memref<3x128xf32, #tpu.memory_space<vmem>>, vector<3x15xf32>
    %c0_70 = arith.constant 0 : index
    %c17_71 = arith.constant 17 : index
    %77 = vector.load %arg1[%c0_70, %c17_71] : memref<3x128xf32, #tpu.memory_space<vmem>>, vector<3x15xf32>
    %c0_72 = arith.constant 0 : index
    %c24_73 = arith.constant 24 : index
    %78 = vector.load %arg1[%c0_72, %c24_73] : memref<3x128xf32, #tpu.memory_space<vmem>>, vector<3x15xf32>
    %c0_74 = arith.constant 0 : index
    %c25_75 = arith.constant 25 : index
    %79 = vector.load %arg0[%c0_74, %c25_75] : memref<3x128xf32, #tpu.memory_space<vmem>>, vector<3x15xf32>
    %c0_76 = arith.constant 0 : index
    %c25_77 = arith.constant 25 : index
    %80 = vector.load %arg1[%c0_76, %c25_77] : memref<3x128xf32, #tpu.memory_space<vmem>>, vector<3x15xf32>
    %c0_78 = arith.constant 0 : index
    %c32_79 = arith.constant 32 : index
    %81 = vector.load %arg1[%c0_78, %c32_79] : memref<3x128xf32, #tpu.memory_space<vmem>>, vector<3x15xf32>
    %c0_80 = arith.constant 0 : index
    %c33_81 = arith.constant 33 : index
    %82 = vector.load %arg0[%c0_80, %c33_81] : memref<3x128xf32, #tpu.memory_space<vmem>>, vector<3x15xf32>
    %c0_82 = arith.constant 0 : index
    %c33_83 = arith.constant 33 : index
    %83 = vector.load %arg1[%c0_82, %c33_83] : memref<3x128xf32, #tpu.memory_space<vmem>>, vector<3x15xf32>
    %84 = tpu.concatenate %75, %76, %77, %78, %79, %80, %81, %82, %83 in 0 : vector<3x15xf32>, vector<3x15xf32>, vector<3x15xf32>, vector<3x15xf32>, vector<3x15xf32>, vector<3x15xf32>, vector<3x15xf32>, vector<3x15xf32>, vector<3x15xf32> -> vector<27x15xf32>
    %c0_84 = arith.constant 0 : index
    %c0_85 = arith.constant 0 : index
    %85 = vector.load %arg2[%c0_84, %c0_85] : memref<16x27xbf16, #tpu.memory_space<vmem>>, vector<16x27xbf16>
    %86 = arith.truncf %84 : vector<27x15xf32> to vector<27x15xbf16>
    %cst_86 = arith.constant dense<0.000000e+00> : vector<16x15xf32>
    %87 = tpu.matmul %85, %86, %cst_86 {dimension_numbers = #tpu.dot_dimension_numbers<[1], [0], [0], [1], [0, 0, 1, 1], [], []>} : vector<16x27xbf16>, vector<27x15xbf16>, vector<16x15xf32> -> vector<16x15xf32>
    %c0_87 = arith.constant 0 : index
    %c0_88 = arith.constant 0 : index
    %88 = vector.load %arg3[%c0_87, %c0_88] : memref<16x1xf32, #tpu.memory_space<vmem>>, vector<16x1xf32>
    %89 = vector.broadcast %88 : vector<16x1xf32> to vector<16x15xf32>
    %90 = arith.addf %87, %89 : vector<16x15xf32>
    %c0_89 = arith.constant 0 : index
    %91 = memref.load %arg10[%c0_89] : memref<3xf32, #tpu.memory_space<smem>>
    %cst_90 = arith.constant 0.000000e+00 : f32
    %92 = vector.broadcast %cst_90 : f32 to vector<16x15xf32>
    %93 = arith.cmpf ogt, %90, %92 : vector<16x15xf32>
    %94 = vector.broadcast %91 : f32 to vector<16x15xf32>
    %95 = arith.mulf %94, %90 : vector<16x15xf32>
    %96 = arith.select %93, %90, %95 : vector<16x15xi1>, vector<16x15xf32>
    %97 = vector.extract_strided_slice %74 {offsets = [0, 0], sizes = [16, 7], strides = [1, 1]} : vector<16x15xf32> to vector<16x7xf32>
    %98 = vector.extract_strided_slice %74 {offsets = [0, 8], sizes = [16, 7], strides = [1, 1]} : vector<16x15xf32> to vector<16x7xf32>
    %99 = vector.extract_strided_slice %96 {offsets = [0, 0], sizes = [16, 7], strides = [1, 1]} : vector<16x15xf32> to vector<16x7xf32>
    %100 = vector.extract_strided_slice %96 {offsets = [0, 8], sizes = [16, 7], strides = [1, 1]} : vector<16x15xf32> to vector<16x7xf32>
    %101 = arith.maximumf %97, %98 : vector<16x7xf32>
    %102 = arith.maximumf %101, %99 : vector<16x7xf32>
    %103 = arith.maximumf %102, %100 : vector<16x7xf32>
    %104 = arith.truncf %103 : vector<16x7xf32> to vector<16x7xbf16>
    %c0_91 = arith.constant 0 : index
    %c7 = arith.constant 7 : index
    %105 = vector.load %arg12[%c0_91, %c7] : memref<16x49xbf16, #tpu.memory_space<vmem>>, vector<16x7xbf16>
    tpu.vector_store %arg12[%c0_91, %c7], %104 {strides = array<i32>} : memref<16x49xbf16, #tpu.memory_space<vmem>>, vector<16x7xbf16>,
    %c0_92 = arith.constant 0 : index
    %c32_93 = arith.constant 32 : index
    %106 = vector.load %arg0[%c0_92, %c32_93] : memref<3x128xf32, #tpu.memory_space<vmem>>, vector<3x15xf32>
    %c0_94 = arith.constant 0 : index
    %c32_95 = arith.constant 32 : index
    %107 = vector.load %arg1[%c0_94, %c32_95] : memref<3x128xf32, #tpu.memory_space<vmem>>, vector<3x15xf32>
    %c0_96 = arith.constant 0 : index
    %c33_97 = arith.constant 33 : index
    %108 = vector.load %arg0[%c0_96, %c33_97] : memref<3x128xf32, #tpu.memory_space<vmem>>, vector<3x15xf32>
    %c0_98 = arith.constant 0 : index
    %c40 = arith.constant 40 : index
    %109 = vector.load %arg0[%c0_98, %c40] : memref<3x128xf32, #tpu.memory_space<vmem>>, vector<3x15xf32>
    %c0_99 = arith.constant 0 : index
    %c40_100 = arith.constant 40 : index
    %110 = vector.load %arg1[%c0_99, %c40_100] : memref<3x128xf32, #tpu.memory_space<vmem>>, vector<3x15xf32>
    %c0_101 = arith.constant 0 : index
    %c41 = arith.constant 41 : index
    %111 = vector.load %arg0[%c0_101, %c41] : memref<3x128xf32, #tpu.memory_space<vmem>>, vector<3x15xf32>
    %c0_102 = arith.constant 0 : index
    %c48 = arith.constant 48 : index
    %112 = vector.load %arg0[%c0_102, %c48] : memref<3x128xf32, #tpu.memory_space<vmem>>, vector<3x15xf32>
    %c0_103 = arith.constant 0 : index
    %c48_104 = arith.constant 48 : index
    %113 = vector.load %arg1[%c0_103, %c48_104] : memref<3x128xf32, #tpu.memory_space<vmem>>, vector<3x15xf32>
    %c0_105 = arith.constant 0 : index
    %c49 = arith.constant 49 : index
    %114 = vector.load %arg0[%c0_105, %c49] : memref<3x128xf32, #tpu.memory_space<vmem>>, vector<3x15xf32>
    %115 = tpu.concatenate %106, %107, %108, %109, %110, %111, %112, %113, %114 in 0 : vector<3x15xf32>, vector<3x15xf32>, vector<3x15xf32>, vector<3x15xf32>, vector<3x15xf32>, vector<3x15xf32>, vector<3x15xf32>, vector<3x15xf32>, vector<3x15xf32> -> vector<27x15xf32>
    %c0_106 = arith.constant 0 : index
    %c0_107 = arith.constant 0 : index
    %116 = vector.load %arg2[%c0_106, %c0_107] : memref<16x27xbf16, #tpu.memory_space<vmem>>, vector<16x27xbf16>
    %117 = arith.truncf %115 : vector<27x15xf32> to vector<27x15xbf16>
    %cst_108 = arith.constant dense<0.000000e+00> : vector<16x15xf32>
    %118 = tpu.matmul %116, %117, %cst_108 {dimension_numbers = #tpu.dot_dimension_numbers<[1], [0], [0], [1], [0, 0, 1, 1], [], []>} : vector<16x27xbf16>, vector<27x15xbf16>, vector<16x15xf32> -> vector<16x15xf32>
    %c0_109 = arith.constant 0 : index
    %c0_110 = arith.constant 0 : index
    %119 = vector.load %arg3[%c0_109, %c0_110] : memref<16x1xf32, #tpu.memory_space<vmem>>, vector<16x1xf32>
    %120 = vector.broadcast %119 : vector<16x1xf32> to vector<16x15xf32>
    %121 = arith.addf %118, %120 : vector<16x15xf32>
    %c0_111 = arith.constant 0 : index
    %122 = memref.load %arg10[%c0_111] : memref<3xf32, #tpu.memory_space<smem>>
    %cst_112 = arith.constant 0.000000e+00 : f32
    %123 = vector.broadcast %cst_112 : f32 to vector<16x15xf32>
    %124 = arith.cmpf ogt, %121, %123 : vector<16x15xf32>
    %125 = vector.broadcast %122 : f32 to vector<16x15xf32>
    %126 = arith.mulf %125, %121 : vector<16x15xf32>
    %127 = arith.select %124, %121, %126 : vector<16x15xi1>, vector<16x15xf32>
    %c0_113 = arith.constant 0 : index
    %c32_114 = arith.constant 32 : index
    %128 = vector.load %arg1[%c0_113, %c32_114] : memref<3x128xf32, #tpu.memory_space<vmem>>, vector<3x15xf32>
    %c0_115 = arith.constant 0 : index
    %c33_116 = arith.constant 33 : index
    %129 = vector.load %arg0[%c0_115, %c33_116] : memref<3x128xf32, #tpu.memory_space<vmem>>, vector<3x15xf32>
    %c0_117 = arith.constant 0 : index
    %c33_118 = arith.constant 33 : index
    %130 = vector.load %arg1[%c0_117, %c33_118] : memref<3x128xf32, #tpu.memory_space<vmem>>, vector<3x15xf32>
    %c0_119 = arith.constant 0 : index
    %c40_120 = arith.constant 40 : index
    %131 = vector.load %arg1[%c0_119, %c40_120] : memref<3x128xf32, #tpu.memory_space<vmem>>, vector<3x15xf32>
    %c0_121 = arith.constant 0 : index
    %c41_122 = arith.constant 41 : index
    %132 = vector.load %arg0[%c0_121, %c41_122] : memref<3x128xf32, #tpu.memory_space<vmem>>, vector<3x15xf32>
    %c0_123 = arith.constant 0 : index
    %c41_124 = arith.constant 41 : index
    %133 = vector.load %arg1[%c0_123, %c41_124] : memref<3x128xf32, #tpu.memory_space<vmem>>, vector<3x15xf32>
    %c0_125 = arith.constant 0 : index
    %c48_126 = arith.constant 48 : index
    %134 = vector.load %arg1[%c0_125, %c48_126] : memref<3x128xf32, #tpu.memory_space<vmem>>, vector<3x15xf32>
    %c0_127 = arith.constant 0 : index
    %c49_128 = arith.constant 49 : index
    %135 = vector.load %arg0[%c0_127, %c49_128] : memref<3x128xf32, #tpu.memory_space<vmem>>, vector<3x15xf32>
    %c0_129 = arith.constant 0 : index
    %c49_130 = arith.constant 49 : index
    %136 = vector.load %arg1[%c0_129, %c49_130] : memref<3x128xf32, #tpu.memory_space<vmem>>, vector<3x15xf32>
    %137 = tpu.concatenate %128, %129, %130, %131, %132, %133, %134, %135, %136 in 0 : vector<3x15xf32>, vector<3x15xf32>, vector<3x15xf32>, vector<3x15xf32>, vector<3x15xf32>, vector<3x15xf32>, vector<3x15xf32>, vector<3x15xf32>, vector<3x15xf32> -> vector<27x15xf32>
    %c0_131 = arith.constant 0 : index
    %c0_132 = arith.constant 0 : index
    %138 = vector.load %arg2[%c0_131, %c0_132] : memref<16x27xbf16, #tpu.memory_space<vmem>>, vector<16x27xbf16>
    %139 = arith.truncf %137 : vector<27x15xf32> to vector<27x15xbf16>
    %cst_133 = arith.constant dense<0.000000e+00> : vector<16x15xf32>
    %140 = tpu.matmul %138, %139, %cst_133 {dimension_numbers = #tpu.dot_dimension_numbers<[1], [0], [0], [1], [0, 0, 1, 1], [], []>} : vector<16x27xbf16>, vector<27x15xbf16>, vector<16x15xf32> -> vector<16x15xf32>
    %c0_134 = arith.constant 0 : index
    %c0_135 = arith.constant 0 : index
    %141 = vector.load %arg3[%c0_134, %c0_135] : memref<16x1xf32, #tpu.memory_space<vmem>>, vector<16x1xf32>
    %142 = vector.broadcast %141 : vector<16x1xf32> to vector<16x15xf32>
    %143 = arith.addf %140, %142 : vector<16x15xf32>
    %c0_136 = arith.constant 0 : index
    %144 = memref.load %arg10[%c0_136] : memref<3xf32, #tpu.memory_space<smem>>
    %cst_137 = arith.constant 0.000000e+00 : f32
    %145 = vector.broadcast %cst_137 : f32 to vector<16x15xf32>
    %146 = arith.cmpf ogt, %143, %145 : vector<16x15xf32>
    %147 = vector.broadcast %144 : f32 to vector<16x15xf32>
    %148 = arith.mulf %147, %143 : vector<16x15xf32>
    %149 = arith.select %146, %143, %148 : vector<16x15xi1>, vector<16x15xf32>
    %150 = vector.extract_strided_slice %127 {offsets = [0, 0], sizes = [16, 7], strides = [1, 1]} : vector<16x15xf32> to vector<16x7xf32>
    %151 = vector.extract_strided_slice %127 {offsets = [0, 8], sizes = [16, 7], strides = [1, 1]} : vector<16x15xf32> to vector<16x7xf32>
    %152 = vector.extract_strided_slice %149 {offsets = [0, 0], sizes = [16, 7], strides = [1, 1]} : vector<16x15xf32> to vector<16x7xf32>
    %153 = vector.extract_strided_slice %149 {offsets = [0, 8], sizes = [16, 7], strides = [1, 1]} : vector<16x15xf32> to vector<16x7xf32>
    %154 = arith.maximumf %150, %151 : vector<16x7xf32>
    %155 = arith.maximumf %154, %152 : vector<16x7xf32>
    %156 = arith.maximumf %155, %153 : vector<16x7xf32>
    %157 = arith.truncf %156 : vector<16x7xf32> to vector<16x7xbf16>
    %c0_138 = arith.constant 0 : index
    %c14 = arith.constant 14 : index
    %158 = vector.load %arg12[%c0_138, %c14] : memref<16x49xbf16, #tpu.memory_space<vmem>>, vector<16x7xbf16>
    tpu.vector_store %arg12[%c0_138, %c14], %157 {strides = array<i32>} : memref<16x49xbf16, #tpu.memory_space<vmem>>, vector<16x7xbf16>,
    %c0_139 = arith.constant 0 : index
    %c48_140 = arith.constant 48 : index
    %159 = vector.load %arg0[%c0_139, %c48_140] : memref<3x128xf32, #tpu.memory_space<vmem>>, vector<3x15xf32>
    %c0_141 = arith.constant 0 : index
    %c48_142 = arith.constant 48 : index
    %160 = vector.load %arg1[%c0_141, %c48_142] : memref<3x128xf32, #tpu.memory_space<vmem>>, vector<3x15xf32>
    %c0_143 = arith.constant 0 : index
    %c49_144 = arith.constant 49 : index
    %161 = vector.load %arg0[%c0_143, %c49_144] : memref<3x128xf32, #tpu.memory_space<vmem>>, vector<3x15xf32>
    %c0_145 = arith.constant 0 : index
    %c56 = arith.constant 56 : index
    %162 = vector.load %arg0[%c0_145, %c56] : memref<3x128xf32, #tpu.memory_space<vmem>>, vector<3x15xf32>
    %c0_146 = arith.constant 0 : index
    %c56_147 = arith.constant 56 : index
    %163 = vector.load %arg1[%c0_146, %c56_147] : memref<3x128xf32, #tpu.memory_space<vmem>>, vector<3x15xf32>
    %c0_148 = arith.constant 0 : index
    %c57 = arith.constant 57 : index
    %164 = vector.load %arg0[%c0_148, %c57] : memref<3x128xf32, #tpu.memory_space<vmem>>, vector<3x15xf32>
    %c0_149 = arith.constant 0 : index
    %c64 = arith.constant 64 : index
    %165 = vector.load %arg0[%c0_149, %c64] : memref<3x128xf32, #tpu.memory_space<vmem>>, vector<3x15xf32>
    %c0_150 = arith.constant 0 : index
    %c64_151 = arith.constant 64 : index
    %166 = vector.load %arg1[%c0_150, %c64_151] : memref<3x128xf32, #tpu.memory_space<vmem>>, vector<3x15xf32>
    %c0_152 = arith.constant 0 : index
    %c65 = arith.constant 65 : index
    %167 = vector.load %arg0[%c0_152, %c65] : memref<3x128xf32, #tpu.memory_space<vmem>>, vector<3x15xf32>
    %168 = tpu.concatenate %159, %160, %161, %162, %163, %164, %165, %166, %167 in 0 : vector<3x15xf32>, vector<3x15xf32>, vector<3x15xf32>, vector<3x15xf32>, vector<3x15xf32>, vector<3x15xf32>, vector<3x15xf32>, vector<3x15xf32>, vector<3x15xf32> -> vector<27x15xf32>
    %c0_153 = arith.constant 0 : index
    %c0_154 = arith.constant 0 : index
    %169 = vector.load %arg2[%c0_153, %c0_154] : memref<16x27xbf16, #tpu.memory_space<vmem>>, vector<16x27xbf16>
    %170 = arith.truncf %168 : vector<27x15xf32> to vector<27x15xbf16>
    %cst_155 = arith.constant dense<0.000000e+00> : vector<16x15xf32>
    %171 = tpu.matmul %169, %170, %cst_155 {dimension_numbers = #tpu.dot_dimension_numbers<[1], [0], [0], [1], [0, 0, 1, 1], [], []>} : vector<16x27xbf16>, vector<27x15xbf16>, vector<16x15xf32> -> vector<16x15xf32>
    %c0_156 = arith.constant 0 : index
    %c0_157 = arith.constant 0 : index
    %172 = vector.load %arg3[%c0_156, %c0_157] : memref<16x1xf32, #tpu.memory_space<vmem>>, vector<16x1xf32>
    %173 = vector.broadcast %172 : vector<16x1xf32> to vector<16x15xf32>
    %174 = arith.addf %171, %173 : vector<16x15xf32>
    %c0_158 = arith.constant 0 : index
    %175 = memref.load %arg10[%c0_158] : memref<3xf32, #tpu.memory_space<smem>>
    %cst_159 = arith.constant 0.000000e+00 : f32
    %176 = vector.broadcast %cst_159 : f32 to vector<16x15xf32>
    %177 = arith.cmpf ogt, %174, %176 : vector<16x15xf32>
    %178 = vector.broadcast %175 : f32 to vector<16x15xf32>
    %179 = arith.mulf %178, %174 : vector<16x15xf32>
    %180 = arith.select %177, %174, %179 : vector<16x15xi1>, vector<16x15xf32>
    %c0_160 = arith.constant 0 : index
    %c48_161 = arith.constant 48 : index
    %181 = vector.load %arg1[%c0_160, %c48_161] : memref<3x128xf32, #tpu.memory_space<vmem>>, vector<3x15xf32>
    %c0_162 = arith.constant 0 : index
    %c49_163 = arith.constant 49 : index
    %182 = vector.load %arg0[%c0_162, %c49_163] : memref<3x128xf32, #tpu.memory_space<vmem>>, vector<3x15xf32>
    %c0_164 = arith.constant 0 : index
    %c49_165 = arith.constant 49 : index
    %183 = vector.load %arg1[%c0_164, %c49_165] : memref<3x128xf32, #tpu.memory_space<vmem>>, vector<3x15xf32>
    %c0_166 = arith.constant 0 : index
    %c56_167 = arith.constant 56 : index
    %184 = vector.load %arg1[%c0_166, %c56_167] : memref<3x128xf32, #tpu.memory_space<vmem>>, vector<3x15xf32>
    %c0_168 = arith.constant 0 : index
    %c57_169 = arith.constant 57 : index
    %185 = vector.load %arg0[%c0_168, %c57_169] : memref<3x128xf32, #tpu.memory_space<vmem>>, vector<3x15xf32>
    %c0_170 = arith.constant 0 : index
    %c57_171 = arith.constant 57 : index
    %186 = vector.load %arg1[%c0_170, %c57_171] : memref<3x128xf32, #tpu.memory_space<vmem>>, vector<3x15xf32>
    %c0_172 = arith.constant 0 : index
    %c64_173 = arith.constant 64 : index
    %187 = vector.load %arg1[%c0_172, %c64_173] : memref<3x128xf32, #tpu.memory_space<vmem>>, vector<3x15xf32>
    %c0_174 = arith.constant 0 : index
    %c65_175 = arith.constant 65 : index
    %188 = vector.load %arg0[%c0_174, %c65_175] : memref<3x128xf32, #tpu.memory_space<vmem>>, vector<3x15xf32>
    %c0_176 = arith.constant 0 : index
    %c65_177 = arith.constant 65 : index
    %189 = vector.load %arg1[%c0_176, %c65_177] : memref<3x128xf32, #tpu.memory_space<vmem>>, vector<3x15xf32>
    %190 = tpu.concatenate %181, %182, %183, %184, %185, %186, %187, %188, %189 in 0 : vector<3x15xf32>, vector<3x15xf32>, vector<3x15xf32>, vector<3x15xf32>, vector<3x15xf32>, vector<3x15xf32>, vector<3x15xf32>, vector<3x15xf32>, vector<3x15xf32> -> vector<27x15xf32>
    %c0_178 = arith.constant 0 : index
    %c0_179 = arith.constant 0 : index
    %191 = vector.load %arg2[%c0_178, %c0_179] : memref<16x27xbf16, #tpu.memory_space<vmem>>, vector<16x27xbf16>
    %192 = arith.truncf %190 : vector<27x15xf32> to vector<27x15xbf16>
    %cst_180 = arith.constant dense<0.000000e+00> : vector<16x15xf32>
    %193 = tpu.matmul %191, %192, %cst_180 {dimension_numbers = #tpu.dot_dimension_numbers<[1], [0], [0], [1], [0, 0, 1, 1], [], []>} : vector<16x27xbf16>, vector<27x15xbf16>, vector<16x15xf32> -> vector<16x15xf32>
    %c0_181 = arith.constant 0 : index
    %c0_182 = arith.constant 0 : index
    %194 = vector.load %arg3[%c0_181, %c0_182] : memref<16x1xf32, #tpu.memory_space<vmem>>, vector<16x1xf32>
    %195 = vector.broadcast %194 : vector<16x1xf32> to vector<16x15xf32>
    %196 = arith.addf %193, %195 : vector<16x15xf32>
    %c0_183 = arith.constant 0 : index
    %197 = memref.load %arg10[%c0_183] : memref<3xf32, #tpu.memory_space<smem>>
    %cst_184 = arith.constant 0.000000e+00 : f32
    %198 = vector.broadcast %cst_184 : f32 to vector<16x15xf32>
    %199 = arith.cmpf ogt, %196, %198 : vector<16x15xf32>
    %200 = vector.broadcast %197 : f32 to vector<16x15xf32>
    %201 = arith.mulf %200, %196 : vector<16x15xf32>
    %202 = arith.select %199, %196, %201 : vector<16x15xi1>, vector<16x15xf32>
    %203 = vector.extract_strided_slice %180 {offsets = [0, 0], sizes = [16, 7], strides = [1, 1]} : vector<16x15xf32> to vector<16x7xf32>
    %204 = vector.extract_strided_slice %180 {offsets = [0, 8], sizes = [16, 7], strides = [1, 1]} : vector<16x15xf32> to vector<16x7xf32>
    %205 = vector.extract_strided_slice %202 {offsets = [0, 0], sizes = [16, 7], strides = [1, 1]} : vector<16x15xf32> to vector<16x7xf32>
    %206 = vector.extract_strided_slice %202 {offsets = [0, 8], sizes = [16, 7], strides = [1, 1]} : vector<16x15xf32> to vector<16x7xf32>
    %207 = arith.maximumf %203, %204 : vector<16x7xf32>
    %208 = arith.maximumf %207, %205 : vector<16x7xf32>
    %209 = arith.maximumf %208, %206 : vector<16x7xf32>
    %210 = arith.truncf %209 : vector<16x7xf32> to vector<16x7xbf16>
    %c0_185 = arith.constant 0 : index
    %c21 = arith.constant 21 : index
    %211 = vector.load %arg12[%c0_185, %c21] : memref<16x49xbf16, #tpu.memory_space<vmem>>, vector<16x7xbf16>
    tpu.vector_store %arg12[%c0_185, %c21], %210 {strides = array<i32>} : memref<16x49xbf16, #tpu.memory_space<vmem>>, vector<16x7xbf16>,
    %c0_186 = arith.constant 0 : index
    %c64_187 = arith.constant 64 : index
    %212 = vector.load %arg0[%c0_186, %c64_187] : memref<3x128xf32, #tpu.memory_space<vmem>>, vector<3x15xf32>
    %c0_188 = arith.constant 0 : index
    %c64_189 = arith.constant 64 : index
    %213 = vector.load %arg1[%c0_188, %c64_189] : memref<3x128xf32, #tpu.memory_space<vmem>>, vector<3x15xf32>
    %c0_190 = arith.constant 0 : index
    %c65_191 = arith.constant 65 : index
    %214 = vector.load %arg0[%c0_190, %c65_191] : memref<3x128xf32, #tpu.memory_space<vmem>>, vector<3x15xf32>
    %c0_192 = arith.constant 0 : index
    %c72 = arith.constant 72 : index
    %215 = vector.load %arg0[%c0_192, %c72] : memref<3x128xf32, #tpu.memory_space<vmem>>, vector<3x15xf32>
    %c0_193 = arith.constant 0 : index
    %c72_194 = arith.constant 72 : index
    %216 = vector.load %arg1[%c0_193, %c72_194] : memref<3x128xf32, #tpu.memory_space<vmem>>, vector<3x15xf32>
    %c0_195 = arith.constant 0 : index
    %c73 = arith.constant 73 : index
    %217 = vector.load %arg0[%c0_195, %c73] : memref<3x128xf32, #tpu.memory_space<vmem>>, vector<3x15xf32>
    %c0_196 = arith.constant 0 : index
    %c80 = arith.constant 80 : index
    %218 = vector.load %arg0[%c0_196, %c80] : memref<3x128xf32, #tpu.memory_space<vmem>>, vector<3x15xf32>
    %c0_197 = arith.constant 0 : index
    %c80_198 = arith.constant 80 : index
    %219 = vector.load %arg1[%c0_197, %c80_198] : memref<3x128xf32, #tpu.memory_space<vmem>>, vector<3x15xf32>
    %c0_199 = arith.constant 0 : index
    %c81 = arith.constant 81 : index
    %220 = vector.load %arg0[%c0_199, %c81] : memref<3x128xf32, #tpu.memory_space<vmem>>, vector<3x15xf32>
    %221 = tpu.concatenate %212, %213, %214, %215, %216, %217, %218, %219, %220 in 0 : vector<3x15xf32>, vector<3x15xf32>, vector<3x15xf32>, vector<3x15xf32>, vector<3x15xf32>, vector<3x15xf32>, vector<3x15xf32>, vector<3x15xf32>, vector<3x15xf32> -> vector<27x15xf32>
    %c0_200 = arith.constant 0 : index
    %c0_201 = arith.constant 0 : index
    %222 = vector.load %arg2[%c0_200, %c0_201] : memref<16x27xbf16, #tpu.memory_space<vmem>>, vector<16x27xbf16>
    %223 = arith.truncf %221 : vector<27x15xf32> to vector<27x15xbf16>
    %cst_202 = arith.constant dense<0.000000e+00> : vector<16x15xf32>
    %224 = tpu.matmul %222, %223, %cst_202 {dimension_numbers = #tpu.dot_dimension_numbers<[1], [0], [0], [1], [0, 0, 1, 1], [], []>} : vector<16x27xbf16>, vector<27x15xbf16>, vector<16x15xf32> -> vector<16x15xf32>
    %c0_203 = arith.constant 0 : index
    %c0_204 = arith.constant 0 : index
    %225 = vector.load %arg3[%c0_203, %c0_204] : memref<16x1xf32, #tpu.memory_space<vmem>>, vector<16x1xf32>
    %226 = vector.broadcast %225 : vector<16x1xf32> to vector<16x15xf32>
    %227 = arith.addf %224, %226 : vector<16x15xf32>
    %c0_205 = arith.constant 0 : index
    %228 = memref.load %arg10[%c0_205] : memref<3xf32, #tpu.memory_space<smem>>
    %cst_206 = arith.constant 0.000000e+00 : f32
    %229 = vector.broadcast %cst_206 : f32 to vector<16x15xf32>
    %230 = arith.cmpf ogt, %227, %229 : vector<16x15xf32>
    %231 = vector.broadcast %228 : f32 to vector<16x15xf32>
    %232 = arith.mulf %231, %227 : vector<16x15xf32>
    %233 = arith.select %230, %227, %232 : vector<16x15xi1>, vector<16x15xf32>
    %c0_207 = arith.constant 0 : index
    %c64_208 = arith.constant 64 : index
    %234 = vector.load %arg1[%c0_207, %c64_208] : memref<3x128xf32, #tpu.memory_space<vmem>>, vector<3x15xf32>
    %c0_209 = arith.constant 0 : index
    %c65_210 = arith.constant 65 : index
    %235 = vector.load %arg0[%c0_209, %c65_210] : memref<3x128xf32, #tpu.memory_space<vmem>>, vector<3x15xf32>
    %c0_211 = arith.constant 0 : index
    %c65_212 = arith.constant 65 : index
    %236 = vector.load %arg1[%c0_211, %c65_212] : memref<3x128xf32, #tpu.memory_space<vmem>>, vector<3x15xf32>
    %c0_213 = arith.constant 0 : index
    %c72_214 = arith.constant 72 : index
    %237 = vector.load %arg1[%c0_213, %c72_214] : memref<3x128xf32, #tpu.memory_space<vmem>>, vector<3x15xf32>
    %c0_215 = arith.constant 0 : index
    %c73_216 = arith.constant 73 : index
    %238 = vector.load %arg0[%c0_215, %c73_216] : memref<3x128xf32, #tpu.memory_space<vmem>>, vector<3x15xf32>
    %c0_217 = arith.constant 0 : index
    %c73_218 = arith.constant 73 : index
    %239 = vector.load %arg1[%c0_217, %c73_218] : memref<3x128xf32, #tpu.memory_space<vmem>>, vector<3x15xf32>
    %c0_219 = arith.constant 0 : index
    %c80_220 = arith.constant 80 : index
    %240 = vector.load %arg1[%c0_219, %c80_220] : memref<3x128xf32, #tpu.memory_space<vmem>>, vector<3x15xf32>
    %c0_221 = arith.constant 0 : index
    %c81_222 = arith.constant 81 : index
    %241 = vector.load %arg0[%c0_221, %c81_222] : memref<3x128xf32, #tpu.memory_space<vmem>>, vector<3x15xf32>
    %c0_223 = arith.constant 0 : index
    %c81_224 = arith.constant 81 : index
    %242 = vector.load %arg1[%c0_223, %c81_224] : memref<3x128xf32, #tpu.memory_space<vmem>>, vector<3x15xf32>
    %243 = tpu.concatenate %234, %235, %236, %237, %238, %239, %240, %241, %242 in 0 : vector<3x15xf32>, vector<3x15xf32>, vector<3x15xf32>, vector<3x15xf32>, vector<3x15xf32>, vector<3x15xf32>, vector<3x15xf32>, vector<3x15xf32>, vector<3x15xf32> -> vector<27x15xf32>
    %c0_225 = arith.constant 0 : index
    %c0_226 = arith.constant 0 : index
    %244 = vector.load %arg2[%c0_225, %c0_226] : memref<16x27xbf16, #tpu.memory_space<vmem>>, vector<16x27xbf16>
    %245 = arith.truncf %243 : vector<27x15xf32> to vector<27x15xbf16>
    %cst_227 = arith.constant dense<0.000000e+00> : vector<16x15xf32>
    %246 = tpu.matmul %244, %245, %cst_227 {dimension_numbers = #tpu.dot_dimension_numbers<[1], [0], [0], [1], [0, 0, 1, 1], [], []>} : vector<16x27xbf16>, vector<27x15xbf16>, vector<16x15xf32> -> vector<16x15xf32>
    %c0_228 = arith.constant 0 : index
    %c0_229 = arith.constant 0 : index
    %247 = vector.load %arg3[%c0_228, %c0_229] : memref<16x1xf32, #tpu.memory_space<vmem>>, vector<16x1xf32>
    %248 = vector.broadcast %247 : vector<16x1xf32> to vector<16x15xf32>
    %249 = arith.addf %246, %248 : vector<16x15xf32>
    %c0_230 = arith.constant 0 : index
    %250 = memref.load %arg10[%c0_230] : memref<3xf32, #tpu.memory_space<smem>>
    %cst_231 = arith.constant 0.000000e+00 : f32
    %251 = vector.broadcast %cst_231 : f32 to vector<16x15xf32>
    %252 = arith.cmpf ogt, %249, %251 : vector<16x15xf32>
    %253 = vector.broadcast %250 : f32 to vector<16x15xf32>
    %254 = arith.mulf %253, %249 : vector<16x15xf32>
    %255 = arith.select %252, %249, %254 : vector<16x15xi1>, vector<16x15xf32>
    %256 = vector.extract_strided_slice %233 {offsets = [0, 0], sizes = [16, 7], strides = [1, 1]} : vector<16x15xf32> to vector<16x7xf32>
    %257 = vector.extract_strided_slice %233 {offsets = [0, 8], sizes = [16, 7], strides = [1, 1]} : vector<16x15xf32> to vector<16x7xf32>
    %258 = vector.extract_strided_slice %255 {offsets = [0, 0], sizes = [16, 7], strides = [1, 1]} : vector<16x15xf32> to vector<16x7xf32>
    %259 = vector.extract_strided_slice %255 {offsets = [0, 8], sizes = [16, 7], strides = [1, 1]} : vector<16x15xf32> to vector<16x7xf32>
    %260 = arith.maximumf %256, %257 : vector<16x7xf32>
    %261 = arith.maximumf %260, %258 : vector<16x7xf32>
    %262 = arith.maximumf %261, %259 : vector<16x7xf32>
    %263 = arith.truncf %262 : vector<16x7xf32> to vector<16x7xbf16>
    %c0_232 = arith.constant 0 : index
    %c28 = arith.constant 28 : index
    %264 = vector.load %arg12[%c0_232, %c28] : memref<16x49xbf16, #tpu.memory_space<vmem>>, vector<16x7xbf16>
    tpu.vector_store %arg12[%c0_232, %c28], %263 {strides = array<i32>} : memref<16x49xbf16, #tpu.memory_space<vmem>>, vector<16x7xbf16>,
    %c0_233 = arith.constant 0 : index
    %c80_234 = arith.constant 80 : index
    %265 = vector.load %arg0[%c0_233, %c80_234] : memref<3x128xf32, #tpu.memory_space<vmem>>, vector<3x15xf32>
    %c0_235 = arith.constant 0 : index
    %c80_236 = arith.constant 80 : index
    %266 = vector.load %arg1[%c0_235, %c80_236] : memref<3x128xf32, #tpu.memory_space<vmem>>, vector<3x15xf32>
    %c0_237 = arith.constant 0 : index
    %c81_238 = arith.constant 81 : index
    %267 = vector.load %arg0[%c0_237, %c81_238] : memref<3x128xf32, #tpu.memory_space<vmem>>, vector<3x15xf32>
    %c0_239 = arith.constant 0 : index
    %c88 = arith.constant 88 : index
    %268 = vector.load %arg0[%c0_239, %c88] : memref<3x128xf32, #tpu.memory_space<vmem>>, vector<3x15xf32>
    %c0_240 = arith.constant 0 : index
    %c88_241 = arith.constant 88 : index
    %269 = vector.load %arg1[%c0_240, %c88_241] : memref<3x128xf32, #tpu.memory_space<vmem>>, vector<3x15xf32>
    %c0_242 = arith.constant 0 : index
    %c89 = arith.constant 89 : index
    %270 = vector.load %arg0[%c0_242, %c89] : memref<3x128xf32, #tpu.memory_space<vmem>>, vector<3x15xf32>
    %c0_243 = arith.constant 0 : index
    %c96 = arith.constant 96 : index
    %271 = vector.load %arg0[%c0_243, %c96] : memref<3x128xf32, #tpu.memory_space<vmem>>, vector<3x15xf32>
    %c0_244 = arith.constant 0 : index
    %c96_245 = arith.constant 96 : index
    %272 = vector.load %arg1[%c0_244, %c96_245] : memref<3x128xf32, #tpu.memory_space<vmem>>, vector<3x15xf32>
    %c0_246 = arith.constant 0 : index
    %c97 = arith.constant 97 : index
    %273 = vector.load %arg0[%c0_246, %c97] : memref<3x128xf32, #tpu.memory_space<vmem>>, vector<3x15xf32>
    %274 = tpu.concatenate %265, %266, %267, %268, %269, %270, %271, %272, %273 in 0 : vector<3x15xf32>, vector<3x15xf32>, vector<3x15xf32>, vector<3x15xf32>, vector<3x15xf32>, vector<3x15xf32>, vector<3x15xf32>, vector<3x15xf32>, vector<3x15xf32> -> vector<27x15xf32>
    %c0_247 = arith.constant 0 : index
    %c0_248 = arith.constant 0 : index
    %275 = vector.load %arg2[%c0_247, %c0_248] : memref<16x27xbf16, #tpu.memory_space<vmem>>, vector<16x27xbf16>
    %276 = arith.truncf %274 : vector<27x15xf32> to vector<27x15xbf16>
    %cst_249 = arith.constant dense<0.000000e+00> : vector<16x15xf32>
    %277 = tpu.matmul %275, %276, %cst_249 {dimension_numbers = #tpu.dot_dimension_numbers<[1], [0], [0], [1], [0, 0, 1, 1], [], []>} : vector<16x27xbf16>, vector<27x15xbf16>, vector<16x15xf32> -> vector<16x15xf32>
    %c0_250 = arith.constant 0 : index
    %c0_251 = arith.constant 0 : index
    %278 = vector.load %arg3[%c0_250, %c0_251] : memref<16x1xf32, #tpu.memory_space<vmem>>, vector<16x1xf32>
    %279 = vector.broadcast %278 : vector<16x1xf32> to vector<16x15xf32>
    %280 = arith.addf %277, %279 : vector<16x15xf32>
    %c0_252 = arith.constant 0 : index
    %281 = memref.load %arg10[%c0_252] : memref<3xf32, #tpu.memory_space<smem>>
    %cst_253 = arith.constant 0.000000e+00 : f32
    %282 = vector.broadcast %cst_253 : f32 to vector<16x15xf32>
    %283 = arith.cmpf ogt, %280, %282 : vector<16x15xf32>
    %284 = vector.broadcast %281 : f32 to vector<16x15xf32>
    %285 = arith.mulf %284, %280 : vector<16x15xf32>
    %286 = arith.select %283, %280, %285 : vector<16x15xi1>, vector<16x15xf32>
    %c0_254 = arith.constant 0 : index
    %c80_255 = arith.constant 80 : index
    %287 = vector.load %arg1[%c0_254, %c80_255] : memref<3x128xf32, #tpu.memory_space<vmem>>, vector<3x15xf32>
    %c0_256 = arith.constant 0 : index
    %c81_257 = arith.constant 81 : index
    %288 = vector.load %arg0[%c0_256, %c81_257] : memref<3x128xf32, #tpu.memory_space<vmem>>, vector<3x15xf32>
    %c0_258 = arith.constant 0 : index
    %c81_259 = arith.constant 81 : index
    %289 = vector.load %arg1[%c0_258, %c81_259] : memref<3x128xf32, #tpu.memory_space<vmem>>, vector<3x15xf32>
    %c0_260 = arith.constant 0 : index
    %c88_261 = arith.constant 88 : index
    %290 = vector.load %arg1[%c0_260, %c88_261] : memref<3x128xf32, #tpu.memory_space<vmem>>, vector<3x15xf32>
    %c0_262 = arith.constant 0 : index
    %c89_263 = arith.constant 89 : index
    %291 = vector.load %arg0[%c0_262, %c89_263] : memref<3x128xf32, #tpu.memory_space<vmem>>, vector<3x15xf32>
    %c0_264 = arith.constant 0 : index
    %c89_265 = arith.constant 89 : index
    %292 = vector.load %arg1[%c0_264, %c89_265] : memref<3x128xf32, #tpu.memory_space<vmem>>, vector<3x15xf32>
    %c0_266 = arith.constant 0 : index
    %c96_267 = arith.constant 96 : index
    %293 = vector.load %arg1[%c0_266, %c96_267] : memref<3x128xf32, #tpu.memory_space<vmem>>, vector<3x15xf32>
    %c0_268 = arith.constant 0 : index
    %c97_269 = arith.constant 97 : index
    %294 = vector.load %arg0[%c0_268, %c97_269] : memref<3x128xf32, #tpu.memory_space<vmem>>, vector<3x15xf32>
    %c0_270 = arith.constant 0 : index
    %c97_271 = arith.constant 97 : index
    %295 = vector.load %arg1[%c0_270, %c97_271] : memref<3x128xf32, #tpu.memory_space<vmem>>, vector<3x15xf32>
    %296 = tpu.concatenate %287, %288, %289, %290, %291, %292, %293, %294, %295 in 0 : vector<3x15xf32>, vector<3x15xf32>, vector<3x15xf32>, vector<3x15xf32>, vector<3x15xf32>, vector<3x15xf32>, vector<3x15xf32>, vector<3x15xf32>, vector<3x15xf32> -> vector<27x15xf32>
    %c0_272 = arith.constant 0 : index
    %c0_273 = arith.constant 0 : index
    %297 = vector.load %arg2[%c0_272, %c0_273] : memref<16x27xbf16, #tpu.memory_space<vmem>>, vector<16x27xbf16>
    %298 = arith.truncf %296 : vector<27x15xf32> to vector<27x15xbf16>
    %cst_274 = arith.constant dense<0.000000e+00> : vector<16x15xf32>
    %299 = tpu.matmul %297, %298, %cst_274 {dimension_numbers = #tpu.dot_dimension_numbers<[1], [0], [0], [1], [0, 0, 1, 1], [], []>} : vector<16x27xbf16>, vector<27x15xbf16>, vector<16x15xf32> -> vector<16x15xf32>
    %c0_275 = arith.constant 0 : index
    %c0_276 = arith.constant 0 : index
    %300 = vector.load %arg3[%c0_275, %c0_276] : memref<16x1xf32, #tpu.memory_space<vmem>>, vector<16x1xf32>
    %301 = vector.broadcast %300 : vector<16x1xf32> to vector<16x15xf32>
    %302 = arith.addf %299, %301 : vector<16x15xf32>
    %c0_277 = arith.constant 0 : index
    %303 = memref.load %arg10[%c0_277] : memref<3xf32, #tpu.memory_space<smem>>
    %cst_278 = arith.constant 0.000000e+00 : f32
    %304 = vector.broadcast %cst_278 : f32 to vector<16x15xf32>
    %305 = arith.cmpf ogt, %302, %304 : vector<16x15xf32>
    %306 = vector.broadcast %303 : f32 to vector<16x15xf32>
    %307 = arith.mulf %306, %302 : vector<16x15xf32>
    %308 = arith.select %305, %302, %307 : vector<16x15xi1>, vector<16x15xf32>
    %309 = vector.extract_strided_slice %286 {offsets = [0, 0], sizes = [16, 7], strides = [1, 1]} : vector<16x15xf32> to vector<16x7xf32>
    %310 = vector.extract_strided_slice %286 {offsets = [0, 8], sizes = [16, 7], strides = [1, 1]} : vector<16x15xf32> to vector<16x7xf32>
    %311 = vector.extract_strided_slice %308 {offsets = [0, 0], sizes = [16, 7], strides = [1, 1]} : vector<16x15xf32> to vector<16x7xf32>
    %312 = vector.extract_strided_slice %308 {offsets = [0, 8], sizes = [16, 7], strides = [1, 1]} : vector<16x15xf32> to vector<16x7xf32>
    %313 = arith.maximumf %309, %310 : vector<16x7xf32>
    %314 = arith.maximumf %313, %311 : vector<16x7xf32>
    %315 = arith.maximumf %314, %312 : vector<16x7xf32>
    %316 = arith.truncf %315 : vector<16x7xf32> to vector<16x7xbf16>
    %c0_279 = arith.constant 0 : index
    %c35 = arith.constant 35 : index
    %317 = vector.load %arg12[%c0_279, %c35] : memref<16x49xbf16, #tpu.memory_space<vmem>>, vector<16x7xbf16>
    tpu.vector_store %arg12[%c0_279, %c35], %316 {strides = array<i32>} : memref<16x49xbf16, #tpu.memory_space<vmem>>, vector<16x7xbf16>,
    %c0_280 = arith.constant 0 : index
    %c96_281 = arith.constant 96 : index
    %318 = vector.load %arg0[%c0_280, %c96_281] : memref<3x128xf32, #tpu.memory_space<vmem>>, vector<3x15xf32>
    %c0_282 = arith.constant 0 : index
    %c96_283 = arith.constant 96 : index
    %319 = vector.load %arg1[%c0_282, %c96_283] : memref<3x128xf32, #tpu.memory_space<vmem>>, vector<3x15xf32>
    %c0_284 = arith.constant 0 : index
    %c97_285 = arith.constant 97 : index
    %320 = vector.load %arg0[%c0_284, %c97_285] : memref<3x128xf32, #tpu.memory_space<vmem>>, vector<3x15xf32>
    %c0_286 = arith.constant 0 : index
    %c104 = arith.constant 104 : index
    %321 = vector.load %arg0[%c0_286, %c104] : memref<3x128xf32, #tpu.memory_space<vmem>>, vector<3x15xf32>
    %c0_287 = arith.constant 0 : index
    %c104_288 = arith.constant 104 : index
    %322 = vector.load %arg1[%c0_287, %c104_288] : memref<3x128xf32, #tpu.memory_space<vmem>>, vector<3x15xf32>
    %c0_289 = arith.constant 0 : index
    %c105 = arith.constant 105 : index
    %323 = vector.load %arg0[%c0_289, %c105] : memref<3x128xf32, #tpu.memory_space<vmem>>, vector<3x15xf32>
    %c0_290 = arith.constant 0 : index
    %c112 = arith.constant 112 : index
    %324 = vector.load %arg0[%c0_290, %c112] : memref<3x128xf32, #tpu.memory_space<vmem>>, vector<3x15xf32>
    %c0_291 = arith.constant 0 : index
    %c112_292 = arith.constant 112 : index
    %325 = vector.load %arg1[%c0_291, %c112_292] : memref<3x128xf32, #tpu.memory_space<vmem>>, vector<3x15xf32>
    %c0_293 = arith.constant 0 : index
    %c113 = arith.constant 113 : index
    %326 = vector.load %arg0[%c0_293, %c113] : memref<3x128xf32, #tpu.memory_space<vmem>>, vector<3x15xf32>
    %327 = tpu.concatenate %318, %319, %320, %321, %322, %323, %324, %325, %326 in 0 : vector<3x15xf32>, vector<3x15xf32>, vector<3x15xf32>, vector<3x15xf32>, vector<3x15xf32>, vector<3x15xf32>, vector<3x15xf32>, vector<3x15xf32>, vector<3x15xf32> -> vector<27x15xf32>
    %c0_294 = arith.constant 0 : index
    %c0_295 = arith.constant 0 : index
    %328 = vector.load %arg2[%c0_294, %c0_295] : memref<16x27xbf16, #tpu.memory_space<vmem>>, vector<16x27xbf16>
    %329 = arith.truncf %327 : vector<27x15xf32> to vector<27x15xbf16>
    %cst_296 = arith.constant dense<0.000000e+00> : vector<16x15xf32>
    %330 = tpu.matmul %328, %329, %cst_296 {dimension_numbers = #tpu.dot_dimension_numbers<[1], [0], [0], [1], [0, 0, 1, 1], [], []>} : vector<16x27xbf16>, vector<27x15xbf16>, vector<16x15xf32> -> vector<16x15xf32>
    %c0_297 = arith.constant 0 : index
    %c0_298 = arith.constant 0 : index
    %331 = vector.load %arg3[%c0_297, %c0_298] : memref<16x1xf32, #tpu.memory_space<vmem>>, vector<16x1xf32>
    %332 = vector.broadcast %331 : vector<16x1xf32> to vector<16x15xf32>
    %333 = arith.addf %330, %332 : vector<16x15xf32>
    %c0_299 = arith.constant 0 : index
    %334 = memref.load %arg10[%c0_299] : memref<3xf32, #tpu.memory_space<smem>>
    %cst_300 = arith.constant 0.000000e+00 : f32
    %335 = vector.broadcast %cst_300 : f32 to vector<16x15xf32>
    %336 = arith.cmpf ogt, %333, %335 : vector<16x15xf32>
    %337 = vector.broadcast %334 : f32 to vector<16x15xf32>
    %338 = arith.mulf %337, %333 : vector<16x15xf32>
    %339 = arith.select %336, %333, %338 : vector<16x15xi1>, vector<16x15xf32>
    %c0_301 = arith.constant 0 : index
    %c96_302 = arith.constant 96 : index
    %340 = vector.load %arg1[%c0_301, %c96_302] : memref<3x128xf32, #tpu.memory_space<vmem>>, vector<3x15xf32>
    %c0_303 = arith.constant 0 : index
    %c97_304 = arith.constant 97 : index
    %341 = vector.load %arg0[%c0_303, %c97_304] : memref<3x128xf32, #tpu.memory_space<vmem>>, vector<3x15xf32>
    %c0_305 = arith.constant 0 : index
    %c97_306 = arith.constant 97 : index
    %342 = vector.load %arg1[%c0_305, %c97_306] : memref<3x128xf32, #tpu.memory_space<vmem>>, vector<3x15xf32>
    %c0_307 = arith.constant 0 : index
    %c104_308 = arith.constant 104 : index
    %343 = vector.load %arg1[%c0_307, %c104_308] : memref<3x128xf32, #tpu.memory_space<vmem>>, vector<3x15xf32>
    %c0_309 = arith.constant 0 : index
    %c105_310 = arith.constant 105 : index
    %344 = vector.load %arg0[%c0_309, %c105_310] : memref<3x128xf32, #tpu.memory_space<vmem>>, vector<3x15xf32>
    %c0_311 = arith.constant 0 : index
    %c105_312 = arith.constant 105 : index
    %345 = vector.load %arg1[%c0_311, %c105_312] : memref<3x128xf32, #tpu.memory_space<vmem>>, vector<3x15xf32>
    %c0_313 = arith.constant 0 : index
    %c112_314 = arith.constant 112 : index
    %346 = vector.load %arg1[%c0_313, %c112_314] : memref<3x128xf32, #tpu.memory_space<vmem>>, vector<3x15xf32>
    %c0_315 = arith.constant 0 : index
    %c113_316 = arith.constant 113 : index
    %347 = vector.load %arg0[%c0_315, %c113_316] : memref<3x128xf32, #tpu.memory_space<vmem>>, vector<3x15xf32>
    %c0_317 = arith.constant 0 : index
    %c113_318 = arith.constant 113 : index
    %348 = vector.load %arg1[%c0_317, %c113_318] : memref<3x128xf32, #tpu.memory_space<vmem>>, vector<3x15xf32>
    %349 = tpu.concatenate %340, %341, %342, %343, %344, %345, %346, %347, %348 in 0 : vector<3x15xf32>, vector<3x15xf32>, vector<3x15xf32>, vector<3x15xf32>, vector<3x15xf32>, vector<3x15xf32>, vector<3x15xf32>, vector<3x15xf32>, vector<3x15xf32> -> vector<27x15xf32>
    %c0_319 = arith.constant 0 : index
    %c0_320 = arith.constant 0 : index
    %350 = vector.load %arg2[%c0_319, %c0_320] : memref<16x27xbf16, #tpu.memory_space<vmem>>, vector<16x27xbf16>
    %351 = arith.truncf %349 : vector<27x15xf32> to vector<27x15xbf16>
    %cst_321 = arith.constant dense<0.000000e+00> : vector<16x15xf32>
    %352 = tpu.matmul %350, %351, %cst_321 {dimension_numbers = #tpu.dot_dimension_numbers<[1], [0], [0], [1], [0, 0, 1, 1], [], []>} : vector<16x27xbf16>, vector<27x15xbf16>, vector<16x15xf32> -> vector<16x15xf32>
    %c0_322 = arith.constant 0 : index
    %c0_323 = arith.constant 0 : index
    %353 = vector.load %arg3[%c0_322, %c0_323] : memref<16x1xf32, #tpu.memory_space<vmem>>, vector<16x1xf32>
    %354 = vector.broadcast %353 : vector<16x1xf32> to vector<16x15xf32>
    %355 = arith.addf %352, %354 : vector<16x15xf32>
    %c0_324 = arith.constant 0 : index
    %356 = memref.load %arg10[%c0_324] : memref<3xf32, #tpu.memory_space<smem>>
    %cst_325 = arith.constant 0.000000e+00 : f32
    %357 = vector.broadcast %cst_325 : f32 to vector<16x15xf32>
    %358 = arith.cmpf ogt, %355, %357 : vector<16x15xf32>
    %359 = vector.broadcast %356 : f32 to vector<16x15xf32>
    %360 = arith.mulf %359, %355 : vector<16x15xf32>
    %361 = arith.select %358, %355, %360 : vector<16x15xi1>, vector<16x15xf32>
    %362 = vector.extract_strided_slice %339 {offsets = [0, 0], sizes = [16, 7], strides = [1, 1]} : vector<16x15xf32> to vector<16x7xf32>
    %363 = vector.extract_strided_slice %339 {offsets = [0, 8], sizes = [16, 7], strides = [1, 1]} : vector<16x15xf32> to vector<16x7xf32>
    %364 = vector.extract_strided_slice %361 {offsets = [0, 0], sizes = [16, 7], strides = [1, 1]} : vector<16x15xf32> to vector<16x7xf32>
    %365 = vector.extract_strided_slice %361 {offsets = [0, 8], sizes = [16, 7], strides = [1, 1]} : vector<16x15xf32> to vector<16x7xf32>
    %366 = arith.maximumf %362, %363 : vector<16x7xf32>
    %367 = arith.maximumf %366, %364 : vector<16x7xf32>
    %368 = arith.maximumf %367, %365 : vector<16x7xf32>
    %369 = arith.truncf %368 : vector<16x7xf32> to vector<16x7xbf16>
    %c0_326 = arith.constant 0 : index
    %c42 = arith.constant 42 : index
    %370 = vector.load %arg12[%c0_326, %c42] : memref<16x49xbf16, #tpu.memory_space<vmem>>, vector<16x7xbf16>
    tpu.vector_store %arg12[%c0_326, %c42], %369 {strides = array<i32>} : memref<16x49xbf16, #tpu.memory_space<vmem>>, vector<16x7xbf16>,
    %c0_327 = arith.constant 0 : index
    %c0_328 = arith.constant 0 : index
    %371 = vector.load %arg12[%c0_327, %c0_328] : memref<16x49xbf16, #tpu.memory_space<vmem>>, vector<16x33xbf16>
    %c0_329 = arith.constant 0 : index
    %c1_330 = arith.constant 1 : index
    %372 = vector.load %arg12[%c0_329, %c1_330] : memref<16x49xbf16, #tpu.memory_space<vmem>>, vector<16x33xbf16>
    %c0_331 = arith.constant 0 : index
    %c2 = arith.constant 2 : index
    %373 = vector.load %arg12[%c0_331, %c2] : memref<16x49xbf16, #tpu.memory_space<vmem>>, vector<16x33xbf16>
    %c0_332 = arith.constant 0 : index
    %c7_333 = arith.constant 7 : index
    %374 = vector.load %arg12[%c0_332, %c7_333] : memref<16x49xbf16, #tpu.memory_space<vmem>>, vector<16x33xbf16>
    %c0_334 = arith.constant 0 : index
    %c8_335 = arith.constant 8 : index
    %375 = vector.load %arg12[%c0_334, %c8_335] : memref<16x49xbf16, #tpu.memory_space<vmem>>, vector<16x33xbf16>
    %c0_336 = arith.constant 0 : index
    %c9_337 = arith.constant 9 : index
    %376 = vector.load %arg12[%c0_336, %c9_337] : memref<16x49xbf16, #tpu.memory_space<vmem>>, vector<16x33xbf16>
    %c0_338 = arith.constant 0 : index
    %c14_339 = arith.constant 14 : index
    %377 = vector.load %arg12[%c0_338, %c14_339] : memref<16x49xbf16, #tpu.memory_space<vmem>>, vector<16x33xbf16>
    %c0_340 = arith.constant 0 : index
    %c15 = arith.constant 15 : index
    %378 = vector.load %arg12[%c0_340, %c15] : memref<16x49xbf16, #tpu.memory_space<vmem>>, vector<16x33xbf16>
    %c0_341 = arith.constant 0 : index
    %c16_342 = arith.constant 16 : index
    %379 = vector.load %arg12[%c0_341, %c16_342] : memref<16x49xbf16, #tpu.memory_space<vmem>>, vector<16x33xbf16>
    %380 = tpu.concatenate %371, %372, %373, %374, %375, %376, %377, %378, %379 in 0 : vector<16x33xbf16>, vector<16x33xbf16>, vector<16x33xbf16>, vector<16x33xbf16>, vector<16x33xbf16>, vector<16x33xbf16>, vector<16x33xbf16>, vector<16x33xbf16>, vector<16x33xbf16> -> vector<144x33xbf16>
    %c0_343 = arith.constant 0 : index
    %c0_344 = arith.constant 0 : index
    %381 = vector.load %arg4[%c0_343, %c0_344] : memref<16x144xbf16, #tpu.memory_space<vmem>>, vector<16x144xbf16>
    %cst_345 = arith.constant dense<0.000000e+00> : vector<16x33xf32>
    %382 = tpu.matmul %381, %380, %cst_345 {dimension_numbers = #tpu.dot_dimension_numbers<[1], [0], [0], [1], [0, 0, 1, 1], [], []>} : vector<16x144xbf16>, vector<144x33xbf16>, vector<16x33xf32> -> vector<16x33xf32>
    %c0_346 = arith.constant 0 : index
    %c0_347 = arith.constant 0 : index
    %383 = vector.load %arg5[%c0_346, %c0_347] : memref<16x1xf32, #tpu.memory_space<vmem>>, vector<16x1xf32>
    %384 = vector.broadcast %383 : vector<16x1xf32> to vector<16x33xf32>
    %385 = arith.addf %382, %384 : vector<16x33xf32>
    %c1_348 = arith.constant 1 : index
    %386 = memref.load %arg10[%c1_348] : memref<3xf32, #tpu.memory_space<smem>>
    %cst_349 = arith.constant 0.000000e+00 : f32
    %387 = vector.broadcast %cst_349 : f32 to vector<16x33xf32>
    %388 = arith.cmpf ogt, %385, %387 : vector<16x33xf32>
    %389 = vector.broadcast %386 : f32 to vector<16x33xf32>
    %390 = arith.mulf %389, %385 : vector<16x33xf32>
    %391 = arith.select %388, %385, %390 : vector<16x33xi1>, vector<16x33xf32>
    %392 = arith.truncf %391 : vector<16x33xf32> to vector<16x33xbf16>
    %393 = vector.extract_strided_slice %392 {offsets = [0, 0], sizes = [16, 17], strides = [1, 1]} : vector<16x33xbf16> to vector<16x17xbf16>
    %394 = vector.extract_strided_slice %392 {offsets = [0, 1], sizes = [16, 17], strides = [1, 1]} : vector<16x33xbf16> to vector<16x17xbf16>
    %395 = vector.extract_strided_slice %392 {offsets = [0, 2], sizes = [16, 17], strides = [1, 1]} : vector<16x33xbf16> to vector<16x17xbf16>
    %396 = vector.extract_strided_slice %392 {offsets = [0, 7], sizes = [16, 17], strides = [1, 1]} : vector<16x33xbf16> to vector<16x17xbf16>
    %397 = vector.extract_strided_slice %392 {offsets = [0, 8], sizes = [16, 17], strides = [1, 1]} : vector<16x33xbf16> to vector<16x17xbf16>
    %398 = vector.extract_strided_slice %392 {offsets = [0, 9], sizes = [16, 17], strides = [1, 1]} : vector<16x33xbf16> to vector<16x17xbf16>
    %399 = vector.extract_strided_slice %392 {offsets = [0, 14], sizes = [16, 17], strides = [1, 1]} : vector<16x33xbf16> to vector<16x17xbf16>
    %400 = vector.extract_strided_slice %392 {offsets = [0, 15], sizes = [16, 17], strides = [1, 1]} : vector<16x33xbf16> to vector<16x17xbf16>
    %401 = vector.extract_strided_slice %392 {offsets = [0, 16], sizes = [16, 17], strides = [1, 1]} : vector<16x33xbf16> to vector<16x17xbf16>
    %402 = tpu.concatenate %393, %394, %395, %396, %397, %398, %399, %400, %401 in 0 : vector<16x17xbf16>, vector<16x17xbf16>, vector<16x17xbf16>, vector<16x17xbf16>, vector<16x17xbf16>, vector<16x17xbf16>, vector<16x17xbf16>, vector<16x17xbf16>, vector<16x17xbf16> -> vector<144x17xbf16>
    %c0_350 = arith.constant 0 : index
    %c0_351 = arith.constant 0 : index
    %403 = vector.load %arg6[%c0_350, %c0_351] : memref<32x144xbf16, #tpu.memory_space<vmem>>, vector<32x144xbf16>
    %cst_352 = arith.constant dense<0.000000e+00> : vector<32x17xf32>
    %404 = tpu.matmul %403, %402, %cst_352 {dimension_numbers = #tpu.dot_dimension_numbers<[1], [0], [0], [1], [0, 0, 1, 1], [], []>} : vector<32x144xbf16>, vector<144x17xbf16>, vector<32x17xf32> -> vector<32x17xf32>
    %c0_353 = arith.constant 0 : index
    %c0_354 = arith.constant 0 : index
    %405 = vector.load %arg7[%c0_353, %c0_354] : memref<32x1xf32, #tpu.memory_space<vmem>>, vector<32x1xf32>
    %406 = vector.broadcast %405 : vector<32x1xf32> to vector<32x17xf32>
    %407 = arith.addf %404, %406 : vector<32x17xf32>
    %c2_355 = arith.constant 2 : index
    %408 = memref.load %arg10[%c2_355] : memref<3xf32, #tpu.memory_space<smem>>
    %cst_356 = arith.constant 0.000000e+00 : f32
    %409 = vector.broadcast %cst_356 : f32 to vector<32x17xf32>
    %410 = arith.cmpf ogt, %407, %409 : vector<32x17xf32>
    %411 = vector.broadcast %408 : f32 to vector<32x17xf32>
    %412 = arith.mulf %411, %407 : vector<32x17xf32>
    %413 = arith.select %410, %407, %412 : vector<32x17xi1>, vector<32x17xf32>
    %414 = arith.truncf %413 : vector<32x17xf32> to vector<32x17xbf16>
    %c0_357 = arith.constant 0 : index
    %c0_358 = arith.constant 0 : index
    %415 = vector.load %arg8[%c0_357, %c0_358] : memref<16x32xbf16, #tpu.memory_space<vmem>>, vector<16x32xbf16>
    %cst_359 = arith.constant dense<0.000000e+00> : vector<16x17xf32>
    %416 = tpu.matmul %415, %414, %cst_359 {dimension_numbers = #tpu.dot_dimension_numbers<[1], [0], [0], [1], [0, 0, 1, 1], [], []>} : vector<16x32xbf16>, vector<32x17xbf16>, vector<16x17xf32> -> vector<16x17xf32>
    %c0_360 = arith.constant 0 : index
    %c0_361 = arith.constant 0 : index
    %417 = vector.load %arg9[%c0_360, %c0_361] : memref<16x1xf32, #tpu.memory_space<vmem>>, vector<16x1xf32>
    %418 = vector.broadcast %417 : vector<16x1xf32> to vector<16x17xf32>
    %419 = arith.addf %416, %418 : vector<16x17xf32>
    %c0_362 = arith.constant 0 : index
    %c0_363 = arith.constant 0 : index
    %420 = vector.load %arg11[%c0_362, %c0_363] : memref<16x17xf32, #tpu.memory_space<vmem>>, vector<16x17xf32>
    tpu.vector_store %arg11[%c0_362, %c0_363], %419 {strides = array<i32>} : memref<16x17xf32, #tpu.memory_space<vmem>>, vector<16x17xf32>,
    return
  }
}

</mosaic_0001>

<llo_original>
// kernel: pnet_forward.1
$region0: #{pnet_forward.1}
  #allocation0 [shape = 'u32[]', space=smem, size = 0x4, offset = 0x4, fixed_abs, tag = 'smem constant byte address 0x4 - core index']
  #allocation1 [shape = 'u32[144,128]{1,0:T(1,128)}', space=vmem, size = 0x12000, scoped, tag = 'internal scratch']
  #allocation2 [shape = 'bf16[16,49]{1,0:T(8,128)(2,1)}', space=vmem, size = 0x1000, scoped, tag = 'scratch operand']
  %s0 = inlined_call_operand.vmem [shape: f32[3,128], index: 0, kind: input, shape index: {}]
  %s1 = inlined_call_operand.vmem [shape: f32[3,128], index: 1, kind: input, shape index: {}]
  %s2 = inlined_call_operand.vmem [shape: bf16[16,27], index: 2, kind: input, shape index: {}]
  %s3 = inlined_call_operand.vmem [shape: f32[16,1], index: 3, kind: input, shape index: {}]
  %s4 = inlined_call_operand.vmem [shape: bf16[16,144], index: 4, kind: input, shape index: {}]
  %s5 = inlined_call_operand.vmem [shape: f32[16,1], index: 5, kind: input, shape index: {}]
  %s6 = inlined_call_operand.vmem [shape: bf16[32,144], index: 6, kind: input, shape index: {}]
  %s7 = inlined_call_operand.vmem [shape: f32[32,1], index: 7, kind: input, shape index: {}]
  %s8 = inlined_call_operand.vmem [shape: bf16[16,32], index: 8, kind: input, shape index: {}]
  %s9 = inlined_call_operand.vmem [shape: f32[16,1], index: 9, kind: input, shape index: {}]
  %s10 = inlined_call_operand.vmem [shape: f32[3], index: 10, kind: input, shape index: {}]
  %s11 = inlined_call_operand.vmem [shape: f32[16,17], index: 11, kind: output, shape index: {}]
  %s12 = sld [smem:[#allocation0]]
  $region58: #{pnet_forward.1} parent=0
    _
  %s14 = ssub.s32 1, %s12
  %s15 = scalar_select 0, %s14, %s12
  $region1: #{pnet_forward.1} parent=0
    #allocation3 [shape = 'u8[512]{0}', space=smem, size = 0x200, scoped, tag = 'input window, operand 10, single buffered']
    #allocation4 [shape = 's32[1]{0}', space=sflag, size = 0x4, scoped, tag = 'scoped memory for pnet_forward.1']
    %16 = vsyncpa [#allocation4], 0
    // Predicated region
    $region2: #{pnet_forward.1} parent=1 // pred_check
      _
    $region3: #{pnet_forward.1} parent=1 // pred_check_branch
      %18 = sbr.rel (0) target = $region5
    $region4: #{pnet_forward.1} parent=1 // pred_region
      _
    $region5: #{pnet_forward.1} parent=1 // pred_fallthru
      _
    // Predicated region
    $region6: #{pnet_forward.1} parent=1 // pred_check
      _
    $region7: #{pnet_forward.1} parent=1 // pred_check_branch
      %20 = sbr.rel (0) target = $region9
    $region8: #{pnet_forward.1} parent=1 // pred_region
      _
    $region9: #{pnet_forward.1} parent=1 // pred_fallthru
      _
    // Predicated region
    $region10: #{pnet_forward.1} parent=1 // pred_check
      _
    $region11: #{pnet_forward.1} parent=1 // pred_check_branch
      %22 = sbr.rel (0) target = $region13
    $region12: #{pnet_forward.1} parent=1 // pred_region
      _
    $region13: #{pnet_forward.1} parent=1 // pred_fallthru
      _
    // Predicated region
    $region14: #{pnet_forward.1} parent=1 // pred_check
      _
    $region15: #{pnet_forward.1} parent=1 // pred_check_branch
      %24 = sbr.rel (0) target = $region17
    $region16: #{pnet_forward.1} parent=1 // pred_region
      _
    $region17: #{pnet_forward.1} parent=1 // pred_fallthru
      _
    // Predicated region
    $region18: #{pnet_forward.1} parent=1 // pred_check
      _
    $region19: #{pnet_forward.1} parent=1 // pred_check_branch
      %26 = sbr.rel (0) target = $region21
    $region20: #{pnet_forward.1} parent=1 // pred_region
      _
    $region21: #{pnet_forward.1} parent=1 // pred_fallthru
      _
    // Predicated region
    $region22: #{pnet_forward.1} parent=1 // pred_check
      _
    $region23: #{pnet_forward.1} parent=1 // pred_check_branch
      %28 = sbr.rel (0) target = $region25
    $region24: #{pnet_forward.1} parent=1 // pred_region
      _
    $region25: #{pnet_forward.1} parent=1 // pred_fallthru
      _
    // Predicated region
    $region26: #{pnet_forward.1} parent=1 // pred_check
      _
    $region27: #{pnet_forward.1} parent=1 // pred_check_branch
      %30 = sbr.rel (0) target = $region29
    $region28: #{pnet_forward.1} parent=1 // pred_region
      _
    $region29: #{pnet_forward.1} parent=1 // pred_fallthru
      _
    // Predicated region
    $region30: #{pnet_forward.1} parent=1 // pred_check
      _
    $region31: #{pnet_forward.1} parent=1 // pred_check_branch
      %32 = sbr.rel (0) target = $region33
    $region32: #{pnet_forward.1} parent=1 // pred_region
      _
    $region33: #{pnet_forward.1} parent=1 // pred_fallthru
      _
    // Predicated region
    $region34: #{pnet_forward.1} parent=1 // pred_check
      _
    $region35: #{pnet_forward.1} parent=1 // pred_check_branch
      %34 = sbr.rel (0) target = $region37
    $region36: #{pnet_forward.1} parent=1 // pred_region
      _
    $region37: #{pnet_forward.1} parent=1 // pred_fallthru
      _
    // Predicated region
    $region38: #{pnet_forward.1} parent=1 // pred_check
      _
    $region39: #{pnet_forward.1} parent=1 // pred_check_branch
      %36 = sbr.rel (0) target = $region41
    $region40: #{pnet_forward.1} parent=1 // pred_region
      _
    $region41: #{pnet_forward.1} parent=1 // pred_fallthru
      _
    // Predicated region
    $region42: #{pnet_forward.1} parent=1 // pred_check
      _
    $region43: #{pnet_forward.1} parent=1 // pred_check_branch
      %38 = sbr.rel (0) target = $region45
    $region44: #{pnet_forward.1} parent=1 // pred_region
      %s40 = ssub.s32 16, 16
      %41 = vsyncadd [#allocation4], %s40
      %s43 = sshll.u32 %s10, 4
      %s44 = int_to_ptr.vmem [resolvable:$true] %s43
      %46 = dma.vmem_to_smem %s44, 16, [#allocation3], [#allocation4]
    $region45: #{pnet_forward.1} parent=1 // pred_fallthru
      _
    // Predicated region
    $region46: #{pnet_forward.1} parent=1 // pred_check
      _
    $region47: #{pnet_forward.1} parent=1 // pred_check_branch
      %48 = sbr.rel (0) target = $region49
    $region48: #{pnet_forward.1} parent=1 // pred_region
      %49 = dma.done [#allocation4], 16
    $region49: #{pnet_forward.1} parent=1 // pred_fallthru
      _
    %50 = sfence
    %v52 = vld [vmem:[%s0] sm:$0x7]
    %v53 = vld [vmem:[%s1] sm:$0x7]
    %v55 = vrot.slane %v53, 5
    %v58 = vrot.slane %v52, 2
    %59 = vrot.lane.b32.xlu0 %v58, 127
    %v60 = vpop.permute.xlu0 %59
    %v62 = vrot.slane %v52, 7
    %63 = vrot.lane.b32.xlu0 %v62, 120
    %v64 = vpop.permute.xlu0 %63
    %v66 = vrot.slane %v53, 4
    %67 = vrot.lane.b32.xlu0 %v66, 120
    %v68 = vpop.permute.xlu0 %67
    %v70 = vrot.slane %v52, 1
    %71 = vrot.lane.b32.xlu0 %v70, 119
    %v72 = vpop.permute.xlu0 %71
    %v74 = vrot.slane %v52, 6
    %75 = vrot.lane.b32.xlu0 %v74, 112
    %v76 = vpop.permute.xlu0 %75
    %v78 = vrot.slane %v53, 3
    %79 = vrot.lane.b32.xlu0 %v78, 112
    %v80 = vpop.permute.xlu0 %79
    %82 = vrot.lane.b32.xlu0 %v52, 111
    %v83 = vpop.permute.xlu0 %82
    %vm85 = vcmask 1042432
    %v86 = vsel %vm85, %v52, %v55
    %vm87 = vcmask 1045504
    %v88 = vsel %vm87, %v86, %v60
    %vm89 = vcmask 1040384
    %v90 = vsel %vm89, %v60, %v64
    %vm91 = vcmask 1043456
    %v92 = vsel %vm91, %v90, %v68
    %vm93 = vcmask 1046528
    %v94 = vsel %vm93, %v92, %v72
    %vm95 = vcmask 1041408
    %v96 = vsel %vm95, %v72, %v76
    %vm97 = vcmask 1044480
    %v98 = vsel %vm97, %v96, %v80
    %v99 = vld [vmem:[%s2] sm:$0xf]
    %v100 = vld [vmem:[%s2 + $0x4] sm:$0xf]
    %v101 = vpack.c.bf16 %v94, %v88
    %v102 = vpack.c.bf16 %v83, %v98
    %v103 = vld [vmem:[%s3] sm:$0xff]
    %v104 = vld [vmem:[%s3 + $0x8] sm:$0xff]
    %106 = vset.pattern.permute.xlu0 0
    %107 = vperm.xlu0 %106, %v103
    %v108 = vpop.permute.xlu0 %107
    %111 = vset.pattern.permute.xlu0 0
    %112 = vperm.xlu0 %111, %v104
    %v113 = vpop.permute.xlu0 %112
    %v117 = vunpack.c.l.b16 %v99
    %v118 = vunpack.c.l.b16 %v100
    %v119 = vpack.c.b16 %v118, %v117
    %vm120 = vcmask 220160
    %v122 = vsel %vm120, %v119, 0
    %v124 = vsel %vm97, 4294967295, 65535
    %v125 = vsel %vm87, %v124, 0
    %v127 = vand.u32 %v102, %v125
    %129 = vmatprep.subr.bf16.mxu0 0
    %130 = vmatpush1.bf16.msra.mxu0 0
    %131 = vmatprep.subr.bf16.mxu0 0
    %132 = vmatpush1.bf16.msra.mxu0 0
    %133 = vmatprep.subr.bf16.mxu0 0
    %134 = vmatpush1.bf16.msra.mxu0 0
    %135 = vmatprep.subr.bf16.mxu0 0
    %136 = vmatpush1.bf16.msra.mxu0 0
    %137 = vmatprep.subr.bf16.mxu0 0
    %138 = vmatpush1.bf16.msra.mxu0 0
    %139 = vmatprep.subr.bf16.mxu0 0
    %140 = vmatpush1.bf16.msra.mxu0 0
    %141 = vmatprep.subr.bf16.mxu0 0
    %142 = vmatpush1.bf16.msra.mxu0 %v127
    %143 = vmatprep.subr.bf16.mxu0 0
    %144 = vmatpush1.bf16.msra.mxu0 %v101
    %145 = vmatprep.subr.bf16.mxu0 0
    %146 = vmatpush2.bf16.msra.mxu0 0
    %147 = vmatprep.subr.bf16.mxu0 0
    %148 = vmatpush2.bf16.msra.mxu0 0
    %149 = vmatprep.subr.bf16.mxu0 0
    %150 = vmatpush2.bf16.msra.mxu0 0
    %151 = vmatprep.subr.bf16.mxu0 0
    %152 = vmatpush2.bf16.msra.mxu0 0
    %153 = vmatprep.subr.bf16.mxu0 0
    %154 = vmatpush2.bf16.msra.mxu0 0
    %155 = vmatprep.subr.bf16.mxu0 0
    %156 = vmatpush2.bf16.msra.mxu0 0
    %157 = vmatprep.subr.bf16.mxu0 0
    %158 = vmatpush2.bf16.msra.mxu0 0
    %159 = vmatprep.subr.bf16.mxu0 0
    %160 = vmatpush2.bf16.msra.mxu0 0
    %161 = vmatprep.mubr.bf16.mxu0 0
    %162 = vmatmul.mubr.bf16.gmra.mxu0 %v122
    %v163 = vpop.f32.mrf.mxu0
    %v164 = vadd.f32 %v108, %v163
    %v165 = vpop.f32.mrf.mxu0
    %v166 = vpop.f32.mrf.mxu0
    %v167 = vadd.f32 %v113, %v166
    %v168 = vpop.f32.mrf.mxu0
    %169 = vdwg.mxu0
    %s170 = sld [smem:[#allocation3]]
    %vm171 = vcmp.gt.f32.partialorder %v164, 0.0
    %vm172 = vcmp.gt.f32.partialorder %v167, 0.0
    %v173 = vstv %s170
    %v174 = vmul.f32 %v173, %v164
    %v175 = vmul.f32 %v173, %v167
    %v176 = vsel %vm171, %v164, %v174
    %v177 = vsel %vm172, %v167, %v175
    %v178 = vrot.slane %v52, 5
    %179 = vrot.lane.b32.xlu0 %v178, 127
    %v180 = vpop.permute.xlu0 %179
    %v182 = vrot.slane %v53, 2
    %183 = vrot.lane.b32.xlu0 %v182, 127
    %v184 = vpop.permute.xlu0 %183
    %v186 = vrot.slane %v53, 7
    %187 = vrot.lane.b32.xlu0 %v186, 120
    %v188 = vpop.permute.xlu0 %187
    %v190 = vrot.slane %v52, 4
    %191 = vrot.lane.b32.xlu0 %v190, 119
    %v192 = vpop.permute.xlu0 %191
    %v194 = vrot.slane %v53, 1
    %195 = vrot.lane.b32.xlu0 %v194, 119
    %v196 = vpop.permute.xlu0 %195
    %v198 = vrot.slane %v53, 6
    %199 = vrot.lane.b32.xlu0 %v198, 112
    %v200 = vpop.permute.xlu0 %199
    %v202 = vrot.slane %v52, 3
    %203 = vrot.lane.b32.xlu0 %v202, 111
    %v204 = vpop.permute.xlu0 %203
    %206 = vrot.lane.b32.xlu0 %v53, 111
    %v207 = vpop.permute.xlu0 %206
    %v209 = vsel %vm85, %v53, %v180
    %v210 = vsel %vm87, %v209, %v184
    %v211 = vsel %vm89, %v184, %v188
    %v212 = vsel %vm91, %v211, %v192
    %v213 = vsel %vm93, %v212, %v196
    %v214 = vsel %vm95, %v196, %v200
    %v215 = vsel %vm97, %v214, %v204
    %v216 = vpack.c.bf16 %v213, %v210
    %v217 = vpack.c.bf16 %v207, %v215
    %v219 = vand.u32 %v217, %v125
    %221 = vmatprep.subr.bf16.mxu0 0
    %222 = vmatpush1.bf16.msra.mxu0 0
    %223 = vmatprep.subr.bf16.mxu0 0
    %224 = vmatpush1.bf16.msra.mxu0 0
    %225 = vmatprep.subr.bf16.mxu0 0
    %226 = vmatpush1.bf16.msra.mxu0 0
    %227 = vmatprep.subr.bf16.mxu0 0
    %228 = vmatpush1.bf16.msra.mxu0 0
    %229 = vmatprep.subr.bf16.mxu0 0
    %230 = vmatpush1.bf16.msra.mxu0 0
    %231 = vmatprep.subr.bf16.mxu0 0
    %232 = vmatpush1.bf16.msra.mxu0 0
    %233 = vmatprep.subr.bf16.mxu0 0
    %234 = vmatpush1.bf16.msra.mxu0 %v219
    %235 = vmatprep.subr.bf16.mxu0 0
    %236 = vmatpush1.bf16.msra.mxu0 %v216
    %237 = vmatprep.subr.bf16.mxu0 0
    %238 = vmatpush2.bf16.msra.mxu0 0
    %239 = vmatprep.subr.bf16.mxu0 0
    %240 = vmatpush2.bf16.msra.mxu0 0
    %241 = vmatprep.subr.bf16.mxu0 0
    %242 = vmatpush2.bf16.msra.mxu0 0
    %243 = vmatprep.subr.bf16.mxu0 0
    %244 = vmatpush2.bf16.msra.mxu0 0
    %245 = vmatprep.subr.bf16.mxu0 0
    %246 = vmatpush2.bf16.msra.mxu0 0
    %247 = vmatprep.subr.bf16.mxu0 0
    %248 = vmatpush2.bf16.msra.mxu0 0
    %249 = vmatprep.subr.bf16.mxu0 0
    %250 = vmatpush2.bf16.msra.mxu0 0
    %251 = vmatprep.subr.bf16.mxu0 0
    %252 = vmatpush2.bf16.msra.mxu0 0
    %253 = vmatprep.mubr.bf16.mxu0 0
    %254 = vmatmul.mubr.bf16.gmra.mxu0 %v122
    %v255 = vpop.f32.mrf.mxu0
    %v256 = vadd.f32 %v108, %v255
    %v257 = vpop.f32.mrf.mxu0
    %v258 = vpop.f32.mrf.mxu0
    %v259 = vadd.f32 %v113, %v258
    %v260 = vpop.f32.mrf.mxu0
    %261 = vdwg.mxu0
    %vm262 = vcmp.gt.f32.partialorder %v256, 0.0
    %vm263 = vcmp.gt.f32.partialorder %v259, 0.0
    %v264 = vmul.f32 %v173, %v256
    %v265 = vmul.f32 %v173, %v259
    %v266 = vsel %vm262, %v256, %v264
    %v267 = vsel %vm263, %v259, %v265
    %270 = vrot.lane.b32.xlu0 %v176, 120
    %v271 = vpop.permute.xlu0 %270
    %272 = vrot.lane.b32.xlu0 %v177, 120
    %v273 = vpop.permute.xlu0 %272
    %v276 = vmax.f32 %v176, %v271
    %v277 = vmax.f32 %v177, %v273
    %v278 = vmax.f32 %v276, %v266
    %v279 = vmax.f32 %v277, %v267
    %282 = vrot.lane.b32.xlu0 %v266, 120
    %v283 = vpop.permute.xlu0 %282
    %284 = vrot.lane.b32.xlu0 %v267, 120
    %v285 = vpop.permute.xlu0 %284
    %v288 = vmax.f32 %v278, %v283
    %v289 = vmax.f32 %v279, %v285
    %v290 = vpack.c.bf16 %v289, %v288
    %v292 = vunpack.c.l.b16 %v290
    %v293 = vunpack.c.h.b16 %v290
    %v294 = vpack.c.b16 %v292, %v292
    %v295 = vpack.c.b16 %v293, %v293
    %vm298 = vcmask 52224
    %299 = vst.msk [vmem:[#allocation2] sm:$0xf] %vm298, %v294
    %300 = vst.msk [vmem:[#allocation2 + $0x4] sm:$0xf] %vm298, %v295
    %v301 = vld [vmem:[%s0] sm:$0x7]
    %v302 = vld [vmem:[%s1] sm:$0x7]
    %v304 = vrot.slane %v302, 5
    %v307 = vrot.slane %v301, 2
    %308 = vrot.lane.b32.xlu0 %v307, 127
    %v309 = vpop.permute.xlu0 %308
    %v311 = vrot.slane %v301, 7
    %312 = vrot.lane.b32.xlu0 %v311, 120
    %v313 = vpop.permute.xlu0 %312
    %v315 = vrot.slane %v302, 4
    %316 = vrot.lane.b32.xlu0 %v315, 120
    %v317 = vpop.permute.xlu0 %316
    %v319 = vrot.slane %v301, 1
    %320 = vrot.lane.b32.xlu0 %v319, 119
    %v321 = vpop.permute.xlu0 %320
    %v323 = vrot.slane %v301, 6
    %324 = vrot.lane.b32.xlu0 %v323, 112
    %v325 = vpop.permute.xlu0 %324
    %v327 = vrot.slane %v302, 3
    %328 = vrot.lane.b32.xlu0 %v327, 112
    %v329 = vpop.permute.xlu0 %328
    %331 = vrot.lane.b32.xlu0 %v301, 111
    %v332 = vpop.permute.xlu0 %331
    %v334 = vsel %vm85, %v301, %v304
    %v335 = vsel %vm87, %v334, %v309
    %v336 = vsel %vm89, %v309, %v313
    %v337 = vsel %vm91, %v336, %v317
    %v338 = vsel %vm93, %v337, %v321
    %v339 = vsel %vm95, %v321, %v325
    %v340 = vsel %vm97, %v339, %v329
    %v341 = vld [vmem:[%s2] sm:$0xf]
    %v342 = vld [vmem:[%s2 + $0x4] sm:$0xf]
    %v343 = vpack.c.bf16 %v338, %v335
    %v344 = vpack.c.bf16 %v332, %v340
    %v345 = vld [vmem:[%s3] sm:$0xff]
    %v346 = vld [vmem:[%s3 + $0x8] sm:$0xff]
    %348 = vset.pattern.permute.xlu0 0
    %349 = vperm.xlu0 %348, %v345
    %v350 = vpop.permute.xlu0 %349
    %353 = vset.pattern.permute.xlu0 0
    %354 = vperm.xlu0 %353, %v346
    %v355 = vpop.permute.xlu0 %354
    %v359 = vunpack.c.l.b16 %v341
    %v360 = vunpack.c.l.b16 %v342
    %v361 = vpack.c.b16 %v360, %v359
    %364 = vrot.lane.b32.xlu0 %v343, 112
    %v365 = vpop.permute.xlu0 %364
    %366 = vrot.lane.b32.xlu0 %v344, 112
    %v367 = vpop.permute.xlu0 %366
    %v370 = vsel %vm120, %v361, 0
    %v373 = vand.u32 %v367, %v125
    %375 = vmatprep.subr.bf16.mxu0 0
    %376 = vmatpush1.bf16.msra.mxu0 0
    %377 = vmatprep.subr.bf16.mxu0 0
    %378 = vmatpush1.bf16.msra.mxu0 0
    %379 = vmatprep.subr.bf16.mxu0 0
    %380 = vmatpush1.bf16.msra.mxu0 0
    %381 = vmatprep.subr.bf16.mxu0 0
    %382 = vmatpush1.bf16.msra.mxu0 0
    %383 = vmatprep.subr.bf16.mxu0 0
    %384 = vmatpush1.bf16.msra.mxu0 0
    %385 = vmatprep.subr.bf16.mxu0 0
    %386 = vmatpush1.bf16.msra.mxu0 0
    %387 = vmatprep.subr.bf16.mxu0 0
    %388 = vmatpush1.bf16.msra.mxu0 %v373
    %389 = vmatprep.subr.bf16.mxu0 0
    %390 = vmatpush1.bf16.msra.mxu0 %v365
    %391 = vmatprep.subr.bf16.mxu0 0
    %392 = vmatpush2.bf16.msra.mxu0 0
    %393 = vmatprep.subr.bf16.mxu0 0
    %394 = vmatpush2.bf16.msra.mxu0 0
    %395 = vmatprep.subr.bf16.mxu0 0
    %396 = vmatpush2.bf16.msra.mxu0 0
    %397 = vmatprep.subr.bf16.mxu0 0
    %398 = vmatpush2.bf16.msra.mxu0 0
    %399 = vmatprep.subr.bf16.mxu0 0
    %400 = vmatpush2.bf16.msra.mxu0 0
    %401 = vmatprep.subr.bf16.mxu0 0
    %402 = vmatpush2.bf16.msra.mxu0 0
    %403 = vmatprep.subr.bf16.mxu0 0
    %404 = vmatpush2.bf16.msra.mxu0 0
    %405 = vmatprep.subr.bf16.mxu0 0
    %406 = vmatpush2.bf16.msra.mxu0 0
    %407 = vmatprep.mubr.bf16.mxu0 0
    %408 = vmatmul.mubr.bf16.gmra.mxu0 %v370
    %v409 = vpop.f32.mrf.mxu0
    %v410 = vadd.f32 %v350, %v409
    %v411 = vpop.f32.mrf.mxu0
    %v412 = vpop.f32.mrf.mxu0
    %v413 = vadd.f32 %v355, %v412
    %v414 = vpop.f32.mrf.mxu0
    %415 = vdwg.mxu0
    %s416 = sld [smem:[#allocation3]]
    %vm417 = vcmp.gt.f32.partialorder %v410, 0.0
    %vm418 = vcmp.gt.f32.partialorder %v413, 0.0
    %v419 = vstv %s416
    %v420 = vmul.f32 %v419, %v410
    %v421 = vmul.f32 %v419, %v413
    %v422 = vsel %vm417, %v410, %v420
    %v423 = vsel %vm418, %v413, %v421
    %v424 = vrot.slane %v301, 5
    %425 = vrot.lane.b32.xlu0 %v424, 127
    %v426 = vpop.permute.xlu0 %425
    %v428 = vrot.slane %v302, 2
    %429 = vrot.lane.b32.xlu0 %v428, 127
    %v430 = vpop.permute.xlu0 %429
    %v432 = vrot.slane %v302, 7
    %433 = vrot.lane.b32.xlu0 %v432, 120
    %v434 = vpop.permute.xlu0 %433
    %v436 = vrot.slane %v301, 4
    %437 = vrot.lane.b32.xlu0 %v436, 119
    %v438 = vpop.permute.xlu0 %437
    %v440 = vrot.slane %v302, 1
    %441 = vrot.lane.b32.xlu0 %v440, 119
    %v442 = vpop.permute.xlu0 %441
    %v444 = vrot.slane %v302, 6
    %445 = vrot.lane.b32.xlu0 %v444, 112
    %v446 = vpop.permute.xlu0 %445
    %v448 = vrot.slane %v301, 3
    %449 = vrot.lane.b32.xlu0 %v448, 111
    %v450 = vpop.permute.xlu0 %449
    %452 = vrot.lane.b32.xlu0 %v302, 111
    %v453 = vpop.permute.xlu0 %452
    %v455 = vsel %vm85, %v302, %v426
    %v456 = vsel %vm87, %v455, %v430
    %v457 = vsel %vm89, %v430, %v434
    %v458 = vsel %vm91, %v457, %v438
    %v459 = vsel %vm93, %v458, %v442
    %v460 = vsel %vm95, %v442, %v446
    %v461 = vsel %vm97, %v460, %v450
    %v462 = vpack.c.bf16 %v459, %v456
    %v463 = vpack.c.bf16 %v453, %v461
    %466 = vrot.lane.b32.xlu0 %v462, 112
    %v467 = vpop.permute.xlu0 %466
    %468 = vrot.lane.b32.xlu0 %v463, 112
    %v469 = vpop.permute.xlu0 %468
    %v472 = vand.u32 %v469, %v125
    %474 = vmatprep.subr.bf16.mxu0 0
    %475 = vmatpush1.bf16.msra.mxu0 0
    %476 = vmatprep.subr.bf16.mxu0 0
    %477 = vmatpush1.bf16.msra.mxu0 0
    %478 = vmatprep.subr.bf16.mxu0 0
    %479 = vmatpush1.bf16.msra.mxu0 0
    %480 = vmatprep.subr.bf16.mxu0 0
    %481 = vmatpush1.bf16.msra.mxu0 0
    %482 = vmatprep.subr.bf16.mxu0 0
    %483 = vmatpush1.bf16.msra.mxu0 0
    %484 = vmatprep.subr.bf16.mxu0 0
    %485 = vmatpush1.bf16.msra.mxu0 0
    %486 = vmatprep.subr.bf16.mxu0 0
    %487 = vmatpush1.bf16.msra.mxu0 %v472
    %488 = vmatprep.subr.bf16.mxu0 0
    %489 = vmatpush1.bf16.msra.mxu0 %v467
    %490 = vmatprep.subr.bf16.mxu0 0
    %491 = vmatpush2.bf16.msra.mxu0 0
    %492 = vmatprep.subr.bf16.mxu0 0
    %493 = vmatpush2.bf16.msra.mxu0 0
    %494 = vmatprep.subr.bf16.mxu0 0
    %495 = vmatpush2.bf16.msra.mxu0 0
    %496 = vmatprep.subr.bf16.mxu0 0
    %497 = vmatpush2.bf16.msra.mxu0 0
    %498 = vmatprep.subr.bf16.mxu0 0
    %499 = vmatpush2.bf16.msra.mxu0 0
    %500 = vmatprep.subr.bf16.mxu0 0
    %501 = vmatpush2.bf16.msra.mxu0 0
    %502 = vmatprep.subr.bf16.mxu0 0
    %503 = vmatpush2.bf16.msra.mxu0 0
    %504 = vmatprep.subr.bf16.mxu0 0
    %505 = vmatpush2.bf16.msra.mxu0 0
    %506 = vmatprep.mubr.bf16.mxu0 0
    %507 = vmatmul.mubr.bf16.gmra.mxu0 %v370
    %v508 = vpop.f32.mrf.mxu0
    %v509 = vadd.f32 %v350, %v508
    %v510 = vpop.f32.mrf.mxu0
    %v511 = vpop.f32.mrf.mxu0
    %v512 = vadd.f32 %v355, %v511
    %v513 = vpop.f32.mrf.mxu0
    %514 = vdwg.mxu0
    %vm515 = vcmp.gt.f32.partialorder %v509, 0.0
    %vm516 = vcmp.gt.f32.partialorder %v512, 0.0
    %v517 = vmul.f32 %v419, %v509
    %v518 = vmul.f32 %v419, %v512
    %v519 = vsel %vm515, %v509, %v517
    %v520 = vsel %vm516, %v512, %v518
    %523 = vrot.lane.b32.xlu0 %v422, 120
    %v524 = vpop.permute.xlu0 %523
    %525 = vrot.lane.b32.xlu0 %v423, 120
    %v526 = vpop.permute.xlu0 %525
    %v529 = vmax.f32 %v422, %v524
    %v530 = vmax.f32 %v423, %v526
    %v531 = vmax.f32 %v529, %v519
    %v532 = vmax.f32 %v530, %v520
    %535 = vrot.lane.b32.xlu0 %v519, 120
    %v536 = vpop.permute.xlu0 %535
    %537 = vrot.lane.b32.xlu0 %v520, 120
    %v538 = vpop.permute.xlu0 %537
    %v541 = vmax.f32 %v531, %v536
    %v542 = vmax.f32 %v532, %v538
    %v543 = vpack.c.bf16 %v542, %v541
    %v545 = vunpack.c.l.b16 %v543
    %v546 = vunpack.c.h.b16 %v543
    %v547 = vpack.c.b16 %v545, %v545
    %v548 = vpack.c.b16 %v546, %v546
    %549 = vrot.lane.b32.xlu0 %v547, 7
    %v550 = vpop.permute.xlu0 %549
    %551 = vrot.lane.b32.xlu0 %v548, 7
    %v552 = vpop.permute.xlu0 %551
    %vm555 = vcmask 109624
    %556 = vst.msk [vmem:[#allocation2] sm:$0xf] %vm555, %v550
    %557 = vst.msk [vmem:[#allocation2 + $0x4] sm:$0xf] %vm555, %v552
    %v558 = vld [vmem:[%s0] sm:$0x7]
    %v559 = vld [vmem:[%s1] sm:$0x7]
    %v561 = vrot.slane %v559, 5
    %v564 = vrot.slane %v558, 2
    %565 = vrot.lane.b32.xlu0 %v564, 127
    %v566 = vpop.permute.xlu0 %565
    %v568 = vrot.slane %v558, 7
    %569 = vrot.lane.b32.xlu0 %v568, 120
    %v570 = vpop.permute.xlu0 %569
    %v572 = vrot.slane %v559, 4
    %573 = vrot.lane.b32.xlu0 %v572, 120
    %v574 = vpop.permute.xlu0 %573
    %v576 = vrot.slane %v558, 1
    %577 = vrot.lane.b32.xlu0 %v576, 119
    %v578 = vpop.permute.xlu0 %577
    %v580 = vrot.slane %v558, 6
    %581 = vrot.lane.b32.xlu0 %v580, 112
    %v582 = vpop.permute.xlu0 %581
    %v584 = vrot.slane %v559, 3
    %585 = vrot.lane.b32.xlu0 %v584, 112
    %v586 = vpop.permute.xlu0 %585
    %588 = vrot.lane.b32.xlu0 %v558, 111
    %v589 = vpop.permute.xlu0 %588
    %v591 = vsel %vm85, %v558, %v561
    %v592 = vsel %vm87, %v591, %v566
    %v593 = vsel %vm89, %v566, %v570
    %v594 = vsel %vm91, %v593, %v574
    %v595 = vsel %vm93, %v594, %v578
    %v596 = vsel %vm95, %v578, %v582
    %v597 = vsel %vm97, %v596, %v586
    %v598 = vld [vmem:[%s2] sm:$0xf]
    %v599 = vld [vmem:[%s2 + $0x4] sm:$0xf]
    %v600 = vpack.c.bf16 %v595, %v592
    %v601 = vpack.c.bf16 %v589, %v597
    %v602 = vld [vmem:[%s3] sm:$0xff]
    %v603 = vld [vmem:[%s3 + $0x8] sm:$0xff]
    %605 = vset.pattern.permute.xlu0 0
    %606 = vperm.xlu0 %605, %v602
    %v607 = vpop.permute.xlu0 %606
    %610 = vset.pattern.permute.xlu0 0
    %611 = vperm.xlu0 %610, %v603
    %v612 = vpop.permute.xlu0 %611
    %v616 = vunpack.c.l.b16 %v598
    %v617 = vunpack.c.l.b16 %v599
    %v618 = vpack.c.b16 %v617, %v616
    %621 = vrot.lane.b32.xlu0 %v600, 96
    %v622 = vpop.permute.xlu0 %621
    %623 = vrot.lane.b32.xlu0 %v601, 96
    %v624 = vpop.permute.xlu0 %623
    %v627 = vsel %vm120, %v618, 0
    %v630 = vand.u32 %v624, %v125
    %632 = vmatprep.subr.bf16.mxu0 0
    %633 = vmatpush1.bf16.msra.mxu0 0
    %634 = vmatprep.subr.bf16.mxu0 0
    %635 = vmatpush1.bf16.msra.mxu0 0
    %636 = vmatprep.subr.bf16.mxu0 0
    %637 = vmatpush1.bf16.msra.mxu0 0
    %638 = vmatprep.subr.bf16.mxu0 0
    %639 = vmatpush1.bf16.msra.mxu0 0
    %640 = vmatprep.subr.bf16.mxu0 0
    %641 = vmatpush1.bf16.msra.mxu0 0
    %642 = vmatprep.subr.bf16.mxu0 0
    %643 = vmatpush1.bf16.msra.mxu0 0
    %644 = vmatprep.subr.bf16.mxu0 0
    %645 = vmatpush1.bf16.msra.mxu0 %v630
    %646 = vmatprep.subr.bf16.mxu0 0
    %647 = vmatpush1.bf16.msra.mxu0 %v622
    %648 = vmatprep.subr.bf16.mxu0 0
    %649 = vmatpush2.bf16.msra.mxu0 0
    %650 = vmatprep.subr.bf16.mxu0 0
    %651 = vmatpush2.bf16.msra.mxu0 0
    %652 = vmatprep.subr.bf16.mxu0 0
    %653 = vmatpush2.bf16.msra.mxu0 0
    %654 = vmatprep.subr.bf16.mxu0 0
    %655 = vmatpush2.bf16.msra.mxu0 0
    %656 = vmatprep.subr.bf16.mxu0 0
    %657 = vmatpush2.bf16.msra.mxu0 0
    %658 = vmatprep.subr.bf16.mxu0 0
    %659 = vmatpush2.bf16.msra.mxu0 0
    %660 = vmatprep.subr.bf16.mxu0 0
    %661 = vmatpush2.bf16.msra.mxu0 0
    %662 = vmatprep.subr.bf16.mxu0 0
    %663 = vmatpush2.bf16.msra.mxu0 0
    %664 = vmatprep.mubr.bf16.mxu0 0
    %665 = vmatmul.mubr.bf16.gmra.mxu0 %v627
    %v666 = vpop.f32.mrf.mxu0
    %v667 = vadd.f32 %v607, %v666
    %v668 = vpop.f32.mrf.mxu0
    %v669 = vpop.f32.mrf.mxu0
    %v670 = vadd.f32 %v612, %v669
    %v671 = vpop.f32.mrf.mxu0
    %672 = vdwg.mxu0
    %s673 = sld [smem:[#allocation3]]
    %vm674 = vcmp.gt.f32.partialorder %v667, 0.0
    %vm675 = vcmp.gt.f32.partialorder %v670, 0.0
    %v676 = vstv %s673
    %v677 = vmul.f32 %v676, %v667
    %v678 = vmul.f32 %v676, %v670
    %v679 = vsel %vm674, %v667, %v677
    %v680 = vsel %vm675, %v670, %v678
    %v681 = vrot.slane %v558, 5
    %682 = vrot.lane.b32.xlu0 %v681, 127
    %v683 = vpop.permute.xlu0 %682
    %v685 = vrot.slane %v559, 2
    %686 = vrot.lane.b32.xlu0 %v685, 127
    %v687 = vpop.permute.xlu0 %686
    %v689 = vrot.slane %v559, 7
    %690 = vrot.lane.b32.xlu0 %v689, 120
    %v691 = vpop.permute.xlu0 %690
    %v693 = vrot.slane %v558, 4
    %694 = vrot.lane.b32.xlu0 %v693, 119
    %v695 = vpop.permute.xlu0 %694
    %v697 = vrot.slane %v559, 1
    %698 = vrot.lane.b32.xlu0 %v697, 119
    %v699 = vpop.permute.xlu0 %698
    %v701 = vrot.slane %v559, 6
    %702 = vrot.lane.b32.xlu0 %v701, 112
    %v703 = vpop.permute.xlu0 %702
    %v705 = vrot.slane %v558, 3
    %706 = vrot.lane.b32.xlu0 %v705, 111
    %v707 = vpop.permute.xlu0 %706
    %709 = vrot.lane.b32.xlu0 %v559, 111
    %v710 = vpop.permute.xlu0 %709
    %v712 = vsel %vm85, %v559, %v683
    %v713 = vsel %vm87, %v712, %v687
    %v714 = vsel %vm89, %v687, %v691
    %v715 = vsel %vm91, %v714, %v695
    %v716 = vsel %vm93, %v715, %v699
    %v717 = vsel %vm95, %v699, %v703
    %v718 = vsel %vm97, %v717, %v707
    %v719 = vpack.c.bf16 %v716, %v713
    %v720 = vpack.c.bf16 %v710, %v718
    %723 = vrot.lane.b32.xlu0 %v719, 96
    %v724 = vpop.permute.xlu0 %723
    %725 = vrot.lane.b32.xlu0 %v720, 96
    %v726 = vpop.permute.xlu0 %725
    %v729 = vand.u32 %v726, %v125
    %731 = vmatprep.subr.bf16.mxu0 0
    %732 = vmatpush1.bf16.msra.mxu0 0
    %733 = vmatprep.subr.bf16.mxu0 0
    %734 = vmatpush1.bf16.msra.mxu0 0
    %735 = vmatprep.subr.bf16.mxu0 0
    %736 = vmatpush1.bf16.msra.mxu0 0
    %737 = vmatprep.subr.bf16.mxu0 0
    %738 = vmatpush1.bf16.msra.mxu0 0
    %739 = vmatprep.subr.bf16.mxu0 0
    %740 = vmatpush1.bf16.msra.mxu0 0
    %741 = vmatprep.subr.bf16.mxu0 0
    %742 = vmatpush1.bf16.msra.mxu0 0
    %743 = vmatprep.subr.bf16.mxu0 0
    %744 = vmatpush1.bf16.msra.mxu0 %v729
    %745 = vmatprep.subr.bf16.mxu0 0
    %746 = vmatpush1.bf16.msra.mxu0 %v724
    %747 = vmatprep.subr.bf16.mxu0 0
    %748 = vmatpush2.bf16.msra.mxu0 0
    %749 = vmatprep.subr.bf16.mxu0 0
    %750 = vmatpush2.bf16.msra.mxu0 0
    %751 = vmatprep.subr.bf16.mxu0 0
    %752 = vmatpush2.bf16.msra.mxu0 0
    %753 = vmatprep.subr.bf16.mxu0 0
    %754 = vmatpush2.bf16.msra.mxu0 0
    %755 = vmatprep.subr.bf16.mxu0 0
    %756 = vmatpush2.bf16.msra.mxu0 0
    %757 = vmatprep.subr.bf16.mxu0 0
    %758 = vmatpush2.bf16.msra.mxu0 0
    %759 = vmatprep.subr.bf16.mxu0 0
    %760 = vmatpush2.bf16.msra.mxu0 0
    %761 = vmatprep.subr.bf16.mxu0 0
    %762 = vmatpush2.bf16.msra.mxu0 0
    %763 = vmatprep.mubr.bf16.mxu0 0
    %764 = vmatmul.mubr.bf16.gmra.mxu0 %v627
    %v765 = vpop.f32.mrf.mxu0
    %v766 = vadd.f32 %v607, %v765
    %v767 = vpop.f32.mrf.mxu0
    %v768 = vpop.f32.mrf.mxu0
    %v769 = vadd.f32 %v612, %v768
    %v770 = vpop.f32.mrf.mxu0
    %771 = vdwg.mxu0
    %vm772 = vcmp.gt.f32.partialorder %v766, 0.0
    %vm773 = vcmp.gt.f32.partialorder %v769, 0.0
    %v774 = vmul.f32 %v676, %v766
    %v775 = vmul.f32 %v676, %v769
    %v776 = vsel %vm772, %v766, %v774
    %v777 = vsel %vm773, %v769, %v775
    %780 = vrot.lane.b32.xlu0 %v679, 120
    %v781 = vpop.permute.xlu0 %780
    %782 = vrot.lane.b32.xlu0 %v680, 120
    %v783 = vpop.permute.xlu0 %782
    %v786 = vmax.f32 %v679, %v781
    %v787 = vmax.f32 %v680, %v783
    %v788 = vmax.f32 %v786, %v776
    %v789 = vmax.f32 %v787, %v777
    %792 = vrot.lane.b32.xlu0 %v776, 120
    %v793 = vpop.permute.xlu0 %792
    %794 = vrot.lane.b32.xlu0 %v777, 120
    %v795 = vpop.permute.xlu0 %794
    %v798 = vmax.f32 %v788, %v793
    %v799 = vmax.f32 %v789, %v795
    %v800 = vpack.c.bf16 %v799, %v798
    %v802 = vunpack.c.l.b16 %v800
    %v803 = vunpack.c.h.b16 %v800
    %v804 = vpack.c.b16 %v802, %v802
    %v805 = vpack.c.b16 %v803, %v803
    %806 = vrot.lane.b32.xlu0 %v804, 14
    %v807 = vpop.permute.xlu0 %806
    %808 = vrot.lane.b32.xlu0 %v805, 14
    %v809 = vpop.permute.xlu0 %808
    %vm812 = vcmask 167024
    %813 = vst.msk [vmem:[#allocation2] sm:$0xf] %vm812, %v807
    %814 = vst.msk [vmem:[#allocation2 + $0x4] sm:$0xf] %vm812, %v809
    %v815 = vld [vmem:[%s0] sm:$0x7]
    %v816 = vld [vmem:[%s1] sm:$0x7]
    %v818 = vrot.slane %v816, 5
    %v821 = vrot.slane %v815, 2
    %822 = vrot.lane.b32.xlu0 %v821, 127
    %v823 = vpop.permute.xlu0 %822
    %v825 = vrot.slane %v815, 7
    %826 = vrot.lane.b32.xlu0 %v825, 120
    %v827 = vpop.permute.xlu0 %826
    %v829 = vrot.slane %v816, 4
    %830 = vrot.lane.b32.xlu0 %v829, 120
    %v831 = vpop.permute.xlu0 %830
    %v833 = vrot.slane %v815, 1
    %834 = vrot.lane.b32.xlu0 %v833, 119
    %v835 = vpop.permute.xlu0 %834
    %v837 = vrot.slane %v815, 6
    %838 = vrot.lane.b32.xlu0 %v837, 112
    %v839 = vpop.permute.xlu0 %838
    %v841 = vrot.slane %v816, 3
    %842 = vrot.lane.b32.xlu0 %v841, 112
    %v843 = vpop.permute.xlu0 %842
    %845 = vrot.lane.b32.xlu0 %v815, 111
    %v846 = vpop.permute.xlu0 %845
    %v848 = vsel %vm85, %v815, %v818
    %v849 = vsel %vm87, %v848, %v823
    %v850 = vsel %vm89, %v823, %v827
    %v851 = vsel %vm91, %v850, %v831
    %v852 = vsel %vm93, %v851, %v835
    %v853 = vsel %vm95, %v835, %v839
    %v854 = vsel %vm97, %v853, %v843
    %v855 = vld [vmem:[%s2] sm:$0xf]
    %v856 = vld [vmem:[%s2 + $0x4] sm:$0xf]
    %v857 = vpack.c.bf16 %v852, %v849
    %v858 = vpack.c.bf16 %v846, %v854
    %v859 = vld [vmem:[%s3] sm:$0xff]
    %v860 = vld [vmem:[%s3 + $0x8] sm:$0xff]
    %862 = vset.pattern.permute.xlu0 0
    %863 = vperm.xlu0 %862, %v859
    %v864 = vpop.permute.xlu0 %863
    %867 = vset.pattern.permute.xlu0 0
    %868 = vperm.xlu0 %867, %v860
    %v869 = vpop.permute.xlu0 %868
    %v873 = vunpack.c.l.b16 %v855
    %v874 = vunpack.c.l.b16 %v856
    %v875 = vpack.c.b16 %v874, %v873
    %878 = vrot.lane.b32.xlu0 %v857, 80
    %v879 = vpop.permute.xlu0 %878
    %880 = vrot.lane.b32.xlu0 %v858, 80
    %v881 = vpop.permute.xlu0 %880
    %v884 = vsel %vm120, %v875, 0
    %v887 = vand.u32 %v881, %v125
    %889 = vmatprep.subr.bf16.mxu0 0
    %890 = vmatpush1.bf16.msra.mxu0 0
    %891 = vmatprep.subr.bf16.mxu0 0
    %892 = vmatpush1.bf16.msra.mxu0 0
    %893 = vmatprep.subr.bf16.mxu0 0
    %894 = vmatpush1.bf16.msra.mxu0 0
    %895 = vmatprep.subr.bf16.mxu0 0
    %896 = vmatpush1.bf16.msra.mxu0 0
    %897 = vmatprep.subr.bf16.mxu0 0
    %898 = vmatpush1.bf16.msra.mxu0 0
    %899 = vmatprep.subr.bf16.mxu0 0
    %900 = vmatpush1.bf16.msra.mxu0 0
    %901 = vmatprep.subr.bf16.mxu0 0
    %902 = vmatpush1.bf16.msra.mxu0 %v887
    %903 = vmatprep.subr.bf16.mxu0 0
    %904 = vmatpush1.bf16.msra.mxu0 %v879
    %905 = vmatprep.subr.bf16.mxu0 0
    %906 = vmatpush2.bf16.msra.mxu0 0
    %907 = vmatprep.subr.bf16.mxu0 0
    %908 = vmatpush2.bf16.msra.mxu0 0
    %909 = vmatprep.subr.bf16.mxu0 0
    %910 = vmatpush2.bf16.msra.mxu0 0
    %911 = vmatprep.subr.bf16.mxu0 0
    %912 = vmatpush2.bf16.msra.mxu0 0
    %913 = vmatprep.subr.bf16.mxu0 0
    %914 = vmatpush2.bf16.msra.mxu0 0
    %915 = vmatprep.subr.bf16.mxu0 0
    %916 = vmatpush2.bf16.msra.mxu0 0
    %917 = vmatprep.subr.bf16.mxu0 0
    %918 = vmatpush2.bf16.msra.mxu0 0
    %919 = vmatprep.subr.bf16.mxu0 0
    %920 = vmatpush2.bf16.msra.mxu0 0
    %921 = vmatprep.mubr.bf16.mxu0 0
    %922 = vmatmul.mubr.bf16.gmra.mxu0 %v884
    %v923 = vpop.f32.mrf.mxu0
    %v924 = vadd.f32 %v864, %v923
    %v925 = vpop.f32.mrf.mxu0
    %v926 = vpop.f32.mrf.mxu0
    %v927 = vadd.f32 %v869, %v926
    %v928 = vpop.f32.mrf.mxu0
    %929 = vdwg.mxu0
    %s930 = sld [smem:[#allocation3]]
    %vm931 = vcmp.gt.f32.partialorder %v924, 0.0
    %vm932 = vcmp.gt.f32.partialorder %v927, 0.0
    %v933 = vstv %s930
    %v934 = vmul.f32 %v933, %v924
    %v935 = vmul.f32 %v933, %v927
    %v936 = vsel %vm931, %v924, %v934
    %v937 = vsel %vm932, %v927, %v935
    %v938 = vrot.slane %v815, 5
    %939 = vrot.lane.b32.xlu0 %v938, 127
    %v940 = vpop.permute.xlu0 %939
    %v942 = vrot.slane %v816, 2
    %943 = vrot.lane.b32.xlu0 %v942, 127
    %v944 = vpop.permute.xlu0 %943
    %v946 = vrot.slane %v816, 7
    %947 = vrot.lane.b32.xlu0 %v946, 120
    %v948 = vpop.permute.xlu0 %947
    %v950 = vrot.slane %v815, 4
    %951 = vrot.lane.b32.xlu0 %v950, 119
    %v952 = vpop.permute.xlu0 %951
    %v954 = vrot.slane %v816, 1
    %955 = vrot.lane.b32.xlu0 %v954, 119
    %v956 = vpop.permute.xlu0 %955
    %v958 = vrot.slane %v816, 6
    %959 = vrot.lane.b32.xlu0 %v958, 112
    %v960 = vpop.permute.xlu0 %959
    %v962 = vrot.slane %v815, 3
    %963 = vrot.lane.b32.xlu0 %v962, 111
    %v964 = vpop.permute.xlu0 %963
    %966 = vrot.lane.b32.xlu0 %v816, 111
    %v967 = vpop.permute.xlu0 %966
    %v969 = vsel %vm85, %v816, %v940
    %v970 = vsel %vm87, %v969, %v944
    %v971 = vsel %vm89, %v944, %v948
    %v972 = vsel %vm91, %v971, %v952
    %v973 = vsel %vm93, %v972, %v956
    %v974 = vsel %vm95, %v956, %v960
    %v975 = vsel %vm97, %v974, %v964
    %v976 = vpack.c.bf16 %v973, %v970
    %v977 = vpack.c.bf16 %v967, %v975
    %980 = vrot.lane.b32.xlu0 %v976, 80
    %v981 = vpop.permute.xlu0 %980
    %982 = vrot.lane.b32.xlu0 %v977, 80
    %v983 = vpop.permute.xlu0 %982
    %v986 = vand.u32 %v983, %v125
    %988 = vmatprep.subr.bf16.mxu0 0
    %989 = vmatpush1.bf16.msra.mxu0 0
    %990 = vmatprep.subr.bf16.mxu0 0
    %991 = vmatpush1.bf16.msra.mxu0 0
    %992 = vmatprep.subr.bf16.mxu0 0
    %993 = vmatpush1.bf16.msra.mxu0 0
    %994 = vmatprep.subr.bf16.mxu0 0
    %995 = vmatpush1.bf16.msra.mxu0 0
    %996 = vmatprep.subr.bf16.mxu0 0
    %997 = vmatpush1.bf16.msra.mxu0 0
    %998 = vmatprep.subr.bf16.mxu0 0
    %999 = vmatpush1.bf16.msra.mxu0 0
    %1000 = vmatprep.subr.bf16.mxu0 0
    %1001 = vmatpush1.bf16.msra.mxu0 %v986
    %1002 = vmatprep.subr.bf16.mxu0 0
    %1003 = vmatpush1.bf16.msra.mxu0 %v981
    %1004 = vmatprep.subr.bf16.mxu0 0
    %1005 = vmatpush2.bf16.msra.mxu0 0
    %1006 = vmatprep.subr.bf16.mxu0 0
    %1007 = vmatpush2.bf16.msra.mxu0 0
    %1008 = vmatprep.subr.bf16.mxu0 0
    %1009 = vmatpush2.bf16.msra.mxu0 0
    %1010 = vmatprep.subr.bf16.mxu0 0
    %1011 = vmatpush2.bf16.msra.mxu0 0
    %1012 = vmatprep.subr.bf16.mxu0 0
    %1013 = vmatpush2.bf16.msra.mxu0 0
    %1014 = vmatprep.subr.bf16.mxu0 0
    %1015 = vmatpush2.bf16.msra.mxu0 0
    %1016 = vmatprep.subr.bf16.mxu0 0
    %1017 = vmatpush2.bf16.msra.mxu0 0
    %1018 = vmatprep.subr.bf16.mxu0 0
    %1019 = vmatpush2.bf16.msra.mxu0 0
    %1020 = vmatprep.mubr.bf16.mxu0 0
    %1021 = vmatmul.mubr.bf16.gmra.mxu0 %v884
    %v1022 = vpop.f32.mrf.mxu0
    %v1023 = vadd.f32 %v864, %v1022
    %v1024 = vpop.f32.mrf.mxu0
    %v1025 = vpop.f32.mrf.mxu0
    %v1026 = vadd.f32 %v869, %v1025
    %v1027 = vpop.f32.mrf.mxu0
    %1028 = vdwg.mxu0
    %vm1029 = vcmp.gt.f32.partialorder %v1023, 0.0
    %vm1030 = vcmp.gt.f32.partialorder %v1026, 0.0
    %v1031 = vmul.f32 %v933, %v1023
    %v1032 = vmul.f32 %v933, %v1026
    %v1033 = vsel %vm1029, %v1023, %v1031
    %v1034 = vsel %vm1030, %v1026, %v1032
    %1037 = vrot.lane.b32.xlu0 %v936, 120
    %v1038 = vpop.permute.xlu0 %1037
    %1039 = vrot.lane.b32.xlu0 %v937, 120
    %v1040 = vpop.permute.xlu0 %1039
    %v1043 = vmax.f32 %v936, %v1038
    %v1044 = vmax.f32 %v937, %v1040
    %v1045 = vmax.f32 %v1043, %v1033
    %v1046 = vmax.f32 %v1044, %v1034
    %1049 = vrot.lane.b32.xlu0 %v1033, 120
    %v1050 = vpop.permute.xlu0 %1049
    %1051 = vrot.lane.b32.xlu0 %v1034, 120
    %v1052 = vpop.permute.xlu0 %1051
    %v1055 = vmax.f32 %v1045, %v1050
    %v1056 = vmax.f32 %v1046, %v1052
    %v1057 = vpack.c.bf16 %v1056, %v1055
    %v1059 = vunpack.c.l.b16 %v1057
    %v1060 = vunpack.c.h.b16 %v1057
    %v1061 = vpack.c.b16 %v1059, %v1059
    %v1062 = vpack.c.b16 %v1060, %v1060
    %1063 = vrot.lane.b32.xlu0 %v1061, 21
    %v1064 = vpop.permute.xlu0 %1063
    %1065 = vrot.lane.b32.xlu0 %v1062, 21
    %v1066 = vpop.permute.xlu0 %1065
    %vm1069 = vcmask 224424
    %1070 = vst.msk [vmem:[#allocation2] sm:$0xf] %vm1069, %v1064
    %1071 = vst.msk [vmem:[#allocation2 + $0x4] sm:$0xf] %vm1069, %v1066
    %v1072 = vld [vmem:[%s0] sm:$0x7]
    %v1073 = vld [vmem:[%s1] sm:$0x7]
    %v1075 = vrot.slane %v1073, 5
    %v1078 = vrot.slane %v1072, 2
    %1079 = vrot.lane.b32.xlu0 %v1078, 127
    %v1080 = vpop.permute.xlu0 %1079
    %v1082 = vrot.slane %v1072, 7
    %1083 = vrot.lane.b32.xlu0 %v1082, 120
    %v1084 = vpop.permute.xlu0 %1083
    %v1086 = vrot.slane %v1073, 4
    %1087 = vrot.lane.b32.xlu0 %v1086, 120
    %v1088 = vpop.permute.xlu0 %1087
    %v1090 = vrot.slane %v1072, 1
    %1091 = vrot.lane.b32.xlu0 %v1090, 119
    %v1092 = vpop.permute.xlu0 %1091
    %v1094 = vrot.slane %v1072, 6
    %1095 = vrot.lane.b32.xlu0 %v1094, 112
    %v1096 = vpop.permute.xlu0 %1095
    %v1098 = vrot.slane %v1073, 3
    %1099 = vrot.lane.b32.xlu0 %v1098, 112
    %v1100 = vpop.permute.xlu0 %1099
    %1102 = vrot.lane.b32.xlu0 %v1072, 111
    %v1103 = vpop.permute.xlu0 %1102
    %v1105 = vsel %vm85, %v1072, %v1075
    %v1106 = vsel %vm87, %v1105, %v1080
    %v1107 = vsel %vm89, %v1080, %v1084
    %v1108 = vsel %vm91, %v1107, %v1088
    %v1109 = vsel %vm93, %v1108, %v1092
    %v1110 = vsel %vm95, %v1092, %v1096
    %v1111 = vsel %vm97, %v1110, %v1100
    %v1112 = vld [vmem:[%s2] sm:$0xf]
    %v1113 = vld [vmem:[%s2 + $0x4] sm:$0xf]
    %v1114 = vpack.c.bf16 %v1109, %v1106
    %v1115 = vpack.c.bf16 %v1103, %v1111
    %v1116 = vld [vmem:[%s3] sm:$0xff]
    %v1117 = vld [vmem:[%s3 + $0x8] sm:$0xff]
    %1119 = vset.pattern.permute.xlu0 0
    %1120 = vperm.xlu0 %1119, %v1116
    %v1121 = vpop.permute.xlu0 %1120
    %1124 = vset.pattern.permute.xlu0 0
    %1125 = vperm.xlu0 %1124, %v1117
    %v1126 = vpop.permute.xlu0 %1125
    %v1130 = vunpack.c.l.b16 %v1112
    %v1131 = vunpack.c.l.b16 %v1113
    %v1132 = vpack.c.b16 %v1131, %v1130
    %1135 = vrot.lane.b32.xlu0 %v1114, 64
    %v1136 = vpop.permute.xlu0 %1135
    %1137 = vrot.lane.b32.xlu0 %v1115, 64
    %v1138 = vpop.permute.xlu0 %1137
    %v1141 = vsel %vm120, %v1132, 0
    %v1144 = vand.u32 %v1138, %v125
    %1146 = vmatprep.subr.bf16.mxu0 0
    %1147 = vmatpush1.bf16.msra.mxu0 0
    %1148 = vmatprep.subr.bf16.mxu0 0
    %1149 = vmatpush1.bf16.msra.mxu0 0
    %1150 = vmatprep.subr.bf16.mxu0 0
    %1151 = vmatpush1.bf16.msra.mxu0 0
    %1152 = vmatprep.subr.bf16.mxu0 0
    %1153 = vmatpush1.bf16.msra.mxu0 0
    %1154 = vmatprep.subr.bf16.mxu0 0
    %1155 = vmatpush1.bf16.msra.mxu0 0
    %1156 = vmatprep.subr.bf16.mxu0 0
    %1157 = vmatpush1.bf16.msra.mxu0 0
    %1158 = vmatprep.subr.bf16.mxu0 0
    %1159 = vmatpush1.bf16.msra.mxu0 %v1144
    %1160 = vmatprep.subr.bf16.mxu0 0
    %1161 = vmatpush1.bf16.msra.mxu0 %v1136
    %1162 = vmatprep.subr.bf16.mxu0 0
    %1163 = vmatpush2.bf16.msra.mxu0 0
    %1164 = vmatprep.subr.bf16.mxu0 0
    %1165 = vmatpush2.bf16.msra.mxu0 0
    %1166 = vmatprep.subr.bf16.mxu0 0
    %1167 = vmatpush2.bf16.msra.mxu0 0
    %1168 = vmatprep.subr.bf16.mxu0 0
    %1169 = vmatpush2.bf16.msra.mxu0 0
    %1170 = vmatprep.subr.bf16.mxu0 0
    %1171 = vmatpush2.bf16.msra.mxu0 0
    %1172 = vmatprep.subr.bf16.mxu0 0
    %1173 = vmatpush2.bf16.msra.mxu0 0
    %1174 = vmatprep.subr.bf16.mxu0 0
    %1175 = vmatpush2.bf16.msra.mxu0 0
    %1176 = vmatprep.subr.bf16.mxu0 0
    %1177 = vmatpush2.bf16.msra.mxu0 0
    %1178 = vmatprep.mubr.bf16.mxu0 0
    %1179 = vmatmul.mubr.bf16.gmra.mxu0 %v1141
    %v1180 = vpop.f32.mrf.mxu0
    %v1181 = vadd.f32 %v1121, %v1180
    %v1182 = vpop.f32.mrf.mxu0
    %v1183 = vpop.f32.mrf.mxu0
    %v1184 = vadd.f32 %v1126, %v1183
    %v1185 = vpop.f32.mrf.mxu0
    %1186 = vdwg.mxu0
    %s1187 = sld [smem:[#allocation3]]
    %vm1188 = vcmp.gt.f32.partialorder %v1181, 0.0
    %vm1189 = vcmp.gt.f32.partialorder %v1184, 0.0
    %v1190 = vstv %s1187
    %v1191 = vmul.f32 %v1190, %v1181
    %v1192 = vmul.f32 %v1190, %v1184
    %v1193 = vsel %vm1188, %v1181, %v1191
    %v1194 = vsel %vm1189, %v1184, %v1192
    %v1195 = vrot.slane %v1072, 5
    %1196 = vrot.lane.b32.xlu0 %v1195, 127
    %v1197 = vpop.permute.xlu0 %1196
    %v1199 = vrot.slane %v1073, 2
    %1200 = vrot.lane.b32.xlu0 %v1199, 127
    %v1201 = vpop.permute.xlu0 %1200
    %v1203 = vrot.slane %v1073, 7
    %1204 = vrot.lane.b32.xlu0 %v1203, 120
    %v1205 = vpop.permute.xlu0 %1204
    %v1207 = vrot.slane %v1072, 4
    %1208 = vrot.lane.b32.xlu0 %v1207, 119
    %v1209 = vpop.permute.xlu0 %1208
    %v1211 = vrot.slane %v1073, 1
    %1212 = vrot.lane.b32.xlu0 %v1211, 119
    %v1213 = vpop.permute.xlu0 %1212
    %v1215 = vrot.slane %v1073, 6
    %1216 = vrot.lane.b32.xlu0 %v1215, 112
    %v1217 = vpop.permute.xlu0 %1216
    %v1219 = vrot.slane %v1072, 3
    %1220 = vrot.lane.b32.xlu0 %v1219, 111
    %v1221 = vpop.permute.xlu0 %1220
    %1223 = vrot.lane.b32.xlu0 %v1073, 111
    %v1224 = vpop.permute.xlu0 %1223
    %v1226 = vsel %vm85, %v1073, %v1197
    %v1227 = vsel %vm87, %v1226, %v1201
    %v1228 = vsel %vm89, %v1201, %v1205
    %v1229 = vsel %vm91, %v1228, %v1209
    %v1230 = vsel %vm93, %v1229, %v1213
    %v1231 = vsel %vm95, %v1213, %v1217
    %v1232 = vsel %vm97, %v1231, %v1221
    %v1233 = vpack.c.bf16 %v1230, %v1227
    %v1234 = vpack.c.bf16 %v1224, %v1232
    %1237 = vrot.lane.b32.xlu0 %v1233, 64
    %v1238 = vpop.permute.xlu0 %1237
    %1239 = vrot.lane.b32.xlu0 %v1234, 64
    %v1240 = vpop.permute.xlu0 %1239
    %v1243 = vand.u32 %v1240, %v125
    %1245 = vmatprep.subr.bf16.mxu0 0
    %1246 = vmatpush1.bf16.msra.mxu0 0
    %1247 = vmatprep.subr.bf16.mxu0 0
    %1248 = vmatpush1.bf16.msra.mxu0 0
    %1249 = vmatprep.subr.bf16.mxu0 0
    %1250 = vmatpush1.bf16.msra.mxu0 0
    %1251 = vmatprep.subr.bf16.mxu0 0
    %1252 = vmatpush1.bf16.msra.mxu0 0
    %1253 = vmatprep.subr.bf16.mxu0 0
    %1254 = vmatpush1.bf16.msra.mxu0 0
    %1255 = vmatprep.subr.bf16.mxu0 0
    %1256 = vmatpush1.bf16.msra.mxu0 0
    %1257 = vmatprep.subr.bf16.mxu0 0
    %1258 = vmatpush1.bf16.msra.mxu0 %v1243
    %1259 = vmatprep.subr.bf16.mxu0 0
    %1260 = vmatpush1.bf16.msra.mxu0 %v1238
    %1261 = vmatprep.subr.bf16.mxu0 0
    %1262 = vmatpush2.bf16.msra.mxu0 0
    %1263 = vmatprep.subr.bf16.mxu0 0
    %1264 = vmatpush2.bf16.msra.mxu0 0
    %1265 = vmatprep.subr.bf16.mxu0 0
    %1266 = vmatpush2.bf16.msra.mxu0 0
    %1267 = vmatprep.subr.bf16.mxu0 0
    %1268 = vmatpush2.bf16.msra.mxu0 0
    %1269 = vmatprep.subr.bf16.mxu0 0
    %1270 = vmatpush2.bf16.msra.mxu0 0
    %1271 = vmatprep.subr.bf16.mxu0 0
    %1272 = vmatpush2.bf16.msra.mxu0 0
    %1273 = vmatprep.subr.bf16.mxu0 0
    %1274 = vmatpush2.bf16.msra.mxu0 0
    %1275 = vmatprep.subr.bf16.mxu0 0
    %1276 = vmatpush2.bf16.msra.mxu0 0
    %1277 = vmatprep.mubr.bf16.mxu0 0
    %1278 = vmatmul.mubr.bf16.gmra.mxu0 %v1141
    %v1279 = vpop.f32.mrf.mxu0
    %v1280 = vadd.f32 %v1121, %v1279
    %v1281 = vpop.f32.mrf.mxu0
    %v1282 = vpop.f32.mrf.mxu0
    %v1283 = vadd.f32 %v1126, %v1282
    %v1284 = vpop.f32.mrf.mxu0
    %1285 = vdwg.mxu0
    %vm1286 = vcmp.gt.f32.partialorder %v1280, 0.0
    %vm1287 = vcmp.gt.f32.partialorder %v1283, 0.0
    %v1288 = vmul.f32 %v1190, %v1280
    %v1289 = vmul.f32 %v1190, %v1283
    %v1290 = vsel %vm1286, %v1280, %v1288
    %v1291 = vsel %vm1287, %v1283, %v1289
    %1294 = vrot.lane.b32.xlu0 %v1193, 120
    %v1295 = vpop.permute.xlu0 %1294
    %1296 = vrot.lane.b32.xlu0 %v1194, 120
    %v1297 = vpop.permute.xlu0 %1296
    %v1300 = vmax.f32 %v1193, %v1295
    %v1301 = vmax.f32 %v1194, %v1297
    %v1302 = vmax.f32 %v1300, %v1290
    %v1303 = vmax.f32 %v1301, %v1291
    %1306 = vrot.lane.b32.xlu0 %v1290, 120
    %v1307 = vpop.permute.xlu0 %1306
    %1308 = vrot.lane.b32.xlu0 %v1291, 120
    %v1309 = vpop.permute.xlu0 %1308
    %v1312 = vmax.f32 %v1302, %v1307
    %v1313 = vmax.f32 %v1303, %v1309
    %v1314 = vpack.c.bf16 %v1313, %v1312
    %v1316 = vunpack.c.l.b16 %v1314
    %v1317 = vunpack.c.h.b16 %v1314
    %v1318 = vpack.c.b16 %v1316, %v1316
    %v1319 = vpack.c.b16 %v1317, %v1317
    %1320 = vrot.lane.b32.xlu0 %v1318, 28
    %v1321 = vpop.permute.xlu0 %1320
    %1322 = vrot.lane.b32.xlu0 %v1319, 28
    %v1323 = vpop.permute.xlu0 %1322
    %vm1326 = vcmask 281824
    %1327 = vst.msk [vmem:[#allocation2] sm:$0xf] %vm1326, %v1321
    %1328 = vst.msk [vmem:[#allocation2 + $0x4] sm:$0xf] %vm1326, %v1323
    %v1329 = vld [vmem:[%s0] sm:$0x7]
    %v1330 = vld [vmem:[%s1] sm:$0x7]
    %v1332 = vrot.slane %v1330, 5
    %v1335 = vrot.slane %v1329, 2
    %1336 = vrot.lane.b32.xlu0 %v1335, 127
    %v1337 = vpop.permute.xlu0 %1336
    %v1339 = vrot.slane %v1329, 7
    %1340 = vrot.lane.b32.xlu0 %v1339, 120
    %v1341 = vpop.permute.xlu0 %1340
    %v1343 = vrot.slane %v1330, 4
    %1344 = vrot.lane.b32.xlu0 %v1343, 120
    %v1345 = vpop.permute.xlu0 %1344
    %v1347 = vrot.slane %v1329, 1
    %1348 = vrot.lane.b32.xlu0 %v1347, 119
    %v1349 = vpop.permute.xlu0 %1348
    %v1351 = vrot.slane %v1329, 6
    %1352 = vrot.lane.b32.xlu0 %v1351, 112
    %v1353 = vpop.permute.xlu0 %1352
    %v1355 = vrot.slane %v1330, 3
    %1356 = vrot.lane.b32.xlu0 %v1355, 112
    %v1357 = vpop.permute.xlu0 %1356
    %1359 = vrot.lane.b32.xlu0 %v1329, 111
    %v1360 = vpop.permute.xlu0 %1359
    %v1362 = vsel %vm85, %v1329, %v1332
    %v1363 = vsel %vm87, %v1362, %v1337
    %v1364 = vsel %vm89, %v1337, %v1341
    %v1365 = vsel %vm91, %v1364, %v1345
    %v1366 = vsel %vm93, %v1365, %v1349
    %v1367 = vsel %vm95, %v1349, %v1353
    %v1368 = vsel %vm97, %v1367, %v1357
    %v1369 = vld [vmem:[%s2] sm:$0xf]
    %v1370 = vld [vmem:[%s2 + $0x4] sm:$0xf]
    %v1371 = vpack.c.bf16 %v1366, %v1363
    %v1372 = vpack.c.bf16 %v1360, %v1368
    %v1373 = vld [vmem:[%s3] sm:$0xff]
    %v1374 = vld [vmem:[%s3 + $0x8] sm:$0xff]
    %1376 = vset.pattern.permute.xlu0 0
    %1377 = vperm.xlu0 %1376, %v1373
    %v1378 = vpop.permute.xlu0 %1377
    %1381 = vset.pattern.permute.xlu0 0
    %1382 = vperm.xlu0 %1381, %v1374
    %v1383 = vpop.permute.xlu0 %1382
    %v1387 = vunpack.c.l.b16 %v1369
    %v1388 = vunpack.c.l.b16 %v1370
    %v1389 = vpack.c.b16 %v1388, %v1387
    %1392 = vrot.lane.b32.xlu0 %v1371, 48
    %v1393 = vpop.permute.xlu0 %1392
    %1394 = vrot.lane.b32.xlu0 %v1372, 48
    %v1395 = vpop.permute.xlu0 %1394
    %v1398 = vsel %vm120, %v1389, 0
    %v1401 = vand.u32 %v1395, %v125
    %1403 = vmatprep.subr.bf16.mxu0 0
    %1404 = vmatpush1.bf16.msra.mxu0 0
    %1405 = vmatprep.subr.bf16.mxu0 0
    %1406 = vmatpush1.bf16.msra.mxu0 0
    %1407 = vmatprep.subr.bf16.mxu0 0
    %1408 = vmatpush1.bf16.msra.mxu0 0
    %1409 = vmatprep.subr.bf16.mxu0 0
    %1410 = vmatpush1.bf16.msra.mxu0 0
    %1411 = vmatprep.subr.bf16.mxu0 0
    %1412 = vmatpush1.bf16.msra.mxu0 0
    %1413 = vmatprep.subr.bf16.mxu0 0
    %1414 = vmatpush1.bf16.msra.mxu0 0
    %1415 = vmatprep.subr.bf16.mxu0 0
    %1416 = vmatpush1.bf16.msra.mxu0 %v1401
    %1417 = vmatprep.subr.bf16.mxu0 0
    %1418 = vmatpush1.bf16.msra.mxu0 %v1393
    %1419 = vmatprep.subr.bf16.mxu0 0
    %1420 = vmatpush2.bf16.msra.mxu0 0
    %1421 = vmatprep.subr.bf16.mxu0 0
    %1422 = vmatpush2.bf16.msra.mxu0 0
    %1423 = vmatprep.subr.bf16.mxu0 0
    %1424 = vmatpush2.bf16.msra.mxu0 0
    %1425 = vmatprep.subr.bf16.mxu0 0
    %1426 = vmatpush2.bf16.msra.mxu0 0
    %1427 = vmatprep.subr.bf16.mxu0 0
    %1428 = vmatpush2.bf16.msra.mxu0 0
    %1429 = vmatprep.subr.bf16.mxu0 0
    %1430 = vmatpush2.bf16.msra.mxu0 0
    %1431 = vmatprep.subr.bf16.mxu0 0
    %1432 = vmatpush2.bf16.msra.mxu0 0
    %1433 = vmatprep.subr.bf16.mxu0 0
    %1434 = vmatpush2.bf16.msra.mxu0 0
    %1435 = vmatprep.mubr.bf16.mxu0 0
    %1436 = vmatmul.mubr.bf16.gmra.mxu0 %v1398
    %v1437 = vpop.f32.mrf.mxu0
    %v1438 = vadd.f32 %v1378, %v1437
    %v1439 = vpop.f32.mrf.mxu0
    %v1440 = vpop.f32.mrf.mxu0
    %v1441 = vadd.f32 %v1383, %v1440
    %v1442 = vpop.f32.mrf.mxu0
    %1443 = vdwg.mxu0
    %s1444 = sld [smem:[#allocation3]]
    %vm1445 = vcmp.gt.f32.partialorder %v1438, 0.0
    %vm1446 = vcmp.gt.f32.partialorder %v1441, 0.0
    %v1447 = vstv %s1444
    %v1448 = vmul.f32 %v1447, %v1438
    %v1449 = vmul.f32 %v1447, %v1441
    %v1450 = vsel %vm1445, %v1438, %v1448
    %v1451 = vsel %vm1446, %v1441, %v1449
    %v1452 = vrot.slane %v1329, 5
    %1453 = vrot.lane.b32.xlu0 %v1452, 127
    %v1454 = vpop.permute.xlu0 %1453
    %v1456 = vrot.slane %v1330, 2
    %1457 = vrot.lane.b32.xlu0 %v1456, 127
    %v1458 = vpop.permute.xlu0 %1457
    %v1460 = vrot.slane %v1330, 7
    %1461 = vrot.lane.b32.xlu0 %v1460, 120
    %v1462 = vpop.permute.xlu0 %1461
    %v1464 = vrot.slane %v1329, 4
    %1465 = vrot.lane.b32.xlu0 %v1464, 119
    %v1466 = vpop.permute.xlu0 %1465
    %v1468 = vrot.slane %v1330, 1
    %1469 = vrot.lane.b32.xlu0 %v1468, 119
    %v1470 = vpop.permute.xlu0 %1469
    %v1472 = vrot.slane %v1330, 6
    %1473 = vrot.lane.b32.xlu0 %v1472, 112
    %v1474 = vpop.permute.xlu0 %1473
    %v1476 = vrot.slane %v1329, 3
    %1477 = vrot.lane.b32.xlu0 %v1476, 111
    %v1478 = vpop.permute.xlu0 %1477
    %1480 = vrot.lane.b32.xlu0 %v1330, 111
    %v1481 = vpop.permute.xlu0 %1480
    %v1483 = vsel %vm85, %v1330, %v1454
    %v1484 = vsel %vm87, %v1483, %v1458
    %v1485 = vsel %vm89, %v1458, %v1462
    %v1486 = vsel %vm91, %v1485, %v1466
    %v1487 = vsel %vm93, %v1486, %v1470
    %v1488 = vsel %vm95, %v1470, %v1474
    %v1489 = vsel %vm97, %v1488, %v1478
    %v1490 = vpack.c.bf16 %v1487, %v1484
    %v1491 = vpack.c.bf16 %v1481, %v1489
    %1494 = vrot.lane.b32.xlu0 %v1490, 48
    %v1495 = vpop.permute.xlu0 %1494
    %1496 = vrot.lane.b32.xlu0 %v1491, 48
    %v1497 = vpop.permute.xlu0 %1496
    %v1500 = vand.u32 %v1497, %v125
    %1502 = vmatprep.subr.bf16.mxu0 0
    %1503 = vmatpush1.bf16.msra.mxu0 0
    %1504 = vmatprep.subr.bf16.mxu0 0
    %1505 = vmatpush1.bf16.msra.mxu0 0
    %1506 = vmatprep.subr.bf16.mxu0 0
    %1507 = vmatpush1.bf16.msra.mxu0 0
    %1508 = vmatprep.subr.bf16.mxu0 0
    %1509 = vmatpush1.bf16.msra.mxu0 0
    %1510 = vmatprep.subr.bf16.mxu0 0
    %1511 = vmatpush1.bf16.msra.mxu0 0
    %1512 = vmatprep.subr.bf16.mxu0 0
    %1513 = vmatpush1.bf16.msra.mxu0 0
    %1514 = vmatprep.subr.bf16.mxu0 0
    %1515 = vmatpush1.bf16.msra.mxu0 %v1500
    %1516 = vmatprep.subr.bf16.mxu0 0
    %1517 = vmatpush1.bf16.msra.mxu0 %v1495
    %1518 = vmatprep.subr.bf16.mxu0 0
    %1519 = vmatpush2.bf16.msra.mxu0 0
    %1520 = vmatprep.subr.bf16.mxu0 0
    %1521 = vmatpush2.bf16.msra.mxu0 0
    %1522 = vmatprep.subr.bf16.mxu0 0
    %1523 = vmatpush2.bf16.msra.mxu0 0
    %1524 = vmatprep.subr.bf16.mxu0 0
    %1525 = vmatpush2.bf16.msra.mxu0 0
    %1526 = vmatprep.subr.bf16.mxu0 0
    %1527 = vmatpush2.bf16.msra.mxu0 0
    %1528 = vmatprep.subr.bf16.mxu0 0
    %1529 = vmatpush2.bf16.msra.mxu0 0
    %1530 = vmatprep.subr.bf16.mxu0 0
    %1531 = vmatpush2.bf16.msra.mxu0 0
    %1532 = vmatprep.subr.bf16.mxu0 0
    %1533 = vmatpush2.bf16.msra.mxu0 0
    %1534 = vmatprep.mubr.bf16.mxu0 0
    %1535 = vmatmul.mubr.bf16.gmra.mxu0 %v1398
    %v1536 = vpop.f32.mrf.mxu0
    %v1537 = vadd.f32 %v1378, %v1536
    %v1538 = vpop.f32.mrf.mxu0
    %v1539 = vpop.f32.mrf.mxu0
    %v1540 = vadd.f32 %v1383, %v1539
    %v1541 = vpop.f32.mrf.mxu0
    %1542 = vdwg.mxu0
    %vm1543 = vcmp.gt.f32.partialorder %v1537, 0.0
    %vm1544 = vcmp.gt.f32.partialorder %v1540, 0.0
    %v1545 = vmul.f32 %v1447, %v1537
    %v1546 = vmul.f32 %v1447, %v1540
    %v1547 = vsel %vm1543, %v1537, %v1545
    %v1548 = vsel %vm1544, %v1540, %v1546
    %1551 = vrot.lane.b32.xlu0 %v1450, 120
    %v1552 = vpop.permute.xlu0 %1551
    %1553 = vrot.lane.b32.xlu0 %v1451, 120
    %v1554 = vpop.permute.xlu0 %1553
    %v1557 = vmax.f32 %v1450, %v1552
    %v1558 = vmax.f32 %v1451, %v1554
    %v1559 = vmax.f32 %v1557, %v1547
    %v1560 = vmax.f32 %v1558, %v1548
    %1563 = vrot.lane.b32.xlu0 %v1547, 120
    %v1564 = vpop.permute.xlu0 %1563
    %1565 = vrot.lane.b32.xlu0 %v1548, 120
    %v1566 = vpop.permute.xlu0 %1565
    %v1569 = vmax.f32 %v1559, %v1564
    %v1570 = vmax.f32 %v1560, %v1566
    %v1571 = vpack.c.bf16 %v1570, %v1569
    %v1573 = vunpack.c.l.b16 %v1571
    %v1574 = vunpack.c.h.b16 %v1571
    %v1575 = vpack.c.b16 %v1573, %v1573
    %v1576 = vpack.c.b16 %v1574, %v1574
    %1577 = vrot.lane.b32.xlu0 %v1575, 35
    %v1578 = vpop.permute.xlu0 %1577
    %1579 = vrot.lane.b32.xlu0 %v1576, 35
    %v1580 = vpop.permute.xlu0 %1579
    %vm1583 = vcmask 339224
    %1584 = vst.msk [vmem:[#allocation2] sm:$0xf] %vm1583, %v1578
    %1585 = vst.msk [vmem:[#allocation2 + $0x4] sm:$0xf] %vm1583, %v1580
    %v1586 = vld [vmem:[%s0] sm:$0x7]
    %v1587 = vld [vmem:[%s1] sm:$0x7]
    %v1589 = vrot.slane %v1587, 5
    %v1592 = vrot.slane %v1586, 2
    %1593 = vrot.lane.b32.xlu0 %v1592, 127
    %v1594 = vpop.permute.xlu0 %1593
    %v1596 = vrot.slane %v1586, 7
    %1597 = vrot.lane.b32.xlu0 %v1596, 120
    %v1598 = vpop.permute.xlu0 %1597
    %v1600 = vrot.slane %v1587, 4
    %1601 = vrot.lane.b32.xlu0 %v1600, 120
    %v1602 = vpop.permute.xlu0 %1601
    %v1604 = vrot.slane %v1586, 1
    %1605 = vrot.lane.b32.xlu0 %v1604, 119
    %v1606 = vpop.permute.xlu0 %1605
    %v1608 = vrot.slane %v1586, 6
    %1609 = vrot.lane.b32.xlu0 %v1608, 112
    %v1610 = vpop.permute.xlu0 %1609
    %v1612 = vrot.slane %v1587, 3
    %1613 = vrot.lane.b32.xlu0 %v1612, 112
    %v1614 = vpop.permute.xlu0 %1613
    %1616 = vrot.lane.b32.xlu0 %v1586, 111
    %v1617 = vpop.permute.xlu0 %1616
    %v1619 = vsel %vm85, %v1586, %v1589
    %v1620 = vsel %vm87, %v1619, %v1594
    %v1621 = vsel %vm89, %v1594, %v1598
    %v1622 = vsel %vm91, %v1621, %v1602
    %v1623 = vsel %vm93, %v1622, %v1606
    %v1624 = vsel %vm95, %v1606, %v1610
    %v1625 = vsel %vm97, %v1624, %v1614
    %v1626 = vld [vmem:[%s2] sm:$0xf]
    %v1627 = vld [vmem:[%s2 + $0x4] sm:$0xf]
    %v1628 = vpack.c.bf16 %v1623, %v1620
    %v1629 = vpack.c.bf16 %v1617, %v1625
    %v1630 = vld [vmem:[%s3] sm:$0xff]
    %v1631 = vld [vmem:[%s3 + $0x8] sm:$0xff]
    %1633 = vset.pattern.permute.xlu0 0
    %1634 = vperm.xlu0 %1633, %v1630
    %v1635 = vpop.permute.xlu0 %1634
    %1638 = vset.pattern.permute.xlu0 0
    %1639 = vperm.xlu0 %1638, %v1631
    %v1640 = vpop.permute.xlu0 %1639
    %v1644 = vunpack.c.l.b16 %v1626
    %v1645 = vunpack.c.l.b16 %v1627
    %v1646 = vpack.c.b16 %v1645, %v1644
    %1649 = vrot.lane.b32.xlu0 %v1628, 32
    %v1650 = vpop.permute.xlu0 %1649
    %1651 = vrot.lane.b32.xlu0 %v1629, 32
    %v1652 = vpop.permute.xlu0 %1651
    %v1655 = vsel %vm120, %v1646, 0
    %v1658 = vand.u32 %v1652, %v125
    %1660 = vmatprep.subr.bf16.mxu0 0
    %1661 = vmatpush1.bf16.msra.mxu0 0
    %1662 = vmatprep.subr.bf16.mxu0 0
    %1663 = vmatpush1.bf16.msra.mxu0 0
    %1664 = vmatprep.subr.bf16.mxu0 0
    %1665 = vmatpush1.bf16.msra.mxu0 0
    %1666 = vmatprep.subr.bf16.mxu0 0
    %1667 = vmatpush1.bf16.msra.mxu0 0
    %1668 = vmatprep.subr.bf16.mxu0 0
    %1669 = vmatpush1.bf16.msra.mxu0 0
    %1670 = vmatprep.subr.bf16.mxu0 0
    %1671 = vmatpush1.bf16.msra.mxu0 0
    %1672 = vmatprep.subr.bf16.mxu0 0
    %1673 = vmatpush1.bf16.msra.mxu0 %v1658
    %1674 = vmatprep.subr.bf16.mxu0 0
    %1675 = vmatpush1.bf16.msra.mxu0 %v1650
    %1676 = vmatprep.subr.bf16.mxu0 0
    %1677 = vmatpush2.bf16.msra.mxu0 0
    %1678 = vmatprep.subr.bf16.mxu0 0
    %1679 = vmatpush2.bf16.msra.mxu0 0
    %1680 = vmatprep.subr.bf16.mxu0 0
    %1681 = vmatpush2.bf16.msra.mxu0 0
    %1682 = vmatprep.subr.bf16.mxu0 0
    %1683 = vmatpush2.bf16.msra.mxu0 0
    %1684 = vmatprep.subr.bf16.mxu0 0
    %1685 = vmatpush2.bf16.msra.mxu0 0
    %1686 = vmatprep.subr.bf16.mxu0 0
    %1687 = vmatpush2.bf16.msra.mxu0 0
    %1688 = vmatprep.subr.bf16.mxu0 0
    %1689 = vmatpush2.bf16.msra.mxu0 0
    %1690 = vmatprep.subr.bf16.mxu0 0
    %1691 = vmatpush2.bf16.msra.mxu0 0
    %1692 = vmatprep.mubr.bf16.mxu0 0
    %1693 = vmatmul.mubr.bf16.gmra.mxu0 %v1655
    %v1694 = vpop.f32.mrf.mxu0
    %v1695 = vadd.f32 %v1635, %v1694
    %v1696 = vpop.f32.mrf.mxu0
    %v1697 = vpop.f32.mrf.mxu0
    %v1698 = vadd.f32 %v1640, %v1697
    %v1699 = vpop.f32.mrf.mxu0
    %1700 = vdwg.mxu0
    %s1701 = sld [smem:[#allocation3]]
    %vm1702 = vcmp.gt.f32.partialorder %v1695, 0.0
    %vm1703 = vcmp.gt.f32.partialorder %v1698, 0.0
    %v1704 = vstv %s1701
    %v1705 = vmul.f32 %v1704, %v1695
    %v1706 = vmul.f32 %v1704, %v1698
    %v1707 = vsel %vm1702, %v1695, %v1705
    %v1708 = vsel %vm1703, %v1698, %v1706
    %v1709 = vrot.slane %v1586, 5
    %1710 = vrot.lane.b32.xlu0 %v1709, 127
    %v1711 = vpop.permute.xlu0 %1710
    %v1713 = vrot.slane %v1587, 2
    %1714 = vrot.lane.b32.xlu0 %v1713, 127
    %v1715 = vpop.permute.xlu0 %1714
    %v1717 = vrot.slane %v1587, 7
    %1718 = vrot.lane.b32.xlu0 %v1717, 120
    %v1719 = vpop.permute.xlu0 %1718
    %v1721 = vrot.slane %v1586, 4
    %1722 = vrot.lane.b32.xlu0 %v1721, 119
    %v1723 = vpop.permute.xlu0 %1722
    %v1725 = vrot.slane %v1587, 1
    %1726 = vrot.lane.b32.xlu0 %v1725, 119
    %v1727 = vpop.permute.xlu0 %1726
    %v1729 = vrot.slane %v1587, 6
    %1730 = vrot.lane.b32.xlu0 %v1729, 112
    %v1731 = vpop.permute.xlu0 %1730
    %v1733 = vrot.slane %v1586, 3
    %1734 = vrot.lane.b32.xlu0 %v1733, 111
    %v1735 = vpop.permute.xlu0 %1734
    %1737 = vrot.lane.b32.xlu0 %v1587, 111
    %v1738 = vpop.permute.xlu0 %1737
    %v1740 = vsel %vm85, %v1587, %v1711
    %v1741 = vsel %vm87, %v1740, %v1715
    %v1742 = vsel %vm89, %v1715, %v1719
    %v1743 = vsel %vm91, %v1742, %v1723
    %v1744 = vsel %vm93, %v1743, %v1727
    %v1745 = vsel %vm95, %v1727, %v1731
    %v1746 = vsel %vm97, %v1745, %v1735
    %v1747 = vpack.c.bf16 %v1744, %v1741
    %v1748 = vpack.c.bf16 %v1738, %v1746
    %1751 = vrot.lane.b32.xlu0 %v1747, 32
    %v1752 = vpop.permute.xlu0 %1751
    %1753 = vrot.lane.b32.xlu0 %v1748, 32
    %v1754 = vpop.permute.xlu0 %1753
    %v1757 = vand.u32 %v1754, %v125
    %1759 = vmatprep.subr.bf16.mxu0 0
    %1760 = vmatpush1.bf16.msra.mxu0 0
    %1761 = vmatprep.subr.bf16.mxu0 0
    %1762 = vmatpush1.bf16.msra.mxu0 0
    %1763 = vmatprep.subr.bf16.mxu0 0
    %1764 = vmatpush1.bf16.msra.mxu0 0
    %1765 = vmatprep.subr.bf16.mxu0 0
    %1766 = vmatpush1.bf16.msra.mxu0 0
    %1767 = vmatprep.subr.bf16.mxu0 0
    %1768 = vmatpush1.bf16.msra.mxu0 0
    %1769 = vmatprep.subr.bf16.mxu0 0
    %1770 = vmatpush1.bf16.msra.mxu0 0
    %1771 = vmatprep.subr.bf16.mxu0 0
    %1772 = vmatpush1.bf16.msra.mxu0 %v1757
    %1773 = vmatprep.subr.bf16.mxu0 0
    %1774 = vmatpush1.bf16.msra.mxu0 %v1752
    %1775 = vmatprep.subr.bf16.mxu0 0
    %1776 = vmatpush2.bf16.msra.mxu0 0
    %1777 = vmatprep.subr.bf16.mxu0 0
    %1778 = vmatpush2.bf16.msra.mxu0 0
    %1779 = vmatprep.subr.bf16.mxu0 0
    %1780 = vmatpush2.bf16.msra.mxu0 0
    %1781 = vmatprep.subr.bf16.mxu0 0
    %1782 = vmatpush2.bf16.msra.mxu0 0
    %1783 = vmatprep.subr.bf16.mxu0 0
    %1784 = vmatpush2.bf16.msra.mxu0 0
    %1785 = vmatprep.subr.bf16.mxu0 0
    %1786 = vmatpush2.bf16.msra.mxu0 0
    %1787 = vmatprep.subr.bf16.mxu0 0
    %1788 = vmatpush2.bf16.msra.mxu0 0
    %1789 = vmatprep.subr.bf16.mxu0 0
    %1790 = vmatpush2.bf16.msra.mxu0 0
    %1791 = vmatprep.mubr.bf16.mxu0 0
    %1792 = vmatmul.mubr.bf16.gmra.mxu0 %v1655
    %v1793 = vpop.f32.mrf.mxu0
    %v1794 = vadd.f32 %v1635, %v1793
    %v1795 = vpop.f32.mrf.mxu0
    %v1796 = vpop.f32.mrf.mxu0
    %v1797 = vadd.f32 %v1640, %v1796
    %v1798 = vpop.f32.mrf.mxu0
    %1799 = vdwg.mxu0
    %vm1800 = vcmp.gt.f32.partialorder %v1794, 0.0
    %vm1801 = vcmp.gt.f32.partialorder %v1797, 0.0
    %v1802 = vmul.f32 %v1704, %v1794
    %v1803 = vmul.f32 %v1704, %v1797
    %v1804 = vsel %vm1800, %v1794, %v1802
    %v1805 = vsel %vm1801, %v1797, %v1803
    %1808 = vrot.lane.b32.xlu0 %v1707, 120
    %v1809 = vpop.permute.xlu0 %1808
    %1810 = vrot.lane.b32.xlu0 %v1708, 120
    %v1811 = vpop.permute.xlu0 %1810
    %v1814 = vmax.f32 %v1707, %v1809
    %v1815 = vmax.f32 %v1708, %v1811
    %v1816 = vmax.f32 %v1814, %v1804
    %v1817 = vmax.f32 %v1815, %v1805
    %1820 = vrot.lane.b32.xlu0 %v1804, 120
    %v1821 = vpop.permute.xlu0 %1820
    %1822 = vrot.lane.b32.xlu0 %v1805, 120
    %v1823 = vpop.permute.xlu0 %1822
    %v1826 = vmax.f32 %v1816, %v1821
    %v1827 = vmax.f32 %v1817, %v1823
    %v1828 = vpack.c.bf16 %v1827, %v1826
    %v1830 = vunpack.c.l.b16 %v1828
    %v1831 = vunpack.c.h.b16 %v1828
    %v1832 = vpack.c.b16 %v1830, %v1830
    %v1833 = vpack.c.b16 %v1831, %v1831
    %1834 = vrot.lane.b32.xlu0 %v1832, 42
    %v1835 = vpop.permute.xlu0 %1834
    %1836 = vrot.lane.b32.xlu0 %v1833, 42
    %v1837 = vpop.permute.xlu0 %1836
    %vm1840 = vcmask 396624
    %1841 = vst.msk [vmem:[#allocation2] sm:$0xf] %vm1840, %v1835
    %1842 = vst.msk [vmem:[#allocation2 + $0x4] sm:$0xf] %vm1840, %v1837
    %v1843 = vld [vmem:[#allocation2] sm:$0xf]
    %v1844 = vld [vmem:[#allocation2 + $0x4] sm:$0xf]
    %v1847 = vunpack.c.l.b16 %v1843
    %v1848 = vunpack.c.l.b16 %v1844
    %v1849 = vpack.c.b16 %v1848, %v1847
    %1851 = vrot.lane.b32.xlu0 %v1849, 127
    %v1852 = vpop.permute.xlu0 %1851
    %1854 = vrot.lane.b32.xlu0 %v1849, 126
    %v1855 = vpop.permute.xlu0 %1854
    %1857 = vrot.lane.b32.xlu0 %v1849, 121
    %v1858 = vpop.permute.xlu0 %1857
    %1860 = vrot.lane.b32.xlu0 %v1849, 120
    %v1861 = vpop.permute.xlu0 %1860
    %1863 = vrot.lane.b32.xlu0 %v1849, 119
    %v1864 = vpop.permute.xlu0 %1863
    %1866 = vrot.lane.b32.xlu0 %v1849, 114
    %v1867 = vpop.permute.xlu0 %1866
    %1869 = vrot.lane.b32.xlu0 %v1849, 113
    %v1870 = vpop.permute.xlu0 %1869
    %1872 = vrot.lane.b32.xlu0 %v1849, 112
    %v1873 = vpop.permute.xlu0 %1872
    %v1875 = vld [vmem:[%s4] sm:$0xff]
    %v1876 = vld [vmem:[%s4 + $0x8] sm:$0xff]
    %v1877 = vld [vmem:[%s5] sm:$0xff]
    %v1878 = vld [vmem:[%s5 + $0x8] sm:$0xff]
    %1880 = vset.pattern.permute.xlu0 0
    %1881 = vperm.xlu0 %1880, %v1877
    %v1882 = vpop.permute.xlu0 %1881
    %1885 = vset.pattern.permute.xlu0 0
    %1886 = vperm.xlu0 %1885, %v1878
    %v1887 = vpop.permute.xlu0 %1886
    %v1891 = vunpack.c.l.b16 %v1875
    %v1892 = vunpack.c.h.b16 %v1875
    %v1893 = vunpack.c.l.b16 %v1876
    %v1894 = vunpack.c.h.b16 %v1876
    %v1895 = vpack.c.b16 %v1893, %v1891
    %v1896 = vpack.c.b16 %v1894, %v1892
    %vm1898 = vcmask 130048
    %v1900 = vsel %vm1898, %v1896, 0
    %1902 = vmatprep.subr.bf16.mxu0 0
    %1903 = vmatpush1.bf16.msra.mxu0 %v1870
    %1904 = vmatprep.subr.bf16.mxu0 0
    %1905 = vmatpush1.bf16.msra.mxu0 %v1867
    %1906 = vmatprep.subr.bf16.mxu0 0
    %1907 = vmatpush1.bf16.msra.mxu0 %v1864
    %1908 = vmatprep.subr.bf16.mxu0 0
    %1909 = vmatpush1.bf16.msra.mxu0 %v1861
    %1910 = vmatprep.subr.bf16.mxu0 0
    %1911 = vmatpush1.bf16.msra.mxu0 %v1858
    %1912 = vmatprep.subr.bf16.mxu0 0
    %1913 = vmatpush1.bf16.msra.mxu0 %v1855
    %1914 = vmatprep.subr.bf16.mxu0 0
    %1915 = vmatpush1.bf16.msra.mxu0 %v1852
    %1916 = vmatprep.subr.bf16.mxu0 0
    %1917 = vmatpush1.bf16.msra.mxu0 %v1849
    %1918 = vmatprep.subr.bf16.mxu0 0
    %1919 = vmatpush2.bf16.msra.mxu0 0
    %1920 = vmatprep.subr.bf16.mxu0 0
    %1921 = vmatpush2.bf16.msra.mxu0 0
    %1922 = vmatprep.subr.bf16.mxu0 0
    %1923 = vmatpush2.bf16.msra.mxu0 0
    %1924 = vmatprep.subr.bf16.mxu0 0
    %1925 = vmatpush2.bf16.msra.mxu0 0
    %1926 = vmatprep.subr.bf16.mxu0 0
    %1927 = vmatpush2.bf16.msra.mxu0 0
    %1928 = vmatprep.subr.bf16.mxu0 0
    %1929 = vmatpush2.bf16.msra.mxu0 0
    %1930 = vmatprep.subr.bf16.mxu0 0
    %1931 = vmatpush2.bf16.msra.mxu0 0
    %1932 = vmatprep.subr.bf16.mxu0 0
    %1933 = vmatpush2.bf16.msra.mxu0 %v1873
    %1934 = vmatprep.mubr.bf16.mxu0 %v1900
    %1935 = vmatmul.mubr.bf16.gmra.mxu0 %v1895
    %v1936 = vpop.f32.mrf.mxu0
    %v1937 = vadd.f32 %v1882, %v1936
    %v1938 = vpop.f32.mrf.mxu0
    %v1939 = vpop.f32.mrf.mxu0
    %v1940 = vadd.f32 %v1887, %v1939
    %v1941 = vpop.f32.mrf.mxu0
    %1942 = vdwg.mxu0
    %s1943 = sld [smem:[#allocation3 + $0x1]]
    %vm1944 = vcmp.gt.f32.partialorder %v1937, 0.0
    %vm1945 = vcmp.gt.f32.partialorder %v1940, 0.0
    %v1946 = vstv %s1943
    %v1947 = vmul.f32 %v1946, %v1937
    %v1948 = vmul.f32 %v1946, %v1940
    %v1949 = vsel %vm1944, %v1937, %v1947
    %v1950 = vsel %vm1945, %v1940, %v1948
    %v1951 = vpack.c.bf16 %v1950, %v1949
    %1953 = vrot.lane.b32.xlu0 %v1951, 127
    %v1954 = vpop.permute.xlu0 %1953
    %1956 = vrot.lane.b32.xlu0 %v1951, 126
    %v1957 = vpop.permute.xlu0 %1956
    %1959 = vrot.lane.b32.xlu0 %v1951, 121
    %v1960 = vpop.permute.xlu0 %1959
    %1962 = vrot.lane.b32.xlu0 %v1951, 120
    %v1963 = vpop.permute.xlu0 %1962
    %1965 = vrot.lane.b32.xlu0 %v1951, 119
    %v1966 = vpop.permute.xlu0 %1965
    %1968 = vrot.lane.b32.xlu0 %v1951, 114
    %v1969 = vpop.permute.xlu0 %1968
    %1971 = vrot.lane.b32.xlu0 %v1951, 113
    %v1972 = vpop.permute.xlu0 %1971
    %1974 = vrot.lane.b32.xlu0 %v1951, 112
    %v1975 = vpop.permute.xlu0 %1974
    %v1977 = vld [vmem:[%s6] sm:$0xff]
    %v1978 = vld [vmem:[%s6 + $0x8] sm:$0xff]
    %v1979 = vld [vmem:[%s6 + $0x10] sm:$0xff]
    %v1980 = vld [vmem:[%s6 + $0x18] sm:$0xff]
    %v1981 = vld [vmem:[%s7] sm:$0xff]
    %v1982 = vld [vmem:[%s7 + $0x8] sm:$0xff]
    %v1983 = vld [vmem:[%s7 + $0x10] sm:$0xff]
    %v1984 = vld [vmem:[%s7 + $0x18] sm:$0xff]
    %1986 = vset.pattern.permute.xlu0 0
    %1987 = vperm.xlu0 %1986, %v1981
    %v1988 = vpop.permute.xlu0 %1987
    %1991 = vset.pattern.permute.xlu0 0
    %1992 = vperm.xlu0 %1991, %v1982
    %v1993 = vpop.permute.xlu0 %1992
    %1996 = vset.pattern.permute.xlu0 0
    %1997 = vperm.xlu0 %1996, %v1983
    %v1998 = vpop.permute.xlu0 %1997
    %2001 = vset.pattern.permute.xlu0 0
    %2002 = vperm.xlu0 %2001, %v1984
    %v2003 = vpop.permute.xlu0 %2002
    %v2009 = vunpack.c.l.b16 %v1977
    %v2010 = vunpack.c.h.b16 %v1977
    %v2011 = vunpack.c.l.b16 %v1978
    %v2012 = vunpack.c.h.b16 %v1978
    %v2013 = vunpack.c.l.b16 %v1979
    %v2014 = vunpack.c.h.b16 %v1979
    %v2015 = vunpack.c.l.b16 %v1980
    %v2016 = vunpack.c.h.b16 %v1980
    %v2017 = vpack.c.b16 %v2011, %v2009
    %v2018 = vpack.c.b16 %v2012, %v2010
    %v2019 = vpack.c.b16 %v2015, %v2013
    %v2020 = vpack.c.b16 %v2016, %v2014
    %v2024 = vsel %vm1898, %v2018, 0
    %v2027 = vsel %vm1898, %v2020, 0
    %2029 = vmatprep.subr.bf16.mxu0 0
    %2030 = vmatpush1.bf16.msra.mxu0 %v1972
    %2031 = vmatprep.subr.bf16.mxu0 0
    %2032 = vmatpush1.bf16.msra.mxu0 %v1969
    %2033 = vmatprep.subr.bf16.mxu0 0
    %2034 = vmatpush1.bf16.msra.mxu0 %v1966
    %2035 = vmatprep.subr.bf16.mxu0 0
    %2036 = vmatpush1.bf16.msra.mxu0 %v1963
    %2037 = vmatprep.subr.bf16.mxu0 0
    %2038 = vmatpush1.bf16.msra.mxu0 %v1960
    %2039 = vmatprep.subr.bf16.mxu0 0
    %2040 = vmatpush1.bf16.msra.mxu0 %v1957
    %2041 = vmatprep.subr.bf16.mxu0 0
    %2042 = vmatpush1.bf16.msra.mxu0 %v1954
    %2043 = vmatprep.subr.bf16.mxu0 0
    %2044 = vmatpush1.bf16.msra.mxu0 %v1951
    %2045 = vmatprep.subr.bf16.mxu0 0
    %2046 = vmatpush2.bf16.msra.mxu0 0
    %2047 = vmatprep.subr.bf16.mxu0 0
    %2048 = vmatpush2.bf16.msra.mxu0 0
    %2049 = vmatprep.subr.bf16.mxu0 0
    %2050 = vmatpush2.bf16.msra.mxu0 0
    %2051 = vmatprep.subr.bf16.mxu0 0
    %2052 = vmatpush2.bf16.msra.mxu0 0
    %2053 = vmatprep.subr.bf16.mxu0 0
    %2054 = vmatpush2.bf16.msra.mxu0 0
    %2055 = vmatprep.subr.bf16.mxu0 0
    %2056 = vmatpush2.bf16.msra.mxu0 0
    %2057 = vmatprep.subr.bf16.mxu0 0
    %2058 = vmatpush2.bf16.msra.mxu0 0
    %2059 = vmatprep.subr.bf16.mxu0 0
    %2060 = vmatpush2.bf16.msra.mxu0 %v1975
    %2061 = vmatprep.mubr.bf16.mxu0 %v2024
    %2062 = vmatmul.mubr.bf16.gmra.mxu0 %v2017
    %v2063 = vpop.f32.mrf.mxu0
    %v2064 = vadd.f32 %v1988, %v2063
    %v2065 = vpop.f32.mrf.mxu0
    %v2066 = vpop.f32.mrf.mxu0
    %v2067 = vadd.f32 %v1993, %v2066
    %v2068 = vpop.f32.mrf.mxu0
    %2069 = vmatprep.mubr.bf16.mxu0 %v2027
    %2070 = vmatmul.mubr.bf16.gmra.mxu0 %v2019
    %v2071 = vpop.f32.mrf.mxu0
    %v2072 = vadd.f32 %v1998, %v2071
    %v2073 = vpop.f32.mrf.mxu0
    %v2074 = vpop.f32.mrf.mxu0
    %v2075 = vadd.f32 %v2003, %v2074
    %v2076 = vpop.f32.mrf.mxu0
    %2077 = vdwg.mxu0
    %s2078 = sld [smem:[#allocation3 + $0x2]]
    %vm2079 = vcmp.gt.f32.partialorder %v2064, 0.0
    %vm2080 = vcmp.gt.f32.partialorder %v2067, 0.0
    %vm2081 = vcmp.gt.f32.partialorder %v2072, 0.0
    %vm2082 = vcmp.gt.f32.partialorder %v2075, 0.0
    %v2083 = vstv %s2078
    %v2084 = vmul.f32 %v2083, %v2064
    %v2085 = vmul.f32 %v2083, %v2067
    %v2086 = vmul.f32 %v2083, %v2072
    %v2087 = vmul.f32 %v2083, %v2075
    %v2088 = vsel %vm2079, %v2064, %v2084
    %v2089 = vsel %vm2080, %v2067, %v2085
    %v2090 = vsel %vm2081, %v2072, %v2086
    %v2091 = vsel %vm2082, %v2075, %v2087
    %v2092 = vpack.c.bf16 %v2089, %v2088
    %v2093 = vpack.c.bf16 %v2091, %v2090
    %v2094 = vld [vmem:[%s8] sm:$0xf]
    %v2095 = vld [vmem:[%s8 + $0x4] sm:$0xf]
    %v2096 = vld [vmem:[%s9] sm:$0xff]
    %v2097 = vld [vmem:[%s9 + $0x8] sm:$0xff]
    %2099 = vset.pattern.permute.xlu0 0
    %2100 = vperm.xlu0 %2099, %v2096
    %v2101 = vpop.permute.xlu0 %2100
    %2104 = vset.pattern.permute.xlu0 0
    %2105 = vperm.xlu0 %2104, %v2097
    %v2106 = vpop.permute.xlu0 %2105
    %v2110 = vunpack.c.l.b16 %v2094
    %v2111 = vunpack.c.l.b16 %v2095
    %v2112 = vpack.c.b16 %v2111, %v2110
    %vm2113 = vcmask 261120
    %v2115 = vsel %vm2113, %v2112, 0
    %2117 = vmatprep.subr.bf16.mxu0 0
    %2118 = vmatpush1.bf16.msra.mxu0 0
    %2119 = vmatprep.subr.bf16.mxu0 0
    %2120 = vmatpush1.bf16.msra.mxu0 0
    %2121 = vmatprep.subr.bf16.mxu0 0
    %2122 = vmatpush1.bf16.msra.mxu0 0
    %2123 = vmatprep.subr.bf16.mxu0 0
    %2124 = vmatpush1.bf16.msra.mxu0 0
    %2125 = vmatprep.subr.bf16.mxu0 0
    %2126 = vmatpush1.bf16.msra.mxu0 0
    %2127 = vmatprep.subr.bf16.mxu0 0
    %2128 = vmatpush1.bf16.msra.mxu0 0
    %2129 = vmatprep.subr.bf16.mxu0 0
    %2130 = vmatpush1.bf16.msra.mxu0 %v2093
    %2131 = vmatprep.subr.bf16.mxu0 0
    %2132 = vmatpush1.bf16.msra.mxu0 %v2092
    %2133 = vmatprep.subr.bf16.mxu0 0
    %2134 = vmatpush2.bf16.msra.mxu0 0
    %2135 = vmatprep.subr.bf16.mxu0 0
    %2136 = vmatpush2.bf16.msra.mxu0 0
    %2137 = vmatprep.subr.bf16.mxu0 0
    %2138 = vmatpush2.bf16.msra.mxu0 0
    %2139 = vmatprep.subr.bf16.mxu0 0
    %2140 = vmatpush2.bf16.msra.mxu0 0
    %2141 = vmatprep.subr.bf16.mxu0 0
    %2142 = vmatpush2.bf16.msra.mxu0 0
    %2143 = vmatprep.subr.bf16.mxu0 0
    %2144 = vmatpush2.bf16.msra.mxu0 0
    %2145 = vmatprep.subr.bf16.mxu0 0
    %2146 = vmatpush2.bf16.msra.mxu0 0
    %2147 = vmatprep.subr.bf16.mxu0 0
    %2148 = vmatpush2.bf16.msra.mxu0 0
    %2149 = vmatprep.mubr.bf16.mxu0 0
    %2150 = vmatmul.mubr.bf16.gmra.mxu0 %v2115
    %v2151 = vpop.f32.mrf.mxu0
    %v2152 = vadd.f32 %v2101, %v2151
    %v2153 = vpop.f32.mrf.mxu0
    %v2154 = vpop.f32.mrf.mxu0
    %v2155 = vadd.f32 %v2106, %v2154
    %v2156 = vpop.f32.mrf.mxu0
    %2157 = vdwg.mxu0
    %vm2158 = vcmask 138240
    %2159 = vst.msk [vmem:[%s11] sm:$0xff] %vm2158, %v2152
    %2160 = vst.msk [vmem:[%s11 + $0x8] sm:$0xff] %vm2158, %v2155
    // Predicated region
    $region50: #{pnet_forward.1} parent=1 // pred_check
      _
    $region51: #{pnet_forward.1} parent=1 // pred_check_branch
      %2162 = sbr.rel (0) target = $region53
    $region52: #{pnet_forward.1} parent=1 // pred_region
      _
    $region53: #{pnet_forward.1} parent=1 // pred_fallthru
      _
    // Predicated region
    $region54: #{pnet_forward.1} parent=1 // pred_check
      _
    $region55: #{pnet_forward.1} parent=1 // pred_check_branch
      %2164 = sbr.rel (0) target = $region57
    $region56: #{pnet_forward.1} parent=1 // pred_region
      _
    $region57: #{pnet_forward.1} parent=1 // pred_fallthru
      _
    %2165 = vsyncpa [#allocation4], 1

</llo_original>
